<compile_context>
chip_gen: v7x
topology: tpu7x:2x2x1
jax: 0.10.0
libtpu: 0.0.40
codegen_flags: <defaults>
</compile_context>

<pallas_src>
import functools

import numpy as np

import jax
import jax.numpy as jnp
from jax.experimental import pallas as pl
from jax.experimental.pallas import tpu as pltpu


def _tree_sum(vals):
    """Pairwise-reduce a list of equal-shape arrays (breaks the serial add chain)."""
    vals = list(vals)
    while len(vals) > 1:
        nxt = [vals[i] + vals[i + 1] for i in range(0, len(vals) - 1, 2)]
        if len(vals) % 2 == 1:
            nxt.append(vals[-1])
        vals = nxt
    return vals[0]


def _fused_kernel(x_ref, w1_ref, b1_ref, w2_ref, b2_ref, w3_ref, b3_ref,
                  m2_ref, m3_ref, o_ref, *, pitch, l2_acc, l3_acc, l_out):
    """B images per grid step; 3 x (full 3x3 conv = 1 matmul + 9 shifted adds)."""
    w1 = w1_ref[...]; b1 = b1_ref[...]
    w2 = w2_ref[...]; b2 = b2_ref[...]
    w3 = w3_ref[...]; b3 = b3_ref[...]
    m2 = m2_ref[...]; m3 = m3_ref[...]

    def full_conv(canvas_bf16, w, b, acc_len):
        """canvas_bf16: (Cin, Lin) bf16 flat canvas with row pitch `pitch`.

        Returns (Cout, acc_len) f32.  Requires Lin >= acc_len + 2*pitch + 2 so
        every shifted tap slice stays in bounds (checked in the wrapper)."""
        c_out = b.shape[0]
        c_pad = w.shape[0] // 9
        y = jnp.dot(w, canvas_bf16, preferred_element_type=jnp.float32)
        taps = []
        for t in range(9):
            dy, dx = divmod(t, 3)
            off = dy * pitch + dx
            taps.append(y[t * c_pad:t * c_pad + c_out, off:off + acc_len])
        return _tree_sum(taps) + b

    n_b = x_ref.shape[0]
    for b in range(n_b):
        # layer 1: 64 -> 32, ReLU  (input canvas already bf16 + zero padded)
        a1 = full_conv(x_ref[b], w1, b1, l2_acc)
        # layer 2: 32 -> 6, ReLU   (mask keeps only layer-1's valid window)
        a2 = full_conv((jnp.maximum(a1, 0.0) * m2).astype(jnp.bfloat16),
                       w2, b2, l3_acc)
        # layer 3: 6 -> 3, tanh
        a3 = full_conv((jnp.maximum(a2, 0.0) * m3).astype(jnp.bfloat16),
                       w3, b3, l_out)
        # lane-dense (3, (H+6)*P) store; wrapper crops the padded columns.
        o_ref[b] = jnp.tanh(a3).astype(o_ref.dtype)


def prepare_params(params):
    """Fold the ConvTranspose2d -> full-conv weight transform once (setup time)."""
    def taps(w_t):
        # w_t: (Cin, Cout, 3, 3) PyTorch ConvTranspose2d layout.
        c_in, c_out = w_t.shape[0], w_t.shape[1]
        c_pad = ((c_out + 7) // 8) * 8
        w = jnp.flip(w_t, axis=(2, 3)).transpose(2, 3, 1, 0)   # (3,3,Cout,Cin)
        w = jnp.pad(w, ((0, 0), (0, 0), (0, c_pad - c_out), (0, 0)))
        return w.reshape(9 * c_pad, c_in).astype(jnp.bfloat16)

    def bias(b):
        return b.reshape(-1, 1).astype(jnp.float32)

    return {"w1": taps(params["w1"]), "b1": bias(params["b1"]),
            "w2": taps(params["w2"]), "b2": bias(params["b2"]),
            "w3": taps(params["w3"]), "b3": bias(params["b3"])}


def _pick_batch_block(n):
    for b in (4, 3, 2):
        if n % b == 0:
            return b
    return 1


@jax.jit
def model_forward(x_nchw, prep):
    """x_nchw: (N, 64, H, W) f32 -> (N, 3, H+6, W+6) f32 (NCHW in, NCHW out)."""
    N, c_in, H, W = x_nchw.shape
    assert c_in == 64

    P = W + 8                       # shared flat row pitch for every layer
    l_out = (H + 6) * P             # final accumulator / kernel-output length
    l3_in = l_out + 2 * P + 2       # layer-3 operand length
    l2_in = l3_in + 2 * P + 2       # layer-2 operand length (= layer-1 acc length)
    l1_min = l2_in + 2 * P + 2      # minimal layer-1 operand length
    r1 = -(-l1_min // P)            # x-canvas rows, rounded to full rows
    l1 = r1 * P
    # Tap-slice bounds invariant: operand length >= acc length + 2*P + 2.
    assert l1 >= l2_in + 2 * P + 2
    assert l2_in >= l3_in + 2 * P + 2
    assert l3_in >= l_out + 2 * P + 2
    assert r1 - 6 - H >= 0 and P - 6 - W >= 0

    # bf16 input canvas (zero padding done by XLA, not by in-kernel stores):
    # x placed at canvas rows [6, 6+H), cols [6, 6+W).
    xp = jnp.pad(x_nchw.astype(jnp.bfloat16),
                 ((0, 0), (0, 0), (6, r1 - 6 - H), (6, P - 6 - W)))
    x_flat = xp.reshape(N, c_in, l1)

    # Valid-output-window masks (compile-time constants; zero out the garbage
    # positions — incl. bias leakage — before a layer's acc feeds the next one).
    def window_mask(length, r0, c0):
        idx = np.arange(length)
        r, c = idx // P, idx % P
        m = (r >= r0) & (r < H + 6) & (c >= c0) & (c < W + 6)
        return jnp.asarray(m.astype(np.float32).reshape(1, length))

    mask2 = window_mask(l2_in, 4, 4)   # layer-1 output window
    mask3 = window_mask(l3_in, 2, 2)   # layer-2 output window

    B = _pick_batch_block(N)

    def full_spec(shape):
        return pl.BlockSpec(shape, lambda g, _s=shape: (0,) * len(_s))

    out_flat = pl.pallas_call(
        functools.partial(_fused_kernel, pitch=P,
                          l2_acc=l2_in, l3_acc=l3_in, l_out=l_out),
        out_shape=jax.ShapeDtypeStruct((N, 3, l_out), jnp.float32),
        grid=(N // B,),
        in_specs=[
            pl.BlockSpec((B, c_in, l1), lambda g: (g, 0, 0)),
            full_spec(prep["w1"].shape), full_spec(prep["b1"].shape),
            full_spec(prep["w2"].shape), full_spec(prep["b2"].shape),
            full_spec(prep["w3"].shape), full_spec(prep["b3"].shape),
            full_spec((1, l2_in)), full_spec((1, l3_in)),
        ],
        out_specs=pl.BlockSpec((B, 3, l_out), lambda g: (g, 0, 0)),
        compiler_params=pltpu.CompilerParams(
            dimension_semantics=("parallel",),
            vmem_limit_bytes=48 * 1024 * 1024),
    )(x_flat, prep["w1"], prep["b1"], prep["w2"], prep["b2"],
      prep["w3"], prep["b3"], mask2, mask3)

    # Lane-dense kernel output -> crop the padded columns in XLA (cheap).
    return out_flat.reshape(N, 3, H + 6, P)[..., :W + 6]


def _reference_forward(x_nchw, params, compute_dtype=jnp.float32):
    """Pure-XLA reference; compute_dtype selects conv operand precision."""
    def layer(x, w_t, b, act):
        w = jnp.flip(w_t, axis=(2, 3)).transpose(2, 3, 0, 1)   # (3,3,Cin,Cout)
        y = jax.lax.conv_general_dilated(
            x.astype(compute_dtype), w.astype(compute_dtype),
            window_strides=(1, 1), padding=((2, 2), (2, 2)),
            dimension_numbers=("NCHW", "HWIO", "NCHW"),
            preferred_element_type=jnp.float32)
        y = y + b.reshape(1, -1, 1, 1)
        return jnp.maximum(y, 0.0) if act == "relu" else jnp.tanh(y)

    x = layer(x_nchw, params["w1"], params["b1"], "relu")
    x = layer(x, params["w2"], params["b2"], "relu")
    x = layer(x, params["w3"], params["b3"], "tanh")
    return x


if __name__ == "__main__":
    key = jax.random.PRNGKey(0)
    kx, k1, k2, k3, kb1, kb2, kb3 = jax.random.split(key, 7)

    # Small input consistent with the module (channel sizes fixed by the module).
    N, H, W = 2, 16, 16
    x = jax.random.normal(kx, (N, 64, H, W), dtype=jnp.float32)

    params = {
        "w1": 0.05 * jax.random.normal(k1, (64, 32, 3, 3), dtype=jnp.float32),
        "b1": 0.05 * jax.random.normal(kb1, (32,), dtype=jnp.float32),
        "w2": 0.05 * jax.random.normal(k2, (32, 6, 3, 3), dtype=jnp.float32),
        "b2": 0.05 * jax.random.normal(kb2, (6,), dtype=jnp.float32),
        "w3": 0.05 * jax.random.normal(k3, (6, 3, 3, 3), dtype=jnp.float32),
        "b3": 0.05 * jax.random.normal(kb3, (3,), dtype=jnp.float32),
    }

    prep = prepare_params(params)          # weight folding done once, offline
    out = jax.block_until_ready(model_forward(x, prep))
    assert out.shape == (N, 3, H + 6, W + 6), out.shape

    # Tight check vs a reference using the same bf16-operand / f32-accumulate math.
    ref_bf16 = jax.block_until_ready(
        _reference_forward(x, params, compute_dtype=jnp.bfloat16))
    err = float(jnp.max(jnp.abs(out - ref_bf16)))
    assert err < 8e-3, err

    # Loose sanity check vs the full-f32 reference (bf16 operand rounding only).
    ref_f32 = jax.block_until_ready(_reference_forward(x, params))
    err32 = float(jnp.max(jnp.abs(out - ref_f32)))
    assert err32 < 5e-2, err32

    print("KERNEL_OK")
</pallas_src>

<mosaic_0001>
module attributes {stable_mosaic.version = 11 : i64} {
  func.func @_fused_kernel(%arg0: i32, %arg1: memref<2x64x696xbf16, #tpu.memory_space<vmem>>, %arg2: memref<288x64xbf16, #tpu.memory_space<vmem>>, %arg3: memref<32x1xf32, #tpu.memory_space<vmem>>, %arg4: memref<72x32xbf16, #tpu.memory_space<vmem>>, %arg5: memref<6x1xf32, #tpu.memory_space<vmem>>, %arg6: memref<72x6xbf16, #tpu.memory_space<vmem>>, %arg7: memref<3x1xf32, #tpu.memory_space<vmem>>, %arg8: memref<1x628xf32, #tpu.memory_space<vmem>>, %arg9: memref<1x578xf32, #tpu.memory_space<vmem>>, %arg10: memref<2x3x528xf32, #tpu.memory_space<vmem>>) attributes {dimension_semantics = [#tpu.dimension_semantics<parallel>], iteration_bounds = array<i64: 1>, scalar_prefetch = 0 : i64, scratch_operands = 0 : i64, tpu.core_type = #tpu.core_type<tc>, window_params = [{transform_indices = @transform_0, window_bounds = array<i64: 2, 64, 696>}, {pipeline_mode = #tpu.pipeline_mode<synchronous>, transform_indices = @transform_1, window_bounds = array<i64: 288, 64>}, {pipeline_mode = #tpu.pipeline_mode<synchronous>, transform_indices = @transform_2, window_bounds = array<i64: 32, 1>}, {pipeline_mode = #tpu.pipeline_mode<synchronous>, transform_indices = @transform_3, window_bounds = array<i64: 72, 32>}, {pipeline_mode = #tpu.pipeline_mode<synchronous>, transform_indices = @transform_4, window_bounds = array<i64: 6, 1>}, {pipeline_mode = #tpu.pipeline_mode<synchronous>, transform_indices = @transform_5, window_bounds = array<i64: 72, 6>}, {pipeline_mode = #tpu.pipeline_mode<synchronous>, transform_indices = @transform_6, window_bounds = array<i64: 3, 1>}, {pipeline_mode = #tpu.pipeline_mode<synchronous>, transform_indices = @transform_7, window_bounds = array<i64: 1, 628>}, {pipeline_mode = #tpu.pipeline_mode<synchronous>, transform_indices = @transform_8, window_bounds = array<i64: 1, 578>}, {transform_indices = @transform_9, window_bounds = array<i64: 2, 3, 528>}]} {
    %c0 = arith.constant 0 : index
    %c0_0 = arith.constant 0 : index
    %0 = vector.load %arg2[%c0, %c0_0] : memref<288x64xbf16, #tpu.memory_space<vmem>>, vector<288x64xbf16>
    %c0_1 = arith.constant 0 : index
    %c0_2 = arith.constant 0 : index
    %1 = vector.load %arg3[%c0_1, %c0_2] : memref<32x1xf32, #tpu.memory_space<vmem>>, vector<32x1xf32>
    %c0_3 = arith.constant 0 : index
    %c0_4 = arith.constant 0 : index
    %2 = vector.load %arg4[%c0_3, %c0_4] : memref<72x32xbf16, #tpu.memory_space<vmem>>, vector<72x32xbf16>
    %c0_5 = arith.constant 0 : index
    %c0_6 = arith.constant 0 : index
    %3 = vector.load %arg5[%c0_5, %c0_6] : memref<6x1xf32, #tpu.memory_space<vmem>>, vector<6x1xf32>
    %c0_7 = arith.constant 0 : index
    %c0_8 = arith.constant 0 : index
    %4 = vector.load %arg6[%c0_7, %c0_8] : memref<72x6xbf16, #tpu.memory_space<vmem>>, vector<72x6xbf16>
    %c0_9 = arith.constant 0 : index
    %c0_10 = arith.constant 0 : index
    %5 = vector.load %arg7[%c0_9, %c0_10] : memref<3x1xf32, #tpu.memory_space<vmem>>, vector<3x1xf32>
    %c0_11 = arith.constant 0 : index
    %c0_12 = arith.constant 0 : index
    %6 = vector.load %arg8[%c0_11, %c0_12] : memref<1x628xf32, #tpu.memory_space<vmem>>, vector<1x628xf32>
    %c0_13 = arith.constant 0 : index
    %c0_14 = arith.constant 0 : index
    %7 = vector.load %arg9[%c0_13, %c0_14] : memref<1x578xf32, #tpu.memory_space<vmem>>, vector<1x578xf32>
    %c0_15 = arith.constant 0 : index
    %c0_16 = arith.constant 0 : index
    %c0_17 = arith.constant 0 : index
    %8 = vector.load %arg1[%c0_15, %c0_16, %c0_17] : memref<2x64x696xbf16, #tpu.memory_space<vmem>>, vector<1x64x696xbf16>
    %9 = vector.shape_cast %8 : vector<1x64x696xbf16> to vector<64x696xbf16>
    %cst = arith.constant dense<0.000000e+00> : vector<288x696xf32>
    %10 = tpu.matmul %0, %9, %cst {dimension_numbers = #tpu.dot_dimension_numbers<[1], [0], [0], [1], [0, 0, 1, 1], [], []>} : vector<288x64xbf16>, vector<64x696xbf16>, vector<288x696xf32> -> vector<288x696xf32>
    %11 = vector.extract_strided_slice %10 {offsets = [0, 0], sizes = [32, 628], strides = [1, 1]} : vector<288x696xf32> to vector<32x628xf32>
    %12 = vector.extract_strided_slice %10 {offsets = [32, 1], sizes = [32, 628], strides = [1, 1]} : vector<288x696xf32> to vector<32x628xf32>
    %13 = vector.extract_strided_slice %10 {offsets = [64, 2], sizes = [32, 628], strides = [1, 1]} : vector<288x696xf32> to vector<32x628xf32>
    %14 = vector.extract_strided_slice %10 {offsets = [96, 24], sizes = [32, 628], strides = [1, 1]} : vector<288x696xf32> to vector<32x628xf32>
    %15 = vector.extract_strided_slice %10 {offsets = [128, 25], sizes = [32, 628], strides = [1, 1]} : vector<288x696xf32> to vector<32x628xf32>
    %16 = vector.extract_strided_slice %10 {offsets = [160, 26], sizes = [32, 628], strides = [1, 1]} : vector<288x696xf32> to vector<32x628xf32>
    %17 = vector.extract_strided_slice %10 {offsets = [192, 48], sizes = [32, 628], strides = [1, 1]} : vector<288x696xf32> to vector<32x628xf32>
    %18 = vector.extract_strided_slice %10 {offsets = [224, 49], sizes = [32, 628], strides = [1, 1]} : vector<288x696xf32> to vector<32x628xf32>
    %19 = vector.extract_strided_slice %10 {offsets = [256, 50], sizes = [32, 628], strides = [1, 1]} : vector<288x696xf32> to vector<32x628xf32>
    %20 = arith.addf %11, %12 : vector<32x628xf32>
    %21 = arith.addf %13, %14 : vector<32x628xf32>
    %22 = arith.addf %15, %16 : vector<32x628xf32>
    %23 = arith.addf %17, %18 : vector<32x628xf32>
    %24 = arith.addf %20, %21 : vector<32x628xf32>
    %25 = arith.addf %22, %23 : vector<32x628xf32>
    %26 = arith.addf %24, %25 : vector<32x628xf32>
    %27 = arith.addf %26, %19 : vector<32x628xf32>
    %28 = vector.broadcast %1 : vector<32x1xf32> to vector<32x628xf32>
    %29 = arith.addf %27, %28 : vector<32x628xf32>
    %cst_18 = arith.constant 0.000000e+00 : f32
    %30 = vector.broadcast %cst_18 : f32 to vector<32x628xf32>
    %31 = arith.maximumf %29, %30 : vector<32x628xf32>
    %32 = vector.broadcast %6 : vector<1x628xf32> to vector<32x628xf32>
    %33 = arith.mulf %31, %32 : vector<32x628xf32>
    %34 = arith.truncf %33 : vector<32x628xf32> to vector<32x628xbf16>
    %cst_19 = arith.constant dense<0.000000e+00> : vector<72x628xf32>
    %35 = tpu.matmul %2, %34, %cst_19 {dimension_numbers = #tpu.dot_dimension_numbers<[1], [0], [0], [1], [0, 0, 1, 1], [], []>} : vector<72x32xbf16>, vector<32x628xbf16>, vector<72x628xf32> -> vector<72x628xf32>
    %36 = vector.extract_strided_slice %35 {offsets = [0, 0], sizes = [6, 578], strides = [1, 1]} : vector<72x628xf32> to vector<6x578xf32>
    %37 = vector.extract_strided_slice %35 {offsets = [8, 1], sizes = [6, 578], strides = [1, 1]} : vector<72x628xf32> to vector<6x578xf32>
    %38 = vector.extract_strided_slice %35 {offsets = [16, 2], sizes = [6, 578], strides = [1, 1]} : vector<72x628xf32> to vector<6x578xf32>
    %39 = vector.extract_strided_slice %35 {offsets = [24, 24], sizes = [6, 578], strides = [1, 1]} : vector<72x628xf32> to vector<6x578xf32>
    %40 = vector.extract_strided_slice %35 {offsets = [32, 25], sizes = [6, 578], strides = [1, 1]} : vector<72x628xf32> to vector<6x578xf32>
    %41 = vector.extract_strided_slice %35 {offsets = [40, 26], sizes = [6, 578], strides = [1, 1]} : vector<72x628xf32> to vector<6x578xf32>
    %42 = vector.extract_strided_slice %35 {offsets = [48, 48], sizes = [6, 578], strides = [1, 1]} : vector<72x628xf32> to vector<6x578xf32>
    %43 = vector.extract_strided_slice %35 {offsets = [56, 49], sizes = [6, 578], strides = [1, 1]} : vector<72x628xf32> to vector<6x578xf32>
    %44 = vector.extract_strided_slice %35 {offsets = [64, 50], sizes = [6, 578], strides = [1, 1]} : vector<72x628xf32> to vector<6x578xf32>
    %45 = arith.addf %36, %37 : vector<6x578xf32>
    %46 = arith.addf %38, %39 : vector<6x578xf32>
    %47 = arith.addf %40, %41 : vector<6x578xf32>
    %48 = arith.addf %42, %43 : vector<6x578xf32>
    %49 = arith.addf %45, %46 : vector<6x578xf32>
    %50 = arith.addf %47, %48 : vector<6x578xf32>
    %51 = arith.addf %49, %50 : vector<6x578xf32>
    %52 = arith.addf %51, %44 : vector<6x578xf32>
    %53 = vector.broadcast %3 : vector<6x1xf32> to vector<6x578xf32>
    %54 = arith.addf %52, %53 : vector<6x578xf32>
    %cst_20 = arith.constant 0.000000e+00 : f32
    %55 = vector.broadcast %cst_20 : f32 to vector<6x578xf32>
    %56 = arith.maximumf %54, %55 : vector<6x578xf32>
    %57 = vector.broadcast %7 : vector<1x578xf32> to vector<6x578xf32>
    %58 = arith.mulf %56, %57 : vector<6x578xf32>
    %59 = arith.truncf %58 : vector<6x578xf32> to vector<6x578xbf16>
    %cst_21 = arith.constant dense<0.000000e+00> : vector<72x578xf32>
    %60 = tpu.matmul %4, %59, %cst_21 {dimension_numbers = #tpu.dot_dimension_numbers<[1], [0], [0], [1], [0, 0, 1, 1], [], []>} : vector<72x6xbf16>, vector<6x578xbf16>, vector<72x578xf32> -> vector<72x578xf32>
    %61 = vector.extract_strided_slice %60 {offsets = [0, 0], sizes = [3, 528], strides = [1, 1]} : vector<72x578xf32> to vector<3x528xf32>
    %62 = vector.extract_strided_slice %60 {offsets = [8, 1], sizes = [3, 528], strides = [1, 1]} : vector<72x578xf32> to vector<3x528xf32>
    %63 = vector.extract_strided_slice %60 {offsets = [16, 2], sizes = [3, 528], strides = [1, 1]} : vector<72x578xf32> to vector<3x528xf32>
    %64 = vector.extract_strided_slice %60 {offsets = [24, 24], sizes = [3, 528], strides = [1, 1]} : vector<72x578xf32> to vector<3x528xf32>
    %65 = vector.extract_strided_slice %60 {offsets = [32, 25], sizes = [3, 528], strides = [1, 1]} : vector<72x578xf32> to vector<3x528xf32>
    %66 = vector.extract_strided_slice %60 {offsets = [40, 26], sizes = [3, 528], strides = [1, 1]} : vector<72x578xf32> to vector<3x528xf32>
    %67 = vector.extract_strided_slice %60 {offsets = [48, 48], sizes = [3, 528], strides = [1, 1]} : vector<72x578xf32> to vector<3x528xf32>
    %68 = vector.extract_strided_slice %60 {offsets = [56, 49], sizes = [3, 528], strides = [1, 1]} : vector<72x578xf32> to vector<3x528xf32>
    %69 = vector.extract_strided_slice %60 {offsets = [64, 50], sizes = [3, 528], strides = [1, 1]} : vector<72x578xf32> to vector<3x528xf32>
    %70 = arith.addf %61, %62 : vector<3x528xf32>
    %71 = arith.addf %63, %64 : vector<3x528xf32>
    %72 = arith.addf %65, %66 : vector<3x528xf32>
    %73 = arith.addf %67, %68 : vector<3x528xf32>
    %74 = arith.addf %70, %71 : vector<3x528xf32>
    %75 = arith.addf %72, %73 : vector<3x528xf32>
    %76 = arith.addf %74, %75 : vector<3x528xf32>
    %77 = arith.addf %76, %69 : vector<3x528xf32>
    %78 = vector.broadcast %5 : vector<3x1xf32> to vector<3x528xf32>
    %79 = arith.addf %77, %78 : vector<3x528xf32>
    %80 = math.tanh %79 : vector<3x528xf32>
    %c0_22 = arith.constant 0 : index
    %c0_23 = arith.constant 0 : index
    %c0_24 = arith.constant 0 : index
    %81 = vector.load %arg10[%c0_22, %c0_23, %c0_24] : memref<2x3x528xf32, #tpu.memory_space<vmem>>, vector<1x3x528xf32>
    %82 = vector.shape_cast %81 : vector<1x3x528xf32> to vector<3x528xf32>
    %83 = vector.shape_cast %80 : vector<3x528xf32> to vector<1x3x528xf32>
    tpu.vector_store %arg10[%c0_22, %c0_23, %c0_24], %83 {strides = array<i32>} : memref<2x3x528xf32, #tpu.memory_space<vmem>>, vector<1x3x528xf32>,
    %c1 = arith.constant 1 : index
    %c0_25 = arith.constant 0 : index
    %c0_26 = arith.constant 0 : index
    %84 = vector.load %arg1[%c1, %c0_25, %c0_26] : memref<2x64x696xbf16, #tpu.memory_space<vmem>>, vector<1x64x696xbf16>
    %85 = vector.shape_cast %84 : vector<1x64x696xbf16> to vector<64x696xbf16>
    %cst_27 = arith.constant dense<0.000000e+00> : vector<288x696xf32>
    %86 = tpu.matmul %0, %85, %cst_27 {dimension_numbers = #tpu.dot_dimension_numbers<[1], [0], [0], [1], [0, 0, 1, 1], [], []>} : vector<288x64xbf16>, vector<64x696xbf16>, vector<288x696xf32> -> vector<288x696xf32>
    %87 = vector.extract_strided_slice %86 {offsets = [0, 0], sizes = [32, 628], strides = [1, 1]} : vector<288x696xf32> to vector<32x628xf32>
    %88 = vector.extract_strided_slice %86 {offsets = [32, 1], sizes = [32, 628], strides = [1, 1]} : vector<288x696xf32> to vector<32x628xf32>
    %89 = vector.extract_strided_slice %86 {offsets = [64, 2], sizes = [32, 628], strides = [1, 1]} : vector<288x696xf32> to vector<32x628xf32>
    %90 = vector.extract_strided_slice %86 {offsets = [96, 24], sizes = [32, 628], strides = [1, 1]} : vector<288x696xf32> to vector<32x628xf32>
    %91 = vector.extract_strided_slice %86 {offsets = [128, 25], sizes = [32, 628], strides = [1, 1]} : vector<288x696xf32> to vector<32x628xf32>
    %92 = vector.extract_strided_slice %86 {offsets = [160, 26], sizes = [32, 628], strides = [1, 1]} : vector<288x696xf32> to vector<32x628xf32>
    %93 = vector.extract_strided_slice %86 {offsets = [192, 48], sizes = [32, 628], strides = [1, 1]} : vector<288x696xf32> to vector<32x628xf32>
    %94 = vector.extract_strided_slice %86 {offsets = [224, 49], sizes = [32, 628], strides = [1, 1]} : vector<288x696xf32> to vector<32x628xf32>
    %95 = vector.extract_strided_slice %86 {offsets = [256, 50], sizes = [32, 628], strides = [1, 1]} : vector<288x696xf32> to vector<32x628xf32>
    %96 = arith.addf %87, %88 : vector<32x628xf32>
    %97 = arith.addf %89, %90 : vector<32x628xf32>
    %98 = arith.addf %91, %92 : vector<32x628xf32>
    %99 = arith.addf %93, %94 : vector<32x628xf32>
    %100 = arith.addf %96, %97 : vector<32x628xf32>
    %101 = arith.addf %98, %99 : vector<32x628xf32>
    %102 = arith.addf %100, %101 : vector<32x628xf32>
    %103 = arith.addf %102, %95 : vector<32x628xf32>
    %104 = vector.broadcast %1 : vector<32x1xf32> to vector<32x628xf32>
    %105 = arith.addf %103, %104 : vector<32x628xf32>
    %cst_28 = arith.constant 0.000000e+00 : f32
    %106 = vector.broadcast %cst_28 : f32 to vector<32x628xf32>
    %107 = arith.maximumf %105, %106 : vector<32x628xf32>
    %108 = vector.broadcast %6 : vector<1x628xf32> to vector<32x628xf32>
    %109 = arith.mulf %107, %108 : vector<32x628xf32>
    %110 = arith.truncf %109 : vector<32x628xf32> to vector<32x628xbf16>
    %cst_29 = arith.constant dense<0.000000e+00> : vector<72x628xf32>
    %111 = tpu.matmul %2, %110, %cst_29 {dimension_numbers = #tpu.dot_dimension_numbers<[1], [0], [0], [1], [0, 0, 1, 1], [], []>} : vector<72x32xbf16>, vector<32x628xbf16>, vector<72x628xf32> -> vector<72x628xf32>
    %112 = vector.extract_strided_slice %111 {offsets = [0, 0], sizes = [6, 578], strides = [1, 1]} : vector<72x628xf32> to vector<6x578xf32>
    %113 = vector.extract_strided_slice %111 {offsets = [8, 1], sizes = [6, 578], strides = [1, 1]} : vector<72x628xf32> to vector<6x578xf32>
    %114 = vector.extract_strided_slice %111 {offsets = [16, 2], sizes = [6, 578], strides = [1, 1]} : vector<72x628xf32> to vector<6x578xf32>
    %115 = vector.extract_strided_slice %111 {offsets = [24, 24], sizes = [6, 578], strides = [1, 1]} : vector<72x628xf32> to vector<6x578xf32>
    %116 = vector.extract_strided_slice %111 {offsets = [32, 25], sizes = [6, 578], strides = [1, 1]} : vector<72x628xf32> to vector<6x578xf32>
    %117 = vector.extract_strided_slice %111 {offsets = [40, 26], sizes = [6, 578], strides = [1, 1]} : vector<72x628xf32> to vector<6x578xf32>
    %118 = vector.extract_strided_slice %111 {offsets = [48, 48], sizes = [6, 578], strides = [1, 1]} : vector<72x628xf32> to vector<6x578xf32>
    %119 = vector.extract_strided_slice %111 {offsets = [56, 49], sizes = [6, 578], strides = [1, 1]} : vector<72x628xf32> to vector<6x578xf32>
    %120 = vector.extract_strided_slice %111 {offsets = [64, 50], sizes = [6, 578], strides = [1, 1]} : vector<72x628xf32> to vector<6x578xf32>
    %121 = arith.addf %112, %113 : vector<6x578xf32>
    %122 = arith.addf %114, %115 : vector<6x578xf32>
    %123 = arith.addf %116, %117 : vector<6x578xf32>
    %124 = arith.addf %118, %119 : vector<6x578xf32>
    %125 = arith.addf %121, %122 : vector<6x578xf32>
    %126 = arith.addf %123, %124 : vector<6x578xf32>
    %127 = arith.addf %125, %126 : vector<6x578xf32>
    %128 = arith.addf %127, %120 : vector<6x578xf32>
    %129 = vector.broadcast %3 : vector<6x1xf32> to vector<6x578xf32>
    %130 = arith.addf %128, %129 : vector<6x578xf32>
    %cst_30 = arith.constant 0.000000e+00 : f32
    %131 = vector.broadcast %cst_30 : f32 to vector<6x578xf32>
    %132 = arith.maximumf %130, %131 : vector<6x578xf32>
    %133 = vector.broadcast %7 : vector<1x578xf32> to vector<6x578xf32>
    %134 = arith.mulf %132, %133 : vector<6x578xf32>
    %135 = arith.truncf %134 : vector<6x578xf32> to vector<6x578xbf16>
    %cst_31 = arith.constant dense<0.000000e+00> : vector<72x578xf32>
    %136 = tpu.matmul %4, %135, %cst_31 {dimension_numbers = #tpu.dot_dimension_numbers<[1], [0], [0], [1], [0, 0, 1, 1], [], []>} : vector<72x6xbf16>, vector<6x578xbf16>, vector<72x578xf32> -> vector<72x578xf32>
    %137 = vector.extract_strided_slice %136 {offsets = [0, 0], sizes = [3, 528], strides = [1, 1]} : vector<72x578xf32> to vector<3x528xf32>
    %138 = vector.extract_strided_slice %136 {offsets = [8, 1], sizes = [3, 528], strides = [1, 1]} : vector<72x578xf32> to vector<3x528xf32>
    %139 = vector.extract_strided_slice %136 {offsets = [16, 2], sizes = [3, 528], strides = [1, 1]} : vector<72x578xf32> to vector<3x528xf32>
    %140 = vector.extract_strided_slice %136 {offsets = [24, 24], sizes = [3, 528], strides = [1, 1]} : vector<72x578xf32> to vector<3x528xf32>
    %141 = vector.extract_strided_slice %136 {offsets = [32, 25], sizes = [3, 528], strides = [1, 1]} : vector<72x578xf32> to vector<3x528xf32>
    %142 = vector.extract_strided_slice %136 {offsets = [40, 26], sizes = [3, 528], strides = [1, 1]} : vector<72x578xf32> to vector<3x528xf32>
    %143 = vector.extract_strided_slice %136 {offsets = [48, 48], sizes = [3, 528], strides = [1, 1]} : vector<72x578xf32> to vector<3x528xf32>
    %144 = vector.extract_strided_slice %136 {offsets = [56, 49], sizes = [3, 528], strides = [1, 1]} : vector<72x578xf32> to vector<3x528xf32>
    %145 = vector.extract_strided_slice %136 {offsets = [64, 50], sizes = [3, 528], strides = [1, 1]} : vector<72x578xf32> to vector<3x528xf32>
    %146 = arith.addf %137, %138 : vector<3x528xf32>
    %147 = arith.addf %139, %140 : vector<3x528xf32>
    %148 = arith.addf %141, %142 : vector<3x528xf32>
    %149 = arith.addf %143, %144 : vector<3x528xf32>
    %150 = arith.addf %146, %147 : vector<3x528xf32>
    %151 = arith.addf %148, %149 : vector<3x528xf32>
    %152 = arith.addf %150, %151 : vector<3x528xf32>
    %153 = arith.addf %152, %145 : vector<3x528xf32>
    %154 = vector.broadcast %5 : vector<3x1xf32> to vector<3x528xf32>
    %155 = arith.addf %153, %154 : vector<3x528xf32>
    %156 = math.tanh %155 : vector<3x528xf32>
    %c1_32 = arith.constant 1 : index
    %c0_33 = arith.constant 0 : index
    %c0_34 = arith.constant 0 : index
    %157 = vector.load %arg10[%c1_32, %c0_33, %c0_34] : memref<2x3x528xf32, #tpu.memory_space<vmem>>, vector<1x3x528xf32>
    %158 = vector.shape_cast %157 : vector<1x3x528xf32> to vector<3x528xf32>
    %159 = vector.shape_cast %156 : vector<3x528xf32> to vector<1x3x528xf32>
    tpu.vector_store %arg10[%c1_32, %c0_33, %c0_34], %159 {strides = array<i32>} : memref<2x3x528xf32, #tpu.memory_space<vmem>>, vector<1x3x528xf32>,
    return
  }
  func.func @transform_0(%arg0: i32) -> (i32, i32, i32) {
    %c0_i32 = arith.constant 0 : i32
    %c0_i32_0 = arith.constant 0 : i32
    %c0_i32_1 = arith.constant 0 : i32
    return %arg0, %c0_i32, %c0_i32_0 : i32, i32, i32
  }
  func.func @transform_1(%arg0: i32) -> (i32, i32) {
    %c0_i32 = arith.constant 0 : i32
    %c0_i32_0 = arith.constant 0 : i32
    %c0_i32_1 = arith.constant 0 : i32
    return %c0_i32, %c0_i32_0 : i32, i32
  }
  func.func @transform_2(%arg0: i32) -> (i32, i32) {
    %c0_i32 = arith.constant 0 : i32
    %c0_i32_0 = arith.constant 0 : i32
    %c0_i32_1 = arith.constant 0 : i32
    return %c0_i32, %c0_i32_0 : i32, i32
  }
  func.func @transform_3(%arg0: i32) -> (i32, i32) {
    %c0_i32 = arith.constant 0 : i32
    %c0_i32_0 = arith.constant 0 : i32
    %c0_i32_1 = arith.constant 0 : i32
    return %c0_i32, %c0_i32_0 : i32, i32
  }
  func.func @transform_4(%arg0: i32) -> (i32, i32) {
    %c0_i32 = arith.constant 0 : i32
    %c0_i32_0 = arith.constant 0 : i32
    %c0_i32_1 = arith.constant 0 : i32
    return %c0_i32, %c0_i32_0 : i32, i32
  }
  func.func @transform_5(%arg0: i32) -> (i32, i32) {
    %c0_i32 = arith.constant 0 : i32
    %c0_i32_0 = arith.constant 0 : i32
    %c0_i32_1 = arith.constant 0 : i32
    return %c0_i32, %c0_i32_0 : i32, i32
  }
  func.func @transform_6(%arg0: i32) -> (i32, i32) {
    %c0_i32 = arith.constant 0 : i32
    %c0_i32_0 = arith.constant 0 : i32
    %c0_i32_1 = arith.constant 0 : i32
    return %c0_i32, %c0_i32_0 : i32, i32
  }
  func.func @transform_7(%arg0: i32) -> (i32, i32) {
    %c0_i32 = arith.constant 0 : i32
    %c0_i32_0 = arith.constant 0 : i32
    %c0_i32_1 = arith.constant 0 : i32
    return %c0_i32, %c0_i32_0 : i32, i32
  }
  func.func @transform_8(%arg0: i32) -> (i32, i32) {
    %c0_i32 = arith.constant 0 : i32
    %c0_i32_0 = arith.constant 0 : i32
    %c0_i32_1 = arith.constant 0 : i32
    return %c0_i32, %c0_i32_0 : i32, i32
  }
  func.func @transform_9(%arg0: i32) -> (i32, i32, i32) {
    %c0_i32 = arith.constant 0 : i32
    %c0_i32_0 = arith.constant 0 : i32
    %c0_i32_1 = arith.constant 0 : i32
    return %arg0, %c0_i32, %c0_i32_0 : i32, i32, i32
  }
}

</mosaic_0001>

<llo_original>
// kernel: model_forward.1
$region0: #{model_forward.1}
  #allocation0 [shape = 'u32[]', space=smem, size = 0x4, offset = 0x4, fixed_abs, tag = 'smem constant byte address 0x4 - core index']
  #allocation1 [shape = 'u32[144,128]{1,0:T(1,128)}', space=vmem, size = 0x12000, scoped, tag = 'internal scratch']
  %s0 = inlined_call_operand.vmem [shape: bf16[2,64,696], index: 0, kind: input, shape index: {}]
  %s1 = inlined_call_operand.vmem [shape: bf16[288,64], index: 1, kind: input, shape index: {}]
  %s2 = inlined_call_operand.vmem [shape: f32[32,1], index: 2, kind: input, shape index: {}]
  %s3 = inlined_call_operand.vmem [shape: bf16[72,32], index: 3, kind: input, shape index: {}]
  %s4 = inlined_call_operand.vmem [shape: f32[6,1], index: 4, kind: input, shape index: {}]
  %s5 = inlined_call_operand.vmem [shape: bf16[72,6], index: 5, kind: input, shape index: {}]
  %s6 = inlined_call_operand.vmem [shape: f32[3,1], index: 6, kind: input, shape index: {}]
  %s7 = inlined_call_operand.vmem [shape: f32[1,628], index: 7, kind: input, shape index: {}]
  %s8 = inlined_call_operand.vmem [shape: f32[1,578], index: 8, kind: input, shape index: {}]
  %s9 = inlined_call_operand.vmem [shape: f32[2,3,528], index: 9, kind: output, shape index: {}]
  %s10 = sld [smem:[#allocation0]]
  $region46: #{model_forward.1} parent=0
    _
  %s12 = ssub.s32 1, %s10
  %s13 = scalar_select 0, %s12, %s10
  // Predicated region
  $region2: #{model_forward.1} parent=0 // pred_check
    _
  $region3: #{model_forward.1} parent=0 // pred_check_branch
    %15 = sbr.rel (0) target = $region5
  $region4: #{model_forward.1} parent=0 // pred_region
    _
  $region5: #{model_forward.1} parent=0 // pred_fallthru
    _
  // Predicated region
  $region6: #{model_forward.1} parent=0 // pred_check
    _
  $region7: #{model_forward.1} parent=0 // pred_check_branch
    %17 = sbr.rel (0) target = $region9
  $region8: #{model_forward.1} parent=0 // pred_region
    _
  $region9: #{model_forward.1} parent=0 // pred_fallthru
    _
  // Predicated region
  $region10: #{model_forward.1} parent=0 // pred_check
    _
  $region11: #{model_forward.1} parent=0 // pred_check_branch
    %19 = sbr.rel (0) target = $region13
  $region12: #{model_forward.1} parent=0 // pred_region
    _
  $region13: #{model_forward.1} parent=0 // pred_fallthru
    _
  // Predicated region
  $region14: #{model_forward.1} parent=0 // pred_check
    _
  $region15: #{model_forward.1} parent=0 // pred_check_branch
    %21 = sbr.rel (0) target = $region17
  $region16: #{model_forward.1} parent=0 // pred_region
    _
  $region17: #{model_forward.1} parent=0 // pred_fallthru
    _
  // Predicated region
  $region18: #{model_forward.1} parent=0 // pred_check
    _
  $region19: #{model_forward.1} parent=0 // pred_check_branch
    %23 = sbr.rel (0) target = $region21
  $region20: #{model_forward.1} parent=0 // pred_region
    _
  $region21: #{model_forward.1} parent=0 // pred_fallthru
    _
  // Predicated region
  $region22: #{model_forward.1} parent=0 // pred_check
    _
  $region23: #{model_forward.1} parent=0 // pred_check_branch
    %25 = sbr.rel (0) target = $region25
  $region24: #{model_forward.1} parent=0 // pred_region
    _
  $region25: #{model_forward.1} parent=0 // pred_fallthru
    _
  // Predicated region
  $region26: #{model_forward.1} parent=0 // pred_check
    _
  $region27: #{model_forward.1} parent=0 // pred_check_branch
    %27 = sbr.rel (0) target = $region29
  $region28: #{model_forward.1} parent=0 // pred_region
    _
  $region29: #{model_forward.1} parent=0 // pred_fallthru
    _
  // Predicated region
  $region30: #{model_forward.1} parent=0 // pred_check
    _
  $region31: #{model_forward.1} parent=0 // pred_check_branch
    %29 = sbr.rel (0) target = $region33
  $region32: #{model_forward.1} parent=0 // pred_region
    _
  $region33: #{model_forward.1} parent=0 // pred_fallthru
    _
  // Predicated region
  $region34: #{model_forward.1} parent=0 // pred_check
    _
  $region35: #{model_forward.1} parent=0 // pred_check_branch
    %31 = sbr.rel (0) target = $region37
  $region36: #{model_forward.1} parent=0 // pred_region
    _
  $region37: #{model_forward.1} parent=0 // pred_fallthru
    _
  %v33 = vld [vmem:[%s1] sm:$0xf]
  %v34 = vld [vmem:[%s1 + $0x4] sm:$0xf]
  %v35 = vld [vmem:[%s1 + $0x8] sm:$0xf]
  %v36 = vld [vmem:[%s1 + $0xc] sm:$0xf]
  %v37 = vld [vmem:[%s1 + $0x10] sm:$0xf]
  %v38 = vld [vmem:[%s1 + $0x14] sm:$0xf]
  %v39 = vld [vmem:[%s1 + $0x18] sm:$0xf]
  %v40 = vld [vmem:[%s1 + $0x1c] sm:$0xf]
  %v41 = vld [vmem:[%s1 + $0x20] sm:$0xf]
  %v42 = vld [vmem:[%s1 + $0x24] sm:$0xf]
  %v43 = vld [vmem:[%s1 + $0x28] sm:$0xf]
  %v44 = vld [vmem:[%s1 + $0x2c] sm:$0xf]
  %v45 = vld [vmem:[%s1 + $0x30] sm:$0xf]
  %v46 = vld [vmem:[%s1 + $0x34] sm:$0xf]
  %v47 = vld [vmem:[%s1 + $0x38] sm:$0xf]
  %v48 = vld [vmem:[%s1 + $0x3c] sm:$0xf]
  %v49 = vld [vmem:[%s1 + $0x40] sm:$0xf]
  %v50 = vld [vmem:[%s1 + $0x44] sm:$0xf]
  %v51 = vld [vmem:[%s1 + $0x48] sm:$0xf]
  %v52 = vld [vmem:[%s1 + $0x4c] sm:$0xf]
  %v53 = vld [vmem:[%s1 + $0x50] sm:$0xf]
  %v54 = vld [vmem:[%s1 + $0x54] sm:$0xf]
  %v55 = vld [vmem:[%s1 + $0x58] sm:$0xf]
  %v56 = vld [vmem:[%s1 + $0x5c] sm:$0xf]
  %v57 = vld [vmem:[%s1 + $0x60] sm:$0xf]
  %v58 = vld [vmem:[%s1 + $0x64] sm:$0xf]
  %v59 = vld [vmem:[%s1 + $0x68] sm:$0xf]
  %v60 = vld [vmem:[%s1 + $0x6c] sm:$0xf]
  %v61 = vld [vmem:[%s1 + $0x70] sm:$0xf]
  %v62 = vld [vmem:[%s1 + $0x74] sm:$0xf]
  %v63 = vld [vmem:[%s1 + $0x78] sm:$0xf]
  %v64 = vld [vmem:[%s1 + $0x7c] sm:$0xf]
  %v65 = vld [vmem:[%s1 + $0x80] sm:$0xf]
  %v66 = vld [vmem:[%s1 + $0x84] sm:$0xf]
  %v67 = vld [vmem:[%s1 + $0x88] sm:$0xf]
  %v68 = vld [vmem:[%s1 + $0x8c] sm:$0xf]
  %v69 = vld [vmem:[%s2] sm:$0xff]
  %v70 = vld [vmem:[%s2 + $0x8] sm:$0xff]
  %v71 = vld [vmem:[%s2 + $0x10] sm:$0xff]
  %v72 = vld [vmem:[%s2 + $0x18] sm:$0xff]
  %v73 = vld [vmem:[%s3] sm:$0xf]
  %v74 = vld [vmem:[%s3 + $0x4] sm:$0xf]
  %v75 = vld [vmem:[%s3 + $0x8] sm:$0xf]
  %v76 = vld [vmem:[%s3 + $0xc] sm:$0xf]
  %v77 = vld [vmem:[%s3 + $0x10] sm:$0xf]
  %v78 = vld [vmem:[%s3 + $0x14] sm:$0xf]
  %v79 = vld [vmem:[%s3 + $0x18] sm:$0xf]
  %v80 = vld [vmem:[%s3 + $0x1c] sm:$0xf]
  %v81 = vld [vmem:[%s3 + $0x20] sm:$0xf]
  %v82 = vld [vmem:[%s4] sm:$0x3f]
  %v83 = vld [vmem:[%s5] sm:$0xf]
  %v84 = vld [vmem:[%s5 + $0x4] sm:$0xf]
  %v85 = vld [vmem:[%s5 + $0x8] sm:$0xf]
  %v86 = vld [vmem:[%s5 + $0xc] sm:$0xf]
  %v87 = vld [vmem:[%s5 + $0x10] sm:$0xf]
  %v88 = vld [vmem:[%s5 + $0x14] sm:$0xf]
  %v89 = vld [vmem:[%s5 + $0x18] sm:$0xf]
  %v90 = vld [vmem:[%s5 + $0x1c] sm:$0xf]
  %v91 = vld [vmem:[%s5 + $0x20] sm:$0xf]
  %v92 = vld [vmem:[%s6] sm:$0x7]
  %v93 = vld [vmem:[%s7] sm:$0x1f]
  %v94 = vld [vmem:[%s8] sm:$0x1f]
  %v95 = vld [vmem:[%s0] sm:$0xff]
  %v96 = vld [vmem:[%s0 + $0x8] sm:$0xff]
  %v97 = vld [vmem:[%s0 + $0x10] sm:$0xff]
  %v98 = vld [vmem:[%s0 + $0x18] sm:$0xff]
  %v99 = vld [vmem:[%s0 + $0x20] sm:$0xff]
  %v100 = vld [vmem:[%s0 + $0x28] sm:$0xff]
  %v101 = vld [vmem:[%s0 + $0x30] sm:$0xff]
  %v102 = vld [vmem:[%s0 + $0x38] sm:$0xff]
  %v103 = vld [vmem:[%s0 + $0x40] sm:$0xff]
  %v104 = vld [vmem:[%s0 + $0x48] sm:$0xff]
  %v105 = vld [vmem:[%s0 + $0x50] sm:$0xff]
  %v106 = vld [vmem:[%s0 + $0x58] sm:$0xff]
  %v107 = vld [vmem:[%s0 + $0x60] sm:$0xff]
  %v108 = vld [vmem:[%s0 + $0x68] sm:$0xff]
  %v109 = vld [vmem:[%s0 + $0x70] sm:$0xff]
  %v110 = vld [vmem:[%s0 + $0x78] sm:$0xff]
  %v111 = vld [vmem:[%s0 + $0x80] sm:$0xff]
  %v112 = vld [vmem:[%s0 + $0x88] sm:$0xff]
  %v113 = vld [vmem:[%s0 + $0x90] sm:$0xff]
  %v114 = vld [vmem:[%s0 + $0x98] sm:$0xff]
  %v115 = vld [vmem:[%s0 + $0xa0] sm:$0xff]
  %v116 = vld [vmem:[%s0 + $0xa8] sm:$0xff]
  %v117 = vld [vmem:[%s0 + $0xb0] sm:$0xff]
  %v118 = vld [vmem:[%s0 + $0xb8] sm:$0xff]
  %v155 = vunpack.c.l.b16 %v33
  %v156 = vunpack.c.l.b16 %v34
  %v157 = vunpack.c.l.b16 %v35
  %v158 = vunpack.c.l.b16 %v36
  %v159 = vunpack.c.l.b16 %v37
  %v160 = vunpack.c.l.b16 %v38
  %v161 = vunpack.c.l.b16 %v39
  %v162 = vunpack.c.l.b16 %v40
  %v163 = vunpack.c.l.b16 %v41
  %v164 = vunpack.c.l.b16 %v42
  %v165 = vunpack.c.l.b16 %v43
  %v166 = vunpack.c.l.b16 %v44
  %v167 = vunpack.c.l.b16 %v45
  %v168 = vunpack.c.l.b16 %v46
  %v169 = vunpack.c.l.b16 %v47
  %v170 = vunpack.c.l.b16 %v48
  %v171 = vunpack.c.l.b16 %v49
  %v172 = vunpack.c.l.b16 %v50
  %v173 = vunpack.c.l.b16 %v51
  %v174 = vunpack.c.l.b16 %v52
  %v175 = vunpack.c.l.b16 %v53
  %v176 = vunpack.c.l.b16 %v54
  %v177 = vunpack.c.l.b16 %v55
  %v178 = vunpack.c.l.b16 %v56
  %v179 = vunpack.c.l.b16 %v57
  %v180 = vunpack.c.l.b16 %v58
  %v181 = vunpack.c.l.b16 %v59
  %v182 = vunpack.c.l.b16 %v60
  %v183 = vunpack.c.l.b16 %v61
  %v184 = vunpack.c.l.b16 %v62
  %v185 = vunpack.c.l.b16 %v63
  %v186 = vunpack.c.l.b16 %v64
  %v187 = vunpack.c.l.b16 %v65
  %v188 = vunpack.c.l.b16 %v66
  %v189 = vunpack.c.l.b16 %v67
  %v190 = vunpack.c.l.b16 %v68
  %v191 = vpack.c.b16 %v156, %v155
  %v192 = vpack.c.b16 %v158, %v157
  %v193 = vpack.c.b16 %v160, %v159
  %v194 = vpack.c.b16 %v162, %v161
  %v195 = vpack.c.b16 %v164, %v163
  %v196 = vpack.c.b16 %v166, %v165
  %v197 = vpack.c.b16 %v168, %v167
  %v198 = vpack.c.b16 %v170, %v169
  %v199 = vpack.c.b16 %v172, %v171
  %v200 = vpack.c.b16 %v174, %v173
  %v201 = vpack.c.b16 %v176, %v175
  %v202 = vpack.c.b16 %v178, %v177
  %v203 = vpack.c.b16 %v180, %v179
  %v204 = vpack.c.b16 %v182, %v181
  %v205 = vpack.c.b16 %v184, %v183
  %v206 = vpack.c.b16 %v186, %v185
  %v207 = vpack.c.b16 %v188, %v187
  %v208 = vpack.c.b16 %v190, %v189
  %v233 = vunpack.c.l.b16 %v95
  %v234 = vunpack.c.h.b16 %v95
  %v235 = vunpack.c.l.b16 %v96
  %v236 = vunpack.c.h.b16 %v96
  %v237 = vunpack.c.l.b16 %v97
  %v238 = vunpack.c.h.b16 %v97
  %v239 = vunpack.c.l.b16 %v98
  %v240 = vunpack.c.h.b16 %v98
  %v241 = vunpack.c.l.b16 %v99
  %v242 = vunpack.c.h.b16 %v99
  %v243 = vunpack.c.l.b16 %v100
  %v244 = vunpack.c.h.b16 %v100
  %v245 = vunpack.c.l.b16 %v101
  %v246 = vunpack.c.h.b16 %v101
  %v247 = vunpack.c.l.b16 %v102
  %v248 = vunpack.c.h.b16 %v102
  %v249 = vunpack.c.l.b16 %v103
  %v250 = vunpack.c.h.b16 %v103
  %v251 = vunpack.c.l.b16 %v104
  %v252 = vunpack.c.h.b16 %v104
  %v253 = vunpack.c.l.b16 %v105
  %v254 = vunpack.c.h.b16 %v105
  %v255 = vunpack.c.l.b16 %v106
  %v256 = vunpack.c.h.b16 %v106
  %v257 = vunpack.c.l.b16 %v107
  %v258 = vunpack.c.h.b16 %v107
  %v259 = vunpack.c.l.b16 %v108
  %v260 = vunpack.c.h.b16 %v108
  %v261 = vunpack.c.l.b16 %v109
  %v262 = vunpack.c.h.b16 %v109
  %v263 = vunpack.c.l.b16 %v110
  %v264 = vunpack.c.h.b16 %v110
  %v265 = vunpack.c.l.b16 %v111
  %v266 = vunpack.c.h.b16 %v111
  %v267 = vunpack.c.l.b16 %v112
  %v268 = vunpack.c.h.b16 %v112
  %v269 = vunpack.c.l.b16 %v113
  %v270 = vunpack.c.h.b16 %v113
  %v271 = vunpack.c.l.b16 %v114
  %v272 = vunpack.c.h.b16 %v114
  %v273 = vunpack.c.l.b16 %v115
  %v274 = vunpack.c.h.b16 %v115
  %v275 = vunpack.c.l.b16 %v116
  %v276 = vunpack.c.h.b16 %v116
  %v277 = vunpack.c.l.b16 %v117
  %v278 = vunpack.c.h.b16 %v117
  %v279 = vunpack.c.l.b16 %v118
  %v280 = vunpack.c.h.b16 %v118
  %v281 = vpack.c.b16 %v239, %v233
  %v282 = vpack.c.b16 %v240, %v234
  %v283 = vpack.c.b16 %v241, %v235
  %v284 = vpack.c.b16 %v242, %v236
  %v285 = vpack.c.b16 %v243, %v237
  %v286 = vpack.c.b16 %v244, %v238
  %v287 = vpack.c.b16 %v251, %v245
  %v288 = vpack.c.b16 %v252, %v246
  %v289 = vpack.c.b16 %v253, %v247
  %v290 = vpack.c.b16 %v254, %v248
  %v291 = vpack.c.b16 %v255, %v249
  %v292 = vpack.c.b16 %v256, %v250
  %v293 = vpack.c.b16 %v263, %v257
  %v294 = vpack.c.b16 %v264, %v258
  %v295 = vpack.c.b16 %v265, %v259
  %v296 = vpack.c.b16 %v266, %v260
  %v297 = vpack.c.b16 %v267, %v261
  %v298 = vpack.c.b16 %v268, %v262
  %v299 = vpack.c.b16 %v275, %v269
  %v300 = vpack.c.b16 %v276, %v270
  %v301 = vpack.c.b16 %v277, %v271
  %v302 = vpack.c.b16 %v278, %v272
  %v303 = vpack.c.b16 %v279, %v273
  %v304 = vpack.c.b16 %v280, %v274
  %vm329 = vcmask 523264
  %v331 = vsel %vm329, %v191, 0
  %v334 = vsel %vm329, %v192, 0
  %v337 = vsel %vm329, %v193, 0
  %v340 = vsel %vm329, %v194, 0
  %v343 = vsel %vm329, %v195, 0
  %v346 = vsel %vm329, %v196, 0
  %v349 = vsel %vm329, %v197, 0
  %v352 = vsel %vm329, %v198, 0
  %v355 = vsel %vm329, %v199, 0
  %v358 = vsel %vm329, %v200, 0
  %v361 = vsel %vm329, %v201, 0
  %v364 = vsel %vm329, %v202, 0
  %v367 = vsel %vm329, %v203, 0
  %v370 = vsel %vm329, %v204, 0
  %v373 = vsel %vm329, %v205, 0
  %v376 = vsel %vm329, %v206, 0
  %v379 = vsel %vm329, %v207, 0
  %v382 = vsel %vm329, %v208, 0
  %384 = vmatprep.subr.bf16.mxu0 %v282
  %385 = vmatpush1.bf16.msra.mxu0 %v281
  %386 = vmatprep.subr.bf16.mxu0 %v288
  %387 = vmatpush1.bf16.msra.mxu0 %v287
  %388 = vmatprep.subr.bf16.mxu0 %v294
  %389 = vmatpush1.bf16.msra.mxu0 %v293
  %390 = vmatprep.subr.bf16.mxu0 %v300
  %391 = vmatpush1.bf16.msra.mxu0 %v299
  %392 = vmatprep.subr.bf16.mxu0 0
  %393 = vmatpush1.bf16.msra.mxu0 0
  %394 = vmatprep.subr.bf16.mxu0 0
  %395 = vmatpush1.bf16.msra.mxu0 0
  %396 = vmatprep.subr.bf16.mxu0 0
  %397 = vmatpush1.bf16.msra.mxu0 0
  %398 = vmatprep.subr.bf16.mxu0 0
  %399 = vmatpush1.bf16.msra.mxu0 0
  %400 = vmatprep.subr.bf16.mxu0 0
  %401 = vmatpush1.bf16.msra.mxu0 0
  %402 = vmatprep.subr.bf16.mxu0 0
  %403 = vmatpush1.bf16.msra.mxu0 0
  %404 = vmatprep.subr.bf16.mxu0 0
  %405 = vmatpush1.bf16.msra.mxu0 0
  %406 = vmatprep.subr.bf16.mxu0 0
  %407 = vmatpush1.bf16.msra.mxu0 0
  %408 = vmatprep.subr.bf16.mxu0 0
  %409 = vmatpush1.bf16.msra.mxu0 0
  %410 = vmatprep.subr.bf16.mxu0 0
  %411 = vmatpush1.bf16.msra.mxu0 0
  %412 = vmatprep.subr.bf16.mxu0 0
  %413 = vmatpush1.bf16.msra.mxu0 0
  %414 = vmatprep.subr.bf16.mxu0 0
  %415 = vmatpush1.bf16.msra.mxu0 0
  %416 = vmatprep.mubr.bf16.mxu0 0
  %417 = vmatmul.mubr.bf16.gmra.mrb[0].mxu0 %v331
  %v418 = vpop.f32.mrb[0].mxu0
  %v419 = vadd.f32 0.0, %v418
  %v420 = vpop.f32.mrb[0].mxu0
  %v421 = vadd.f32 0.0, %v420
  %v422 = vpop.f32.mrb[0].mxu0
  %v423 = vadd.f32 0.0, %v422
  %v424 = vpop.f32.mrb[0].mxu0
  %v425 = vadd.f32 0.0, %v424
  %426 = vmatprep.mubr.bf16.mxu0 0
  %427 = vmatmul.mubr.bf16.gmra.mrb[0].mxu0 %v334
  %v428 = vpop.f32.mrb[0].mxu0
  %v429 = vadd.f32 0.0, %v428
  %v430 = vpop.f32.mrb[0].mxu0
  %v431 = vadd.f32 0.0, %v430
  %v432 = vpop.f32.mrb[0].mxu0
  %v433 = vadd.f32 0.0, %v432
  %v434 = vpop.f32.mrb[0].mxu0
  %v435 = vadd.f32 0.0, %v434
  %436 = vmatprep.mubr.bf16.mxu0 0
  %437 = vmatmul.mubr.bf16.gmra.mrb[0].mxu0 %v337
  %v438 = vpop.f32.mrb[0].mxu0
  %v439 = vadd.f32 0.0, %v438
  %v440 = vpop.f32.mrb[0].mxu0
  %v441 = vadd.f32 0.0, %v440
  %v442 = vpop.f32.mrb[0].mxu0
  %v443 = vadd.f32 0.0, %v442
  %v444 = vpop.f32.mrb[0].mxu0
  %v445 = vadd.f32 0.0, %v444
  %446 = vmatprep.mubr.bf16.mxu0 0
  %447 = vmatmul.mubr.bf16.gmra.mrb[0].mxu0 %v340
  %v448 = vpop.f32.mrb[0].mxu0
  %v449 = vadd.f32 0.0, %v448
  %v450 = vpop.f32.mrb[0].mxu0
  %v451 = vadd.f32 0.0, %v450
  %v452 = vpop.f32.mrb[0].mxu0
  %v453 = vadd.f32 0.0, %v452
  %v454 = vpop.f32.mrb[0].mxu0
  %v455 = vadd.f32 0.0, %v454
  %456 = vmatprep.mubr.bf16.mxu0 0
  %457 = vmatmul.mubr.bf16.gmra.mrb[0].mxu0 %v343
  %v458 = vpop.f32.mrb[0].mxu0
  %v459 = vadd.f32 0.0, %v458
  %v460 = vpop.f32.mrb[0].mxu0
  %v461 = vadd.f32 0.0, %v460
  %v462 = vpop.f32.mrb[0].mxu0
  %v463 = vadd.f32 0.0, %v462
  %v464 = vpop.f32.mrb[0].mxu0
  %v465 = vadd.f32 0.0, %v464
  %466 = vmatprep.mubr.bf16.mxu0 0
  %467 = vmatmul.mubr.bf16.gmra.mrb[0].mxu0 %v346
  %v468 = vpop.f32.mrb[0].mxu0
  %v469 = vadd.f32 0.0, %v468
  %v470 = vpop.f32.mrb[0].mxu0
  %v471 = vadd.f32 0.0, %v470
  %v472 = vpop.f32.mrb[0].mxu0
  %v473 = vadd.f32 0.0, %v472
  %v474 = vpop.f32.mrb[0].mxu0
  %v475 = vadd.f32 0.0, %v474
  %476 = vmatprep.mubr.bf16.mxu0 0
  %477 = vmatmul.mubr.bf16.gmra.mrb[0].mxu0 %v349
  %v478 = vpop.f32.mrb[0].mxu0
  %v479 = vadd.f32 0.0, %v478
  %v480 = vpop.f32.mrb[0].mxu0
  %v481 = vadd.f32 0.0, %v480
  %v482 = vpop.f32.mrb[0].mxu0
  %v483 = vadd.f32 0.0, %v482
  %v484 = vpop.f32.mrb[0].mxu0
  %v485 = vadd.f32 0.0, %v484
  %486 = vmatprep.mubr.bf16.mxu0 0
  %487 = vmatmul.mubr.bf16.gmra.mrb[0].mxu0 %v352
  %v488 = vpop.f32.mrb[0].mxu0
  %v489 = vadd.f32 0.0, %v488
  %v490 = vpop.f32.mrb[0].mxu0
  %v491 = vadd.f32 0.0, %v490
  %v492 = vpop.f32.mrb[0].mxu0
  %v493 = vadd.f32 0.0, %v492
  %v494 = vpop.f32.mrb[0].mxu0
  %v495 = vadd.f32 0.0, %v494
  %496 = vmatprep.mubr.bf16.mxu0 0
  %497 = vmatmul.mubr.bf16.gmra.mrb[0].mxu0 %v355
  %v498 = vpop.f32.mrb[0].mxu0
  %v499 = vadd.f32 0.0, %v498
  %v500 = vpop.f32.mrb[0].mxu0
  %v501 = vadd.f32 0.0, %v500
  %v502 = vpop.f32.mrb[0].mxu0
  %v503 = vadd.f32 0.0, %v502
  %v504 = vpop.f32.mrb[0].mxu0
  %v505 = vadd.f32 0.0, %v504
  %506 = vmatprep.mubr.bf16.mxu0 0
  %507 = vmatmul.mubr.bf16.gmra.mrb[0].mxu0 %v358
  %v508 = vpop.f32.mrb[0].mxu0
  %v509 = vadd.f32 0.0, %v508
  %v510 = vpop.f32.mrb[0].mxu0
  %v511 = vadd.f32 0.0, %v510
  %v512 = vpop.f32.mrb[0].mxu0
  %v513 = vadd.f32 0.0, %v512
  %v514 = vpop.f32.mrb[0].mxu0
  %v515 = vadd.f32 0.0, %v514
  %516 = vmatprep.mubr.bf16.mxu0 0
  %517 = vmatmul.mubr.bf16.gmra.mrb[0].mxu0 %v361
  %v518 = vpop.f32.mrb[0].mxu0
  %v519 = vadd.f32 0.0, %v518
  %v520 = vpop.f32.mrb[0].mxu0
  %v521 = vadd.f32 0.0, %v520
  %v522 = vpop.f32.mrb[0].mxu0
  %v523 = vadd.f32 0.0, %v522
  %v524 = vpop.f32.mrb[0].mxu0
  %v525 = vadd.f32 0.0, %v524
  %526 = vmatprep.mubr.bf16.mxu0 0
  %527 = vmatmul.mubr.bf16.gmra.mrb[0].mxu0 %v364
  %v528 = vpop.f32.mrb[0].mxu0
  %v529 = vadd.f32 0.0, %v528
  %v530 = vpop.f32.mrb[0].mxu0
  %v531 = vadd.f32 0.0, %v530
  %v532 = vpop.f32.mrb[0].mxu0
  %v533 = vadd.f32 0.0, %v532
  %v534 = vpop.f32.mrb[0].mxu0
  %v535 = vadd.f32 0.0, %v534
  %536 = vmatprep.mubr.bf16.mxu0 0
  %537 = vmatmul.mubr.bf16.gmra.mrb[0].mxu0 %v367
  %v538 = vpop.f32.mrb[0].mxu0
  %v539 = vadd.f32 0.0, %v538
  %v540 = vpop.f32.mrb[0].mxu0
  %v541 = vadd.f32 0.0, %v540
  %v542 = vpop.f32.mrb[0].mxu0
  %v543 = vadd.f32 0.0, %v542
  %v544 = vpop.f32.mrb[0].mxu0
  %v545 = vadd.f32 0.0, %v544
  %546 = vmatprep.mubr.bf16.mxu0 0
  %547 = vmatmul.mubr.bf16.gmra.mrb[0].mxu0 %v370
  %v548 = vpop.f32.mrb[0].mxu0
  %v549 = vadd.f32 0.0, %v548
  %v550 = vpop.f32.mrb[0].mxu0
  %v551 = vadd.f32 0.0, %v550
  %v552 = vpop.f32.mrb[0].mxu0
  %v553 = vadd.f32 0.0, %v552
  %v554 = vpop.f32.mrb[0].mxu0
  %v555 = vadd.f32 0.0, %v554
  %556 = vmatprep.mubr.bf16.mxu0 0
  %557 = vmatmul.mubr.bf16.gmra.mrb[0].mxu0 %v373
  %v558 = vpop.f32.mrb[0].mxu0
  %v559 = vadd.f32 0.0, %v558
  %v560 = vpop.f32.mrb[0].mxu0
  %v561 = vadd.f32 0.0, %v560
  %v562 = vpop.f32.mrb[0].mxu0
  %v563 = vadd.f32 0.0, %v562
  %v564 = vpop.f32.mrb[0].mxu0
  %v565 = vadd.f32 0.0, %v564
  %566 = vmatprep.mubr.bf16.mxu0 0
  %567 = vmatmul.mubr.bf16.gmra.mrb[0].mxu0 %v376
  %v568 = vpop.f32.mrb[0].mxu0
  %v569 = vadd.f32 0.0, %v568
  %v570 = vpop.f32.mrb[0].mxu0
  %v571 = vadd.f32 0.0, %v570
  %v572 = vpop.f32.mrb[0].mxu0
  %v573 = vadd.f32 0.0, %v572
  %v574 = vpop.f32.mrb[0].mxu0
  %v575 = vadd.f32 0.0, %v574
  %576 = vmatprep.mubr.bf16.mxu0 0
  %577 = vmatmul.mubr.bf16.gmra.mrb[0].mxu0 %v379
  %v578 = vpop.f32.mrb[0].mxu0
  %v579 = vadd.f32 0.0, %v578
  %v580 = vpop.f32.mrb[0].mxu0
  %v581 = vadd.f32 0.0, %v580
  %v582 = vpop.f32.mrb[0].mxu0
  %v583 = vadd.f32 0.0, %v582
  %v584 = vpop.f32.mrb[0].mxu0
  %v585 = vadd.f32 0.0, %v584
  %586 = vmatprep.mubr.bf16.mxu0 0
  %587 = vmatmul.mubr.bf16.gmra.mrb[0].mxu0 %v382
  %v588 = vpop.f32.mrb[0].mxu0
  %v589 = vadd.f32 0.0, %v588
  %v590 = vpop.f32.mrb[0].mxu0
  %v591 = vadd.f32 0.0, %v590
  %v592 = vpop.f32.mrb[0].mxu0
  %v593 = vadd.f32 0.0, %v592
  %v594 = vpop.f32.mrb[0].mxu0
  %v595 = vadd.f32 0.0, %v594
  %596 = vdwg.mxu0
  %597 = vmatprep.subr.bf16.mxu0 %v284
  %598 = vmatpush1.bf16.msra.mxu0 %v283
  %599 = vmatprep.subr.bf16.mxu0 %v290
  %600 = vmatpush1.bf16.msra.mxu0 %v289
  %601 = vmatprep.subr.bf16.mxu0 %v296
  %602 = vmatpush1.bf16.msra.mxu0 %v295
  %603 = vmatprep.subr.bf16.mxu0 %v302
  %604 = vmatpush1.bf16.msra.mxu0 %v301
  %605 = vmatprep.subr.bf16.mxu0 0
  %606 = vmatpush1.bf16.msra.mxu0 0
  %607 = vmatprep.subr.bf16.mxu0 0
  %608 = vmatpush1.bf16.msra.mxu0 0
  %609 = vmatprep.subr.bf16.mxu0 0
  %610 = vmatpush1.bf16.msra.mxu0 0
  %611 = vmatprep.subr.bf16.mxu0 0
  %612 = vmatpush1.bf16.msra.mxu0 0
  %613 = vmatprep.subr.bf16.mxu0 0
  %614 = vmatpush1.bf16.msra.mxu0 0
  %615 = vmatprep.subr.bf16.mxu0 0
  %616 = vmatpush1.bf16.msra.mxu0 0
  %617 = vmatprep.subr.bf16.mxu0 0
  %618 = vmatpush1.bf16.msra.mxu0 0
  %619 = vmatprep.subr.bf16.mxu0 0
  %620 = vmatpush1.bf16.msra.mxu0 0
  %621 = vmatprep.subr.bf16.mxu0 0
  %622 = vmatpush1.bf16.msra.mxu0 0
  %623 = vmatprep.subr.bf16.mxu0 0
  %624 = vmatpush1.bf16.msra.mxu0 0
  %625 = vmatprep.subr.bf16.mxu0 0
  %626 = vmatpush1.bf16.msra.mxu0 0
  %627 = vmatprep.subr.bf16.mxu0 0
  %628 = vmatpush1.bf16.msra.mxu0 0
  %629 = vmatprep.mubr.bf16.mxu0 0
  %630 = vmatmul.mubr.bf16.gmra.mrb[0].mxu0 %v331
  %v631 = vpop.f32.mrb[0].mxu0
  %v632 = vadd.f32 0.0, %v631
  %v633 = vpop.f32.mrb[0].mxu0
  %v634 = vadd.f32 0.0, %v633
  %v635 = vpop.f32.mrb[0].mxu0
  %v636 = vadd.f32 0.0, %v635
  %v637 = vpop.f32.mrb[0].mxu0
  %v638 = vadd.f32 0.0, %v637
  %639 = vmatprep.mubr.bf16.mxu0 0
  %640 = vmatmul.mubr.bf16.gmra.mrb[0].mxu0 %v334
  %v641 = vpop.f32.mrb[0].mxu0
  %v642 = vadd.f32 0.0, %v641
  %v643 = vpop.f32.mrb[0].mxu0
  %v644 = vadd.f32 0.0, %v643
  %v645 = vpop.f32.mrb[0].mxu0
  %v646 = vadd.f32 0.0, %v645
  %v647 = vpop.f32.mrb[0].mxu0
  %v648 = vadd.f32 0.0, %v647
  %649 = vmatprep.mubr.bf16.mxu0 0
  %650 = vmatmul.mubr.bf16.gmra.mrb[0].mxu0 %v337
  %v651 = vpop.f32.mrb[0].mxu0
  %v652 = vadd.f32 0.0, %v651
  %v653 = vpop.f32.mrb[0].mxu0
  %v654 = vadd.f32 0.0, %v653
  %v655 = vpop.f32.mrb[0].mxu0
  %v656 = vadd.f32 0.0, %v655
  %v657 = vpop.f32.mrb[0].mxu0
  %v658 = vadd.f32 0.0, %v657
  %659 = vmatprep.mubr.bf16.mxu0 0
  %660 = vmatmul.mubr.bf16.gmra.mrb[0].mxu0 %v340
  %v661 = vpop.f32.mrb[0].mxu0
  %v662 = vadd.f32 0.0, %v661
  %v663 = vpop.f32.mrb[0].mxu0
  %v664 = vadd.f32 0.0, %v663
  %v665 = vpop.f32.mrb[0].mxu0
  %v666 = vadd.f32 0.0, %v665
  %v667 = vpop.f32.mrb[0].mxu0
  %v668 = vadd.f32 0.0, %v667
  %669 = vmatprep.mubr.bf16.mxu0 0
  %670 = vmatmul.mubr.bf16.gmra.mrb[0].mxu0 %v343
  %v671 = vpop.f32.mrb[0].mxu0
  %v672 = vadd.f32 0.0, %v671
  %v673 = vpop.f32.mrb[0].mxu0
  %v674 = vadd.f32 0.0, %v673
  %v675 = vpop.f32.mrb[0].mxu0
  %v676 = vadd.f32 0.0, %v675
  %v677 = vpop.f32.mrb[0].mxu0
  %v678 = vadd.f32 0.0, %v677
  %679 = vmatprep.mubr.bf16.mxu0 0
  %680 = vmatmul.mubr.bf16.gmra.mrb[0].mxu0 %v346
  %v681 = vpop.f32.mrb[0].mxu0
  %v682 = vadd.f32 0.0, %v681
  %v683 = vpop.f32.mrb[0].mxu0
  %v684 = vadd.f32 0.0, %v683
  %v685 = vpop.f32.mrb[0].mxu0
  %v686 = vadd.f32 0.0, %v685
  %v687 = vpop.f32.mrb[0].mxu0
  %v688 = vadd.f32 0.0, %v687
  %689 = vmatprep.mubr.bf16.mxu0 0
  %690 = vmatmul.mubr.bf16.gmra.mrb[0].mxu0 %v349
  %v691 = vpop.f32.mrb[0].mxu0
  %v692 = vadd.f32 0.0, %v691
  %v693 = vpop.f32.mrb[0].mxu0
  %v694 = vadd.f32 0.0, %v693
  %v695 = vpop.f32.mrb[0].mxu0
  %v696 = vadd.f32 0.0, %v695
  %v697 = vpop.f32.mrb[0].mxu0
  %v698 = vadd.f32 0.0, %v697
  %699 = vmatprep.mubr.bf16.mxu0 0
  %700 = vmatmul.mubr.bf16.gmra.mrb[0].mxu0 %v352
  %v701 = vpop.f32.mrb[0].mxu0
  %v702 = vadd.f32 0.0, %v701
  %v703 = vpop.f32.mrb[0].mxu0
  %v704 = vadd.f32 0.0, %v703
  %v705 = vpop.f32.mrb[0].mxu0
  %v706 = vadd.f32 0.0, %v705
  %v707 = vpop.f32.mrb[0].mxu0
  %v708 = vadd.f32 0.0, %v707
  %709 = vmatprep.mubr.bf16.mxu0 0
  %710 = vmatmul.mubr.bf16.gmra.mrb[0].mxu0 %v355
  %v711 = vpop.f32.mrb[0].mxu0
  %v712 = vadd.f32 0.0, %v711
  %v713 = vpop.f32.mrb[0].mxu0
  %v714 = vadd.f32 0.0, %v713
  %v715 = vpop.f32.mrb[0].mxu0
  %v716 = vadd.f32 0.0, %v715
  %v717 = vpop.f32.mrb[0].mxu0
  %v718 = vadd.f32 0.0, %v717
  %719 = vmatprep.mubr.bf16.mxu0 0
  %720 = vmatmul.mubr.bf16.gmra.mrb[0].mxu0 %v358
  %v721 = vpop.f32.mrb[0].mxu0
  %v722 = vadd.f32 0.0, %v721
  %v723 = vpop.f32.mrb[0].mxu0
  %v724 = vadd.f32 0.0, %v723
  %v725 = vpop.f32.mrb[0].mxu0
  %v726 = vadd.f32 0.0, %v725
  %v727 = vpop.f32.mrb[0].mxu0
  %v728 = vadd.f32 0.0, %v727
  %729 = vmatprep.mubr.bf16.mxu0 0
  %730 = vmatmul.mubr.bf16.gmra.mrb[0].mxu0 %v361
  %v731 = vpop.f32.mrb[0].mxu0
  %v732 = vadd.f32 0.0, %v731
  %v733 = vpop.f32.mrb[0].mxu0
  %v734 = vadd.f32 0.0, %v733
  %v735 = vpop.f32.mrb[0].mxu0
  %v736 = vadd.f32 0.0, %v735
  %v737 = vpop.f32.mrb[0].mxu0
  %v738 = vadd.f32 0.0, %v737
  %739 = vmatprep.mubr.bf16.mxu0 0
  %740 = vmatmul.mubr.bf16.gmra.mrb[0].mxu0 %v364
  %v741 = vpop.f32.mrb[0].mxu0
  %v742 = vadd.f32 0.0, %v741
  %v743 = vpop.f32.mrb[0].mxu0
  %v744 = vadd.f32 0.0, %v743
  %v745 = vpop.f32.mrb[0].mxu0
  %v746 = vadd.f32 0.0, %v745
  %v747 = vpop.f32.mrb[0].mxu0
  %v748 = vadd.f32 0.0, %v747
  %749 = vmatprep.mubr.bf16.mxu0 0
  %750 = vmatmul.mubr.bf16.gmra.mrb[0].mxu0 %v367
  %v751 = vpop.f32.mrb[0].mxu0
  %v752 = vadd.f32 0.0, %v751
  %v753 = vpop.f32.mrb[0].mxu0
  %v754 = vadd.f32 0.0, %v753
  %v755 = vpop.f32.mrb[0].mxu0
  %v756 = vadd.f32 0.0, %v755
  %v757 = vpop.f32.mrb[0].mxu0
  %v758 = vadd.f32 0.0, %v757
  %759 = vmatprep.mubr.bf16.mxu0 0
  %760 = vmatmul.mubr.bf16.gmra.mrb[0].mxu0 %v370
  %v761 = vpop.f32.mrb[0].mxu0
  %v762 = vadd.f32 0.0, %v761
  %v763 = vpop.f32.mrb[0].mxu0
  %v764 = vadd.f32 0.0, %v763
  %v765 = vpop.f32.mrb[0].mxu0
  %v766 = vadd.f32 0.0, %v765
  %v767 = vpop.f32.mrb[0].mxu0
  %v768 = vadd.f32 0.0, %v767
  %769 = vmatprep.mubr.bf16.mxu0 0
  %770 = vmatmul.mubr.bf16.gmra.mrb[0].mxu0 %v373
  %v771 = vpop.f32.mrb[0].mxu0
  %v772 = vadd.f32 0.0, %v771
  %v773 = vpop.f32.mrb[0].mxu0
  %v774 = vadd.f32 0.0, %v773
  %v775 = vpop.f32.mrb[0].mxu0
  %v776 = vadd.f32 0.0, %v775
  %v777 = vpop.f32.mrb[0].mxu0
  %v778 = vadd.f32 0.0, %v777
  %779 = vmatprep.mubr.bf16.mxu0 0
  %780 = vmatmul.mubr.bf16.gmra.mrb[0].mxu0 %v376
  %v781 = vpop.f32.mrb[0].mxu0
  %v782 = vadd.f32 0.0, %v781
  %v783 = vpop.f32.mrb[0].mxu0
  %v784 = vadd.f32 0.0, %v783
  %v785 = vpop.f32.mrb[0].mxu0
  %v786 = vadd.f32 0.0, %v785
  %v787 = vpop.f32.mrb[0].mxu0
  %v788 = vadd.f32 0.0, %v787
  %789 = vmatprep.mubr.bf16.mxu0 0
  %790 = vmatmul.mubr.bf16.gmra.mrb[0].mxu0 %v379
  %v791 = vpop.f32.mrb[0].mxu0
  %v792 = vadd.f32 0.0, %v791
  %v793 = vpop.f32.mrb[0].mxu0
  %v794 = vadd.f32 0.0, %v793
  %v795 = vpop.f32.mrb[0].mxu0
  %v796 = vadd.f32 0.0, %v795
  %v797 = vpop.f32.mrb[0].mxu0
  %v798 = vadd.f32 0.0, %v797
  %799 = vmatprep.mubr.bf16.mxu0 0
  %800 = vmatmul.mubr.bf16.gmra.mrb[0].mxu0 %v382
  %v801 = vpop.f32.mrb[0].mxu0
  %v802 = vadd.f32 0.0, %v801
  %v803 = vpop.f32.mrb[0].mxu0
  %v804 = vadd.f32 0.0, %v803
  %v805 = vpop.f32.mrb[0].mxu0
  %v806 = vadd.f32 0.0, %v805
  %v807 = vpop.f32.mrb[0].mxu0
  %v808 = vadd.f32 0.0, %v807
  %809 = vdwg.mxu0
  %810 = vmatprep.subr.bf16.mxu0 %v286
  %811 = vmatpush1.bf16.msra.mxu0 %v285
  %812 = vmatprep.subr.bf16.mxu0 %v292
  %813 = vmatpush1.bf16.msra.mxu0 %v291
  %814 = vmatprep.subr.bf16.mxu0 %v298
  %815 = vmatpush1.bf16.msra.mxu0 %v297
  %816 = vmatprep.subr.bf16.mxu0 %v304
  %817 = vmatpush1.bf16.msra.mxu0 %v303
  %818 = vmatprep.subr.bf16.mxu0 0
  %819 = vmatpush1.bf16.msra.mxu0 0
  %820 = vmatprep.subr.bf16.mxu0 0
  %821 = vmatpush1.bf16.msra.mxu0 0
  %822 = vmatprep.subr.bf16.mxu0 0
  %823 = vmatpush1.bf16.msra.mxu0 0
  %824 = vmatprep.subr.bf16.mxu0 0
  %825 = vmatpush1.bf16.msra.mxu0 0
  %826 = vmatprep.subr.bf16.mxu0 0
  %827 = vmatpush1.bf16.msra.mxu0 0
  %828 = vmatprep.subr.bf16.mxu0 0
  %829 = vmatpush1.bf16.msra.mxu0 0
  %830 = vmatprep.subr.bf16.mxu0 0
  %831 = vmatpush1.bf16.msra.mxu0 0
  %832 = vmatprep.subr.bf16.mxu0 0
  %833 = vmatpush1.bf16.msra.mxu0 0
  %834 = vmatprep.subr.bf16.mxu0 0
  %835 = vmatpush1.bf16.msra.mxu0 0
  %836 = vmatprep.subr.bf16.mxu0 0
  %837 = vmatpush1.bf16.msra.mxu0 0
  %838 = vmatprep.subr.bf16.mxu0 0
  %839 = vmatpush1.bf16.msra.mxu0 0
  %840 = vmatprep.subr.bf16.mxu0 0
  %841 = vmatpush1.bf16.msra.mxu0 0
  %842 = vmatprep.mubr.bf16.mxu0 0
  %843 = vmatmul.mubr.bf16.gmra.mrb[0].mxu0 %v331
  %v844 = vpop.f32.mrb[0].mxu0
  %v845 = vadd.f32 0.0, %v844
  %v846 = vpop.f32.mrb[0].mxu0
  %v847 = vpop.f32.mrb[0].mxu0
  %v848 = vadd.f32 0.0, %v847
  %v849 = vpop.f32.mrb[0].mxu0
  %850 = vmatprep.mubr.bf16.mxu0 0
  %851 = vmatmul.mubr.bf16.gmra.mrb[0].mxu0 %v334
  %v852 = vpop.f32.mrb[0].mxu0
  %v853 = vadd.f32 0.0, %v852
  %v854 = vpop.f32.mrb[0].mxu0
  %v855 = vpop.f32.mrb[0].mxu0
  %v856 = vadd.f32 0.0, %v855
  %v857 = vpop.f32.mrb[0].mxu0
  %858 = vmatprep.mubr.bf16.mxu0 0
  %859 = vmatmul.mubr.bf16.gmra.mrb[0].mxu0 %v337
  %v860 = vpop.f32.mrb[0].mxu0
  %v861 = vadd.f32 0.0, %v860
  %v862 = vpop.f32.mrb[0].mxu0
  %v863 = vpop.f32.mrb[0].mxu0
  %v864 = vadd.f32 0.0, %v863
  %v865 = vpop.f32.mrb[0].mxu0
  %866 = vmatprep.mubr.bf16.mxu0 0
  %867 = vmatmul.mubr.bf16.gmra.mrb[0].mxu0 %v340
  %v868 = vpop.f32.mrb[0].mxu0
  %v869 = vadd.f32 0.0, %v868
  %v870 = vpop.f32.mrb[0].mxu0
  %v871 = vpop.f32.mrb[0].mxu0
  %v872 = vadd.f32 0.0, %v871
  %v873 = vpop.f32.mrb[0].mxu0
  %874 = vmatprep.mubr.bf16.mxu0 0
  %875 = vmatmul.mubr.bf16.gmra.mrb[0].mxu0 %v343
  %v876 = vpop.f32.mrb[0].mxu0
  %v877 = vadd.f32 0.0, %v876
  %v878 = vpop.f32.mrb[0].mxu0
  %v879 = vpop.f32.mrb[0].mxu0
  %v880 = vadd.f32 0.0, %v879
  %v881 = vpop.f32.mrb[0].mxu0
  %882 = vmatprep.mubr.bf16.mxu0 0
  %883 = vmatmul.mubr.bf16.gmra.mrb[0].mxu0 %v346
  %v884 = vpop.f32.mrb[0].mxu0
  %v885 = vadd.f32 0.0, %v884
  %v886 = vpop.f32.mrb[0].mxu0
  %v887 = vpop.f32.mrb[0].mxu0
  %v888 = vadd.f32 0.0, %v887
  %v889 = vpop.f32.mrb[0].mxu0
  %890 = vmatprep.mubr.bf16.mxu0 0
  %891 = vmatmul.mubr.bf16.gmra.mrb[0].mxu0 %v349
  %v892 = vpop.f32.mrb[0].mxu0
  %v893 = vadd.f32 0.0, %v892
  %v894 = vpop.f32.mrb[0].mxu0
  %v895 = vadd.f32 0.0, %v894
  %v896 = vpop.f32.mrb[0].mxu0
  %v897 = vadd.f32 0.0, %v896
  %v898 = vpop.f32.mrb[0].mxu0
  %v899 = vadd.f32 0.0, %v898
  %900 = vmatprep.mubr.bf16.mxu0 0
  %901 = vmatmul.mubr.bf16.gmra.mrb[0].mxu0 %v352
  %v902 = vpop.f32.mrb[0].mxu0
  %v903 = vadd.f32 0.0, %v902
  %v904 = vpop.f32.mrb[0].mxu0
  %v905 = vadd.f32 0.0, %v904
  %v906 = vpop.f32.mrb[0].mxu0
  %v907 = vadd.f32 0.0, %v906
  %v908 = vpop.f32.mrb[0].mxu0
  %v909 = vadd.f32 0.0, %v908
  %910 = vmatprep.mubr.bf16.mxu0 0
  %911 = vmatmul.mubr.bf16.gmra.mrb[0].mxu0 %v355
  %v912 = vpop.f32.mrb[0].mxu0
  %v913 = vadd.f32 0.0, %v912
  %v914 = vpop.f32.mrb[0].mxu0
  %v915 = vadd.f32 0.0, %v914
  %v916 = vpop.f32.mrb[0].mxu0
  %v917 = vadd.f32 0.0, %v916
  %v918 = vpop.f32.mrb[0].mxu0
  %v919 = vadd.f32 0.0, %v918
  %920 = vmatprep.mubr.bf16.mxu0 0
  %921 = vmatmul.mubr.bf16.gmra.mrb[0].mxu0 %v358
  %v922 = vpop.f32.mrb[0].mxu0
  %v923 = vadd.f32 0.0, %v922
  %v924 = vpop.f32.mrb[0].mxu0
  %v925 = vadd.f32 0.0, %v924
  %v926 = vpop.f32.mrb[0].mxu0
  %v927 = vadd.f32 0.0, %v926
  %v928 = vpop.f32.mrb[0].mxu0
  %v929 = vadd.f32 0.0, %v928
  %930 = vmatprep.mubr.bf16.mxu0 0
  %931 = vmatmul.mubr.bf16.gmra.mrb[0].mxu0 %v361
  %v932 = vpop.f32.mrb[0].mxu0
  %v933 = vadd.f32 0.0, %v932
  %v934 = vpop.f32.mrb[0].mxu0
  %v935 = vadd.f32 0.0, %v934
  %v936 = vpop.f32.mrb[0].mxu0
  %v937 = vadd.f32 0.0, %v936
  %v938 = vpop.f32.mrb[0].mxu0
  %v939 = vadd.f32 0.0, %v938
  %940 = vmatprep.mubr.bf16.mxu0 0
  %941 = vmatmul.mubr.bf16.gmra.mrb[0].mxu0 %v364
  %v942 = vpop.f32.mrb[0].mxu0
  %v943 = vadd.f32 0.0, %v942
  %v944 = vpop.f32.mrb[0].mxu0
  %v945 = vadd.f32 0.0, %v944
  %v946 = vpop.f32.mrb[0].mxu0
  %v947 = vadd.f32 0.0, %v946
  %v948 = vpop.f32.mrb[0].mxu0
  %v949 = vadd.f32 0.0, %v948
  %950 = vmatprep.mubr.bf16.mxu0 0
  %951 = vmatmul.mubr.bf16.gmra.mrb[0].mxu0 %v367
  %v952 = vpop.f32.mrb[0].mxu0
  %v953 = vadd.f32 0.0, %v952
  %v954 = vpop.f32.mrb[0].mxu0
  %v955 = vadd.f32 0.0, %v954
  %v956 = vpop.f32.mrb[0].mxu0
  %v957 = vadd.f32 0.0, %v956
  %v958 = vpop.f32.mrb[0].mxu0
  %v959 = vadd.f32 0.0, %v958
  %960 = vmatprep.mubr.bf16.mxu0 0
  %961 = vmatmul.mubr.bf16.gmra.mrb[0].mxu0 %v370
  %v962 = vpop.f32.mrb[0].mxu0
  %v963 = vadd.f32 0.0, %v962
  %v964 = vpop.f32.mrb[0].mxu0
  %v965 = vadd.f32 0.0, %v964
  %v966 = vpop.f32.mrb[0].mxu0
  %v967 = vadd.f32 0.0, %v966
  %v968 = vpop.f32.mrb[0].mxu0
  %v969 = vadd.f32 0.0, %v968
  %970 = vmatprep.mubr.bf16.mxu0 0
  %971 = vmatmul.mubr.bf16.gmra.mrb[0].mxu0 %v373
  %v972 = vpop.f32.mrb[0].mxu0
  %v973 = vadd.f32 0.0, %v972
  %v974 = vpop.f32.mrb[0].mxu0
  %v975 = vadd.f32 0.0, %v974
  %v976 = vpop.f32.mrb[0].mxu0
  %v977 = vadd.f32 0.0, %v976
  %v978 = vpop.f32.mrb[0].mxu0
  %v979 = vadd.f32 0.0, %v978
  %980 = vmatprep.mubr.bf16.mxu0 0
  %981 = vmatmul.mubr.bf16.gmra.mrb[0].mxu0 %v376
  %v982 = vpop.f32.mrb[0].mxu0
  %v983 = vadd.f32 0.0, %v982
  %v984 = vpop.f32.mrb[0].mxu0
  %v985 = vadd.f32 0.0, %v984
  %v986 = vpop.f32.mrb[0].mxu0
  %v987 = vadd.f32 0.0, %v986
  %v988 = vpop.f32.mrb[0].mxu0
  %v989 = vadd.f32 0.0, %v988
  %990 = vmatprep.mubr.bf16.mxu0 0
  %991 = vmatmul.mubr.bf16.gmra.mrb[0].mxu0 %v379
  %v992 = vpop.f32.mrb[0].mxu0
  %v993 = vadd.f32 0.0, %v992
  %v994 = vpop.f32.mrb[0].mxu0
  %v995 = vadd.f32 0.0, %v994
  %v996 = vpop.f32.mrb[0].mxu0
  %v997 = vadd.f32 0.0, %v996
  %v998 = vpop.f32.mrb[0].mxu0
  %v999 = vadd.f32 0.0, %v998
  %1000 = vmatprep.mubr.bf16.mxu0 0
  %1001 = vmatmul.mubr.bf16.gmra.mrb[0].mxu0 %v382
  %v1002 = vpop.f32.mrb[0].mxu0
  %v1003 = vadd.f32 0.0, %v1002
  %v1004 = vpop.f32.mrb[0].mxu0
  %v1005 = vadd.f32 0.0, %v1004
  %v1006 = vpop.f32.mrb[0].mxu0
  %v1007 = vadd.f32 0.0, %v1006
  %v1008 = vpop.f32.mrb[0].mxu0
  %v1009 = vadd.f32 0.0, %v1008
  %1010 = vdwg.mxu0
  %1031 = vrot.lane.b32.xlu0 %v439, 127
  %v1032 = vpop.permute.xlu0 %1031
  %1033 = vrot.lane.b32.xlu0 %v441, 127
  %v1034 = vpop.permute.xlu0 %1033
  %1035 = vrot.lane.b32.xlu0 %v652, 127
  %v1036 = vpop.permute.xlu0 %1035
  %1037 = vrot.lane.b32.xlu0 %v654, 127
  %v1038 = vpop.permute.xlu0 %1037
  %1039 = vrot.lane.b32.xlu0 %v861, 127
  %v1040 = vpop.permute.xlu0 %1039
  %1041 = vrot.lane.b32.xlu0 %v443, 127
  %v1042 = vpop.permute.xlu0 %1041
  %1043 = vrot.lane.b32.xlu0 %v445, 127
  %v1044 = vpop.permute.xlu0 %1043
  %1045 = vrot.lane.b32.xlu0 %v656, 127
  %v1046 = vpop.permute.xlu0 %1045
  %1047 = vrot.lane.b32.xlu0 %v658, 127
  %v1048 = vpop.permute.xlu0 %1047
  %1049 = vrot.lane.b32.xlu0 %v864, 127
  %v1050 = vpop.permute.xlu0 %1049
  %1051 = vrot.lane.b32.xlu0 %v449, 127
  %v1052 = vpop.permute.xlu0 %1051
  %1053 = vrot.lane.b32.xlu0 %v451, 127
  %v1054 = vpop.permute.xlu0 %1053
  %1055 = vrot.lane.b32.xlu0 %v662, 127
  %v1056 = vpop.permute.xlu0 %1055
  %1057 = vrot.lane.b32.xlu0 %v664, 127
  %v1058 = vpop.permute.xlu0 %1057
  %1059 = vrot.lane.b32.xlu0 %v869, 127
  %v1060 = vpop.permute.xlu0 %1059
  %1061 = vrot.lane.b32.xlu0 %v453, 127
  %v1062 = vpop.permute.xlu0 %1061
  %1063 = vrot.lane.b32.xlu0 %v455, 127
  %v1064 = vpop.permute.xlu0 %1063
  %1065 = vrot.lane.b32.xlu0 %v666, 127
  %v1066 = vpop.permute.xlu0 %1065
  %1067 = vrot.lane.b32.xlu0 %v668, 127
  %v1068 = vpop.permute.xlu0 %1067
  %1069 = vrot.lane.b32.xlu0 %v872, 127
  %v1070 = vpop.permute.xlu0 %1069
  %vm1071 = vcmask 1039360
  %v1072 = vsel %vm1071, %v1032, %v1034
  %v1073 = vsel %vm1071, %v1034, %v1036
  %v1074 = vsel %vm1071, %v1036, %v1038
  %v1075 = vsel %vm1071, %v1038, %v1040
  %v1076 = vsel %vm1071, %v1042, %v1044
  %v1077 = vsel %vm1071, %v1044, %v1046
  %v1078 = vsel %vm1071, %v1046, %v1048
  %v1079 = vsel %vm1071, %v1048, %v1050
  %v1080 = vsel %vm1071, %v1052, %v1054
  %v1081 = vsel %vm1071, %v1054, %v1056
  %v1082 = vsel %vm1071, %v1056, %v1058
  %v1083 = vsel %vm1071, %v1058, %v1060
  %v1084 = vsel %vm1071, %v1062, %v1064
  %v1085 = vsel %vm1071, %v1064, %v1066
  %v1086 = vsel %vm1071, %v1066, %v1068
  %v1087 = vsel %vm1071, %v1068, %v1070
  %v1108 = vadd.f32 %v419, %v1072
  %v1109 = vadd.f32 %v421, %v1073
  %v1110 = vadd.f32 %v632, %v1074
  %v1111 = vadd.f32 %v634, %v1075
  %v1112 = vadd.f32 %v845, %v1040
  %v1113 = vadd.f32 %v423, %v1076
  %v1114 = vadd.f32 %v425, %v1077
  %v1115 = vadd.f32 %v636, %v1078
  %v1116 = vadd.f32 %v638, %v1079
  %v1117 = vadd.f32 %v848, %v1050
  %v1118 = vadd.f32 %v429, %v1080
  %v1119 = vadd.f32 %v431, %v1081
  %v1120 = vadd.f32 %v642, %v1082
  %v1121 = vadd.f32 %v644, %v1083
  %v1122 = vadd.f32 %v853, %v1060
  %v1123 = vadd.f32 %v433, %v1084
  %v1124 = vadd.f32 %v435, %v1085
  %v1125 = vadd.f32 %v646, %v1086
  %v1126 = vadd.f32 %v648, %v1087
  %v1127 = vadd.f32 %v856, %v1070
  %1152 = vrot.lane.b32.xlu0 %v479, 106
  %v1153 = vpop.permute.xlu0 %1152
  %1154 = vrot.lane.b32.xlu0 %v481, 106
  %v1155 = vpop.permute.xlu0 %1154
  %1156 = vrot.lane.b32.xlu0 %v692, 106
  %v1157 = vpop.permute.xlu0 %1156
  %1158 = vrot.lane.b32.xlu0 %v694, 106
  %v1159 = vpop.permute.xlu0 %1158
  %1160 = vrot.lane.b32.xlu0 %v893, 106
  %v1161 = vpop.permute.xlu0 %1160
  %1162 = vrot.lane.b32.xlu0 %v895, 106
  %v1163 = vpop.permute.xlu0 %1162
  %1164 = vrot.lane.b32.xlu0 %v483, 106
  %v1165 = vpop.permute.xlu0 %1164
  %1166 = vrot.lane.b32.xlu0 %v485, 106
  %v1167 = vpop.permute.xlu0 %1166
  %1168 = vrot.lane.b32.xlu0 %v696, 106
  %v1169 = vpop.permute.xlu0 %1168
  %1170 = vrot.lane.b32.xlu0 %v698, 106
  %v1171 = vpop.permute.xlu0 %1170
  %1172 = vrot.lane.b32.xlu0 %v897, 106
  %v1173 = vpop.permute.xlu0 %1172
  %1174 = vrot.lane.b32.xlu0 %v899, 106
  %v1175 = vpop.permute.xlu0 %1174
  %1176 = vrot.lane.b32.xlu0 %v489, 106
  %v1177 = vpop.permute.xlu0 %1176
  %1178 = vrot.lane.b32.xlu0 %v491, 106
  %v1179 = vpop.permute.xlu0 %1178
  %1180 = vrot.lane.b32.xlu0 %v702, 106
  %v1181 = vpop.permute.xlu0 %1180
  %1182 = vrot.lane.b32.xlu0 %v704, 106
  %v1183 = vpop.permute.xlu0 %1182
  %1184 = vrot.lane.b32.xlu0 %v903, 106
  %v1185 = vpop.permute.xlu0 %1184
  %1186 = vrot.lane.b32.xlu0 %v905, 106
  %v1187 = vpop.permute.xlu0 %1186
  %1188 = vrot.lane.b32.xlu0 %v493, 106
  %v1189 = vpop.permute.xlu0 %1188
  %1190 = vrot.lane.b32.xlu0 %v495, 106
  %v1191 = vpop.permute.xlu0 %1190
  %1192 = vrot.lane.b32.xlu0 %v706, 106
  %v1193 = vpop.permute.xlu0 %1192
  %1194 = vrot.lane.b32.xlu0 %v708, 106
  %v1195 = vpop.permute.xlu0 %1194
  %1196 = vrot.lane.b32.xlu0 %v907, 106
  %v1197 = vpop.permute.xlu0 %1196
  %1198 = vrot.lane.b32.xlu0 %v909, 106
  %v1199 = vpop.permute.xlu0 %1198
  %vm1200 = vcmask 867328
  %v1201 = vsel %vm1200, %v1153, %v1155
  %v1202 = vsel %vm1200, %v1155, %v1157
  %v1203 = vsel %vm1200, %v1157, %v1159
  %v1204 = vsel %vm1200, %v1159, %v1161
  %v1205 = vsel %vm1200, %v1161, %v1163
  %v1206 = vsel %vm1200, %v1165, %v1167
  %v1207 = vsel %vm1200, %v1167, %v1169
  %v1208 = vsel %vm1200, %v1169, %v1171
  %v1209 = vsel %vm1200, %v1171, %v1173
  %v1210 = vsel %vm1200, %v1173, %v1175
  %v1211 = vsel %vm1200, %v1177, %v1179
  %v1212 = vsel %vm1200, %v1179, %v1181
  %v1213 = vsel %vm1200, %v1181, %v1183
  %v1214 = vsel %vm1200, %v1183, %v1185
  %v1215 = vsel %vm1200, %v1185, %v1187
  %v1216 = vsel %vm1200, %v1189, %v1191
  %v1217 = vsel %vm1200, %v1191, %v1193
  %v1218 = vsel %vm1200, %v1193, %v1195
  %v1219 = vsel %vm1200, %v1195, %v1197
  %v1220 = vsel %vm1200, %v1197, %v1199
  %v1241 = vadd.f32 %v459, %v1201
  %v1242 = vadd.f32 %v461, %v1202
  %v1243 = vadd.f32 %v672, %v1203
  %v1244 = vadd.f32 %v674, %v1204
  %v1245 = vadd.f32 %v877, %v1205
  %v1246 = vadd.f32 %v463, %v1206
  %v1247 = vadd.f32 %v465, %v1207
  %v1248 = vadd.f32 %v676, %v1208
  %v1249 = vadd.f32 %v678, %v1209
  %v1250 = vadd.f32 %v880, %v1210
  %v1251 = vadd.f32 %v469, %v1211
  %v1252 = vadd.f32 %v471, %v1212
  %v1253 = vadd.f32 %v682, %v1213
  %v1254 = vadd.f32 %v684, %v1214
  %v1255 = vadd.f32 %v885, %v1215
  %v1256 = vadd.f32 %v473, %v1216
  %v1257 = vadd.f32 %v475, %v1217
  %v1258 = vadd.f32 %v686, %v1218
  %v1259 = vadd.f32 %v688, %v1219
  %v1260 = vadd.f32 %v888, %v1220
  %1285 = vrot.lane.b32.xlu0 %v519, 127
  %v1286 = vpop.permute.xlu0 %1285
  %1287 = vrot.lane.b32.xlu0 %v521, 127
  %v1288 = vpop.permute.xlu0 %1287
  %1289 = vrot.lane.b32.xlu0 %v732, 127
  %v1290 = vpop.permute.xlu0 %1289
  %1291 = vrot.lane.b32.xlu0 %v734, 127
  %v1292 = vpop.permute.xlu0 %1291
  %1293 = vrot.lane.b32.xlu0 %v933, 127
  %v1294 = vpop.permute.xlu0 %1293
  %1295 = vrot.lane.b32.xlu0 %v935, 127
  %v1296 = vpop.permute.xlu0 %1295
  %1297 = vrot.lane.b32.xlu0 %v523, 127
  %v1298 = vpop.permute.xlu0 %1297
  %1299 = vrot.lane.b32.xlu0 %v525, 127
  %v1300 = vpop.permute.xlu0 %1299
  %1301 = vrot.lane.b32.xlu0 %v736, 127
  %v1302 = vpop.permute.xlu0 %1301
  %1303 = vrot.lane.b32.xlu0 %v738, 127
  %v1304 = vpop.permute.xlu0 %1303
  %1305 = vrot.lane.b32.xlu0 %v937, 127
  %v1306 = vpop.permute.xlu0 %1305
  %1307 = vrot.lane.b32.xlu0 %v939, 127
  %v1308 = vpop.permute.xlu0 %1307
  %1309 = vrot.lane.b32.xlu0 %v529, 127
  %v1310 = vpop.permute.xlu0 %1309
  %1311 = vrot.lane.b32.xlu0 %v531, 127
  %v1312 = vpop.permute.xlu0 %1311
  %1313 = vrot.lane.b32.xlu0 %v742, 127
  %v1314 = vpop.permute.xlu0 %1313
  %1315 = vrot.lane.b32.xlu0 %v744, 127
  %v1316 = vpop.permute.xlu0 %1315
  %1317 = vrot.lane.b32.xlu0 %v943, 127
  %v1318 = vpop.permute.xlu0 %1317
  %1319 = vrot.lane.b32.xlu0 %v945, 127
  %v1320 = vpop.permute.xlu0 %1319
  %1321 = vrot.lane.b32.xlu0 %v533, 127
  %v1322 = vpop.permute.xlu0 %1321
  %1323 = vrot.lane.b32.xlu0 %v535, 127
  %v1324 = vpop.permute.xlu0 %1323
  %1325 = vrot.lane.b32.xlu0 %v746, 127
  %v1326 = vpop.permute.xlu0 %1325
  %1327 = vrot.lane.b32.xlu0 %v748, 127
  %v1328 = vpop.permute.xlu0 %1327
  %1329 = vrot.lane.b32.xlu0 %v947, 127
  %v1330 = vpop.permute.xlu0 %1329
  %1331 = vrot.lane.b32.xlu0 %v949, 127
  %v1332 = vpop.permute.xlu0 %1331
  %v1333 = vsel %vm1071, %v1286, %v1288
  %v1334 = vsel %vm1071, %v1288, %v1290
  %v1335 = vsel %vm1071, %v1290, %v1292
  %v1336 = vsel %vm1071, %v1292, %v1294
  %v1337 = vsel %vm1071, %v1294, %v1296
  %v1338 = vsel %vm1071, %v1298, %v1300
  %v1339 = vsel %vm1071, %v1300, %v1302
  %v1340 = vsel %vm1071, %v1302, %v1304
  %v1341 = vsel %vm1071, %v1304, %v1306
  %v1342 = vsel %vm1071, %v1306, %v1308
  %v1343 = vsel %vm1071, %v1310, %v1312
  %v1344 = vsel %vm1071, %v1312, %v1314
  %v1345 = vsel %vm1071, %v1314, %v1316
  %v1346 = vsel %vm1071, %v1316, %v1318
  %v1347 = vsel %vm1071, %v1318, %v1320
  %v1348 = vsel %vm1071, %v1322, %v1324
  %v1349 = vsel %vm1071, %v1324, %v1326
  %v1350 = vsel %vm1071, %v1326, %v1328
  %v1351 = vsel %vm1071, %v1328, %v1330
  %v1352 = vsel %vm1071, %v1330, %v1332
  %v1377 = vadd.f32 %v499, %v1333
  %v1378 = vadd.f32 %v501, %v1334
  %v1379 = vadd.f32 %v712, %v1335
  %v1380 = vadd.f32 %v714, %v1336
  %v1381 = vadd.f32 %v913, %v1337
  %v1382 = vadd.f32 %v915, %v1296
  %v1383 = vadd.f32 %v503, %v1338
  %v1384 = vadd.f32 %v505, %v1339
  %v1385 = vadd.f32 %v716, %v1340
  %v1386 = vadd.f32 %v718, %v1341
  %v1387 = vadd.f32 %v917, %v1342
  %v1388 = vadd.f32 %v919, %v1308
  %v1389 = vadd.f32 %v509, %v1343
  %v1390 = vadd.f32 %v511, %v1344
  %v1391 = vadd.f32 %v722, %v1345
  %v1392 = vadd.f32 %v724, %v1346
  %v1393 = vadd.f32 %v923, %v1347
  %v1394 = vadd.f32 %v925, %v1320
  %v1395 = vadd.f32 %v513, %v1348
  %v1396 = vadd.f32 %v515, %v1349
  %v1397 = vadd.f32 %v726, %v1350
  %v1398 = vadd.f32 %v728, %v1351
  %v1399 = vadd.f32 %v927, %v1352
  %v1400 = vadd.f32 %v929, %v1332
  %1425 = vrot.lane.b32.xlu0 %v559, 127
  %v1426 = vpop.permute.xlu0 %1425
  %1427 = vrot.lane.b32.xlu0 %v561, 127
  %v1428 = vpop.permute.xlu0 %1427
  %1429 = vrot.lane.b32.xlu0 %v772, 127
  %v1430 = vpop.permute.xlu0 %1429
  %1431 = vrot.lane.b32.xlu0 %v774, 127
  %v1432 = vpop.permute.xlu0 %1431
  %1433 = vrot.lane.b32.xlu0 %v973, 127
  %v1434 = vpop.permute.xlu0 %1433
  %1435 = vrot.lane.b32.xlu0 %v975, 127
  %v1436 = vpop.permute.xlu0 %1435
  %1437 = vrot.lane.b32.xlu0 %v563, 127
  %v1438 = vpop.permute.xlu0 %1437
  %1439 = vrot.lane.b32.xlu0 %v565, 127
  %v1440 = vpop.permute.xlu0 %1439
  %1441 = vrot.lane.b32.xlu0 %v776, 127
  %v1442 = vpop.permute.xlu0 %1441
  %1443 = vrot.lane.b32.xlu0 %v778, 127
  %v1444 = vpop.permute.xlu0 %1443
  %1445 = vrot.lane.b32.xlu0 %v977, 127
  %v1446 = vpop.permute.xlu0 %1445
  %1447 = vrot.lane.b32.xlu0 %v979, 127
  %v1448 = vpop.permute.xlu0 %1447
  %1449 = vrot.lane.b32.xlu0 %v569, 127
  %v1450 = vpop.permute.xlu0 %1449
  %1451 = vrot.lane.b32.xlu0 %v571, 127
  %v1452 = vpop.permute.xlu0 %1451
  %1453 = vrot.lane.b32.xlu0 %v782, 127
  %v1454 = vpop.permute.xlu0 %1453
  %1455 = vrot.lane.b32.xlu0 %v784, 127
  %v1456 = vpop.permute.xlu0 %1455
  %1457 = vrot.lane.b32.xlu0 %v983, 127
  %v1458 = vpop.permute.xlu0 %1457
  %1459 = vrot.lane.b32.xlu0 %v985, 127
  %v1460 = vpop.permute.xlu0 %1459
  %1461 = vrot.lane.b32.xlu0 %v573, 127
  %v1462 = vpop.permute.xlu0 %1461
  %1463 = vrot.lane.b32.xlu0 %v575, 127
  %v1464 = vpop.permute.xlu0 %1463
  %1465 = vrot.lane.b32.xlu0 %v786, 127
  %v1466 = vpop.permute.xlu0 %1465
  %1467 = vrot.lane.b32.xlu0 %v788, 127
  %v1468 = vpop.permute.xlu0 %1467
  %1469 = vrot.lane.b32.xlu0 %v987, 127
  %v1470 = vpop.permute.xlu0 %1469
  %1471 = vrot.lane.b32.xlu0 %v989, 127
  %v1472 = vpop.permute.xlu0 %1471
  %v1473 = vsel %vm1071, %v1426, %v1428
  %v1474 = vsel %vm1071, %v1428, %v1430
  %v1475 = vsel %vm1071, %v1430, %v1432
  %v1476 = vsel %vm1071, %v1432, %v1434
  %v1477 = vsel %vm1071, %v1434, %v1436
  %v1478 = vsel %vm1071, %v1438, %v1440
  %v1479 = vsel %vm1071, %v1440, %v1442
  %v1480 = vsel %vm1071, %v1442, %v1444
  %v1481 = vsel %vm1071, %v1444, %v1446
  %v1482 = vsel %vm1071, %v1446, %v1448
  %v1483 = vsel %vm1071, %v1450, %v1452
  %v1484 = vsel %vm1071, %v1452, %v1454
  %v1485 = vsel %vm1071, %v1454, %v1456
  %v1486 = vsel %vm1071, %v1456, %v1458
  %v1487 = vsel %vm1071, %v1458, %v1460
  %v1488 = vsel %vm1071, %v1462, %v1464
  %v1489 = vsel %vm1071, %v1464, %v1466
  %v1490 = vsel %vm1071, %v1466, %v1468
  %v1491 = vsel %vm1071, %v1468, %v1470
  %v1492 = vsel %vm1071, %v1470, %v1472
  %v1517 = vadd.f32 %v539, %v1473
  %v1518 = vadd.f32 %v541, %v1474
  %v1519 = vadd.f32 %v752, %v1475
  %v1520 = vadd.f32 %v754, %v1476
  %v1521 = vadd.f32 %v953, %v1477
  %v1522 = vadd.f32 %v955, %v1436
  %v1523 = vadd.f32 %v543, %v1478
  %v1524 = vadd.f32 %v545, %v1479
  %v1525 = vadd.f32 %v756, %v1480
  %v1526 = vadd.f32 %v758, %v1481
  %v1527 = vadd.f32 %v957, %v1482
  %v1528 = vadd.f32 %v959, %v1448
  %v1529 = vadd.f32 %v549, %v1483
  %v1530 = vadd.f32 %v551, %v1484
  %v1531 = vadd.f32 %v762, %v1485
  %v1532 = vadd.f32 %v764, %v1486
  %v1533 = vadd.f32 %v963, %v1487
  %v1534 = vadd.f32 %v965, %v1460
  %v1535 = vadd.f32 %v553, %v1488
  %v1536 = vadd.f32 %v555, %v1489
  %v1537 = vadd.f32 %v766, %v1490
  %v1538 = vadd.f32 %v768, %v1491
  %v1539 = vadd.f32 %v967, %v1492
  %v1540 = vadd.f32 %v969, %v1472
  %1561 = vrot.lane.b32.xlu0 %v1241, 126
  %v1562 = vpop.permute.xlu0 %1561
  %1563 = vrot.lane.b32.xlu0 %v1242, 126
  %v1564 = vpop.permute.xlu0 %1563
  %1565 = vrot.lane.b32.xlu0 %v1243, 126
  %v1566 = vpop.permute.xlu0 %1565
  %1567 = vrot.lane.b32.xlu0 %v1244, 126
  %v1568 = vpop.permute.xlu0 %1567
  %1569 = vrot.lane.b32.xlu0 %v1245, 126
  %v1570 = vpop.permute.xlu0 %1569
  %1571 = vrot.lane.b32.xlu0 %v1246, 126
  %v1572 = vpop.permute.xlu0 %1571
  %1573 = vrot.lane.b32.xlu0 %v1247, 126
  %v1574 = vpop.permute.xlu0 %1573
  %1575 = vrot.lane.b32.xlu0 %v1248, 126
  %v1576 = vpop.permute.xlu0 %1575
  %1577 = vrot.lane.b32.xlu0 %v1249, 126
  %v1578 = vpop.permute.xlu0 %1577
  %1579 = vrot.lane.b32.xlu0 %v1250, 126
  %v1580 = vpop.permute.xlu0 %1579
  %1581 = vrot.lane.b32.xlu0 %v1251, 126
  %v1582 = vpop.permute.xlu0 %1581
  %1583 = vrot.lane.b32.xlu0 %v1252, 126
  %v1584 = vpop.permute.xlu0 %1583
  %1585 = vrot.lane.b32.xlu0 %v1253, 126
  %v1586 = vpop.permute.xlu0 %1585
  %1587 = vrot.lane.b32.xlu0 %v1254, 126
  %v1588 = vpop.permute.xlu0 %1587
  %1589 = vrot.lane.b32.xlu0 %v1255, 126
  %v1590 = vpop.permute.xlu0 %1589
  %1591 = vrot.lane.b32.xlu0 %v1256, 126
  %v1592 = vpop.permute.xlu0 %1591
  %1593 = vrot.lane.b32.xlu0 %v1257, 126
  %v1594 = vpop.permute.xlu0 %1593
  %1595 = vrot.lane.b32.xlu0 %v1258, 126
  %v1596 = vpop.permute.xlu0 %1595
  %1597 = vrot.lane.b32.xlu0 %v1259, 126
  %v1598 = vpop.permute.xlu0 %1597
  %1599 = vrot.lane.b32.xlu0 %v1260, 126
  %v1600 = vpop.permute.xlu0 %1599
  %vm1601 = vcmask 1031168
  %v1602 = vsel %vm1601, %v1562, %v1564
  %v1603 = vsel %vm1601, %v1564, %v1566
  %v1604 = vsel %vm1601, %v1566, %v1568
  %v1605 = vsel %vm1601, %v1568, %v1570
  %v1606 = vsel %vm1601, %v1572, %v1574
  %v1607 = vsel %vm1601, %v1574, %v1576
  %v1608 = vsel %vm1601, %v1576, %v1578
  %v1609 = vsel %vm1601, %v1578, %v1580
  %v1610 = vsel %vm1601, %v1582, %v1584
  %v1611 = vsel %vm1601, %v1584, %v1586
  %v1612 = vsel %vm1601, %v1586, %v1588
  %v1613 = vsel %vm1601, %v1588, %v1590
  %v1614 = vsel %vm1601, %v1592, %v1594
  %v1615 = vsel %vm1601, %v1594, %v1596
  %v1616 = vsel %vm1601, %v1596, %v1598
  %v1617 = vsel %vm1601, %v1598, %v1600
  %v1638 = vadd.f32 %v1108, %v1602
  %v1639 = vadd.f32 %v1109, %v1603
  %v1640 = vadd.f32 %v1110, %v1604
  %v1641 = vadd.f32 %v1111, %v1605
  %v1642 = vadd.f32 %v1112, %v1570
  %v1643 = vadd.f32 %v1113, %v1606
  %v1644 = vadd.f32 %v1114, %v1607
  %v1645 = vadd.f32 %v1115, %v1608
  %v1646 = vadd.f32 %v1116, %v1609
  %v1647 = vadd.f32 %v1117, %v1580
  %v1648 = vadd.f32 %v1118, %v1610
  %v1649 = vadd.f32 %v1119, %v1611
  %v1650 = vadd.f32 %v1120, %v1612
  %v1651 = vadd.f32 %v1121, %v1613
  %v1652 = vadd.f32 %v1122, %v1590
  %v1653 = vadd.f32 %v1123, %v1614
  %v1654 = vadd.f32 %v1124, %v1615
  %v1655 = vadd.f32 %v1125, %v1616
  %v1656 = vadd.f32 %v1126, %v1617
  %v1657 = vadd.f32 %v1127, %v1600
  %1682 = vrot.lane.b32.xlu0 %v1517, 105
  %v1683 = vpop.permute.xlu0 %1682
  %1684 = vrot.lane.b32.xlu0 %v1518, 105
  %v1685 = vpop.permute.xlu0 %1684
  %1686 = vrot.lane.b32.xlu0 %v1519, 105
  %v1687 = vpop.permute.xlu0 %1686
  %1688 = vrot.lane.b32.xlu0 %v1520, 105
  %v1689 = vpop.permute.xlu0 %1688
  %1690 = vrot.lane.b32.xlu0 %v1521, 105
  %v1691 = vpop.permute.xlu0 %1690
  %1692 = vrot.lane.b32.xlu0 %v1522, 105
  %v1693 = vpop.permute.xlu0 %1692
  %1694 = vrot.lane.b32.xlu0 %v1523, 105
  %v1695 = vpop.permute.xlu0 %1694
  %1696 = vrot.lane.b32.xlu0 %v1524, 105
  %v1697 = vpop.permute.xlu0 %1696
  %1698 = vrot.lane.b32.xlu0 %v1525, 105
  %v1699 = vpop.permute.xlu0 %1698
  %1700 = vrot.lane.b32.xlu0 %v1526, 105
  %v1701 = vpop.permute.xlu0 %1700
  %1702 = vrot.lane.b32.xlu0 %v1527, 105
  %v1703 = vpop.permute.xlu0 %1702
  %1704 = vrot.lane.b32.xlu0 %v1528, 105
  %v1705 = vpop.permute.xlu0 %1704
  %1706 = vrot.lane.b32.xlu0 %v1529, 105
  %v1707 = vpop.permute.xlu0 %1706
  %1708 = vrot.lane.b32.xlu0 %v1530, 105
  %v1709 = vpop.permute.xlu0 %1708
  %1710 = vrot.lane.b32.xlu0 %v1531, 105
  %v1711 = vpop.permute.xlu0 %1710
  %1712 = vrot.lane.b32.xlu0 %v1532, 105
  %v1713 = vpop.permute.xlu0 %1712
  %1714 = vrot.lane.b32.xlu0 %v1533, 105
  %v1715 = vpop.permute.xlu0 %1714
  %1716 = vrot.lane.b32.xlu0 %v1534, 105
  %v1717 = vpop.permute.xlu0 %1716
  %1718 = vrot.lane.b32.xlu0 %v1535, 105
  %v1719 = vpop.permute.xlu0 %1718
  %1720 = vrot.lane.b32.xlu0 %v1536, 105
  %v1721 = vpop.permute.xlu0 %1720
  %1722 = vrot.lane.b32.xlu0 %v1537, 105
  %v1723 = vpop.permute.xlu0 %1722
  %1724 = vrot.lane.b32.xlu0 %v1538, 105
  %v1725 = vpop.permute.xlu0 %1724
  %1726 = vrot.lane.b32.xlu0 %v1539, 105
  %v1727 = vpop.permute.xlu0 %1726
  %1728 = vrot.lane.b32.xlu0 %v1540, 105
  %v1729 = vpop.permute.xlu0 %1728
  %vm1730 = vcmask 859136
  %v1731 = vsel %vm1730, %v1683, %v1685
  %v1732 = vsel %vm1730, %v1685, %v1687
  %v1733 = vsel %vm1730, %v1687, %v1689
  %v1734 = vsel %vm1730, %v1689, %v1691
  %v1735 = vsel %vm1730, %v1691, %v1693
  %v1736 = vsel %vm1730, %v1695, %v1697
  %v1737 = vsel %vm1730, %v1697, %v1699
  %v1738 = vsel %vm1730, %v1699, %v1701
  %v1739 = vsel %vm1730, %v1701, %v1703
  %v1740 = vsel %vm1730, %v1703, %v1705
  %v1741 = vsel %vm1730, %v1707, %v1709
  %v1742 = vsel %vm1730, %v1709, %v1711
  %v1743 = vsel %vm1730, %v1711, %v1713
  %v1744 = vsel %vm1730, %v1713, %v1715
  %v1745 = vsel %vm1730, %v1715, %v1717
  %v1746 = vsel %vm1730, %v1719, %v1721
  %v1747 = vsel %vm1730, %v1721, %v1723
  %v1748 = vsel %vm1730, %v1723, %v1725
  %v1749 = vsel %vm1730, %v1725, %v1727
  %v1750 = vsel %vm1730, %v1727, %v1729
  %v1775 = vadd.f32 %v1377, %v1731
  %v1776 = vadd.f32 %v1378, %v1732
  %v1777 = vadd.f32 %v1379, %v1733
  %v1778 = vadd.f32 %v1380, %v1734
  %v1779 = vadd.f32 %v1381, %v1735
  %v1780 = vadd.f32 %v1382, %v1693
  %v1781 = vadd.f32 %v1383, %v1736
  %v1782 = vadd.f32 %v1384, %v1737
  %v1783 = vadd.f32 %v1385, %v1738
  %v1784 = vadd.f32 %v1386, %v1739
  %v1785 = vadd.f32 %v1387, %v1740
  %v1786 = vadd.f32 %v1388, %v1705
  %v1787 = vadd.f32 %v1389, %v1741
  %v1788 = vadd.f32 %v1390, %v1742
  %v1789 = vadd.f32 %v1391, %v1743
  %v1790 = vadd.f32 %v1392, %v1744
  %v1791 = vadd.f32 %v1393, %v1745
  %v1792 = vadd.f32 %v1394, %v1717
  %v1793 = vadd.f32 %v1395, %v1746
  %v1794 = vadd.f32 %v1396, %v1747
  %v1795 = vadd.f32 %v1397, %v1748
  %v1796 = vadd.f32 %v1398, %v1749
  %v1797 = vadd.f32 %v1399, %v1750
  %v1798 = vadd.f32 %v1400, %v1729
  %1823 = vrot.lane.b32.xlu0 %v1775, 103
  %v1824 = vpop.permute.xlu0 %1823
  %1825 = vrot.lane.b32.xlu0 %v1776, 103
  %v1826 = vpop.permute.xlu0 %1825
  %1827 = vrot.lane.b32.xlu0 %v1777, 103
  %v1828 = vpop.permute.xlu0 %1827
  %1829 = vrot.lane.b32.xlu0 %v1778, 103
  %v1830 = vpop.permute.xlu0 %1829
  %1831 = vrot.lane.b32.xlu0 %v1779, 103
  %v1832 = vpop.permute.xlu0 %1831
  %1833 = vrot.lane.b32.xlu0 %v1780, 103
  %v1834 = vpop.permute.xlu0 %1833
  %1835 = vrot.lane.b32.xlu0 %v1781, 103
  %v1836 = vpop.permute.xlu0 %1835
  %1837 = vrot.lane.b32.xlu0 %v1782, 103
  %v1838 = vpop.permute.xlu0 %1837
  %1839 = vrot.lane.b32.xlu0 %v1783, 103
  %v1840 = vpop.permute.xlu0 %1839
  %1841 = vrot.lane.b32.xlu0 %v1784, 103
  %v1842 = vpop.permute.xlu0 %1841
  %1843 = vrot.lane.b32.xlu0 %v1785, 103
  %v1844 = vpop.permute.xlu0 %1843
  %1845 = vrot.lane.b32.xlu0 %v1786, 103
  %v1846 = vpop.permute.xlu0 %1845
  %1847 = vrot.lane.b32.xlu0 %v1787, 103
  %v1848 = vpop.permute.xlu0 %1847
  %1849 = vrot.lane.b32.xlu0 %v1788, 103
  %v1850 = vpop.permute.xlu0 %1849
  %1851 = vrot.lane.b32.xlu0 %v1789, 103
  %v1852 = vpop.permute.xlu0 %1851
  %1853 = vrot.lane.b32.xlu0 %v1790, 103
  %v1854 = vpop.permute.xlu0 %1853
  %1855 = vrot.lane.b32.xlu0 %v1791, 103
  %v1856 = vpop.permute.xlu0 %1855
  %1857 = vrot.lane.b32.xlu0 %v1792, 103
  %v1858 = vpop.permute.xlu0 %1857
  %1859 = vrot.lane.b32.xlu0 %v1793, 103
  %v1860 = vpop.permute.xlu0 %1859
  %1861 = vrot.lane.b32.xlu0 %v1794, 103
  %v1862 = vpop.permute.xlu0 %1861
  %1863 = vrot.lane.b32.xlu0 %v1795, 103
  %v1864 = vpop.permute.xlu0 %1863
  %1865 = vrot.lane.b32.xlu0 %v1796, 103
  %v1866 = vpop.permute.xlu0 %1865
  %1867 = vrot.lane.b32.xlu0 %v1797, 103
  %v1868 = vpop.permute.xlu0 %1867
  %1869 = vrot.lane.b32.xlu0 %v1798, 103
  %v1870 = vpop.permute.xlu0 %1869
  %vm1871 = vcmask 842752
  %v1872 = vsel %vm1871, %v1824, %v1826
  %v1873 = vsel %vm1871, %v1826, %v1828
  %v1874 = vsel %vm1871, %v1828, %v1830
  %v1875 = vsel %vm1871, %v1830, %v1832
  %v1876 = vsel %vm1871, %v1832, %v1834
  %v1877 = vsel %vm1871, %v1836, %v1838
  %v1878 = vsel %vm1871, %v1838, %v1840
  %v1879 = vsel %vm1871, %v1840, %v1842
  %v1880 = vsel %vm1871, %v1842, %v1844
  %v1881 = vsel %vm1871, %v1844, %v1846
  %v1882 = vsel %vm1871, %v1848, %v1850
  %v1883 = vsel %vm1871, %v1850, %v1852
  %v1884 = vsel %vm1871, %v1852, %v1854
  %v1885 = vsel %vm1871, %v1854, %v1856
  %v1886 = vsel %vm1871, %v1856, %v1858
  %v1887 = vsel %vm1871, %v1860, %v1862
  %v1888 = vsel %vm1871, %v1862, %v1864
  %v1889 = vsel %vm1871, %v1864, %v1866
  %v1890 = vsel %vm1871, %v1866, %v1868
  %v1891 = vsel %vm1871, %v1868, %v1870
  %v1912 = vadd.f32 %v1638, %v1872
  %v1913 = vadd.f32 %v1639, %v1873
  %v1914 = vadd.f32 %v1640, %v1874
  %v1915 = vadd.f32 %v1641, %v1875
  %v1916 = vadd.f32 %v1642, %v1876
  %v1917 = vadd.f32 %v1643, %v1877
  %v1918 = vadd.f32 %v1644, %v1878
  %v1919 = vadd.f32 %v1645, %v1879
  %v1920 = vadd.f32 %v1646, %v1880
  %v1921 = vadd.f32 %v1647, %v1881
  %v1922 = vadd.f32 %v1648, %v1882
  %v1923 = vadd.f32 %v1649, %v1883
  %v1924 = vadd.f32 %v1650, %v1884
  %v1925 = vadd.f32 %v1651, %v1885
  %v1926 = vadd.f32 %v1652, %v1886
  %v1927 = vadd.f32 %v1653, %v1887
  %v1928 = vadd.f32 %v1654, %v1888
  %v1929 = vadd.f32 %v1655, %v1889
  %v1930 = vadd.f32 %v1656, %v1890
  %v1931 = vadd.f32 %v1657, %v1891
  %1956 = vrot.lane.b32.xlu0 %v579, 78
  %v1957 = vpop.permute.xlu0 %1956
  %1958 = vrot.lane.b32.xlu0 %v581, 78
  %v1959 = vpop.permute.xlu0 %1958
  %1960 = vrot.lane.b32.xlu0 %v792, 78
  %v1961 = vpop.permute.xlu0 %1960
  %1962 = vrot.lane.b32.xlu0 %v794, 78
  %v1963 = vpop.permute.xlu0 %1962
  %1964 = vrot.lane.b32.xlu0 %v993, 78
  %v1965 = vpop.permute.xlu0 %1964
  %1966 = vrot.lane.b32.xlu0 %v995, 78
  %v1967 = vpop.permute.xlu0 %1966
  %1968 = vrot.lane.b32.xlu0 %v583, 78
  %v1969 = vpop.permute.xlu0 %1968
  %1970 = vrot.lane.b32.xlu0 %v585, 78
  %v1971 = vpop.permute.xlu0 %1970
  %1972 = vrot.lane.b32.xlu0 %v796, 78
  %v1973 = vpop.permute.xlu0 %1972
  %1974 = vrot.lane.b32.xlu0 %v798, 78
  %v1975 = vpop.permute.xlu0 %1974
  %1976 = vrot.lane.b32.xlu0 %v997, 78
  %v1977 = vpop.permute.xlu0 %1976
  %1978 = vrot.lane.b32.xlu0 %v999, 78
  %v1979 = vpop.permute.xlu0 %1978
  %1980 = vrot.lane.b32.xlu0 %v589, 78
  %v1981 = vpop.permute.xlu0 %1980
  %1982 = vrot.lane.b32.xlu0 %v591, 78
  %v1983 = vpop.permute.xlu0 %1982
  %1984 = vrot.lane.b32.xlu0 %v802, 78
  %v1985 = vpop.permute.xlu0 %1984
  %1986 = vrot.lane.b32.xlu0 %v804, 78
  %v1987 = vpop.permute.xlu0 %1986
  %1988 = vrot.lane.b32.xlu0 %v1003, 78
  %v1989 = vpop.permute.xlu0 %1988
  %1990 = vrot.lane.b32.xlu0 %v1005, 78
  %v1991 = vpop.permute.xlu0 %1990
  %1992 = vrot.lane.b32.xlu0 %v593, 78
  %v1993 = vpop.permute.xlu0 %1992
  %1994 = vrot.lane.b32.xlu0 %v595, 78
  %v1995 = vpop.permute.xlu0 %1994
  %1996 = vrot.lane.b32.xlu0 %v806, 78
  %v1997 = vpop.permute.xlu0 %1996
  %1998 = vrot.lane.b32.xlu0 %v808, 78
  %v1999 = vpop.permute.xlu0 %1998
  %2000 = vrot.lane.b32.xlu0 %v1007, 78
  %v2001 = vpop.permute.xlu0 %2000
  %2002 = vrot.lane.b32.xlu0 %v1009, 78
  %v2003 = vpop.permute.xlu0 %2002
  %vm2004 = vcmask 637952
  %v2005 = vsel %vm2004, %v1957, %v1959
  %v2006 = vsel %vm2004, %v1959, %v1961
  %v2007 = vsel %vm2004, %v1961, %v1963
  %v2008 = vsel %vm2004, %v1963, %v1965
  %v2009 = vsel %vm2004, %v1965, %v1967
  %v2010 = vsel %vm2004, %v1969, %v1971
  %v2011 = vsel %vm2004, %v1971, %v1973
  %v2012 = vsel %vm2004, %v1973, %v1975
  %v2013 = vsel %vm2004, %v1975, %v1977
  %v2014 = vsel %vm2004, %v1977, %v1979
  %v2015 = vsel %vm2004, %v1981, %v1983
  %v2016 = vsel %vm2004, %v1983, %v1985
  %v2017 = vsel %vm2004, %v1985, %v1987
  %v2018 = vsel %vm2004, %v1987, %v1989
  %v2019 = vsel %vm2004, %v1989, %v1991
  %v2020 = vsel %vm2004, %v1993, %v1995
  %v2021 = vsel %vm2004, %v1995, %v1997
  %v2022 = vsel %vm2004, %v1997, %v1999
  %v2023 = vsel %vm2004, %v1999, %v2001
  %v2024 = vsel %vm2004, %v2001, %v2003
  %v2045 = vadd.f32 %v1912, %v2005
  %v2046 = vadd.f32 %v1913, %v2006
  %v2047 = vadd.f32 %v1914, %v2007
  %v2048 = vadd.f32 %v1915, %v2008
  %v2049 = vadd.f32 %v1916, %v2009
  %v2050 = vadd.f32 %v1917, %v2010
  %v2051 = vadd.f32 %v1918, %v2011
  %v2052 = vadd.f32 %v1919, %v2012
  %v2053 = vadd.f32 %v1920, %v2013
  %v2054 = vadd.f32 %v1921, %v2014
  %v2055 = vadd.f32 %v1922, %v2015
  %v2056 = vadd.f32 %v1923, %v2016
  %v2057 = vadd.f32 %v1924, %v2017
  %v2058 = vadd.f32 %v1925, %v2018
  %v2059 = vadd.f32 %v1926, %v2019
  %v2060 = vadd.f32 %v1927, %v2020
  %v2061 = vadd.f32 %v1928, %v2021
  %v2062 = vadd.f32 %v1929, %v2022
  %v2063 = vadd.f32 %v1930, %v2023
  %v2064 = vadd.f32 %v1931, %v2024
  %2066 = vset.pattern.permute.xlu0 0
  %2067 = vperm.xlu0 %2066, %v69
  %v2068 = vpop.permute.xlu0 %2067
  %2071 = vset.pattern.permute.xlu0 0
  %2072 = vperm.xlu0 %2071, %v70
  %v2073 = vpop.permute.xlu0 %2072
  %2076 = vset.pattern.permute.xlu0 0
  %2077 = vperm.xlu0 %2076, %v71
  %v2078 = vpop.permute.xlu0 %2077
  %2081 = vset.pattern.permute.xlu0 0
  %2082 = vperm.xlu0 %2081, %v72
  %v2083 = vpop.permute.xlu0 %2082
  %v2085 = vadd.f32 %v2045, %v2068
  %v2086 = vadd.f32 %v2046, %v2068
  %v2087 = vadd.f32 %v2047, %v2068
  %v2088 = vadd.f32 %v2048, %v2068
  %v2089 = vadd.f32 %v2049, %v2068
  %v2090 = vadd.f32 %v2050, %v2073
  %v2091 = vadd.f32 %v2051, %v2073
  %v2092 = vadd.f32 %v2052, %v2073
  %v2093 = vadd.f32 %v2053, %v2073
  %v2094 = vadd.f32 %v2054, %v2073
  %v2095 = vadd.f32 %v2055, %v2078
  %v2096 = vadd.f32 %v2056, %v2078
  %v2097 = vadd.f32 %v2057, %v2078
  %v2098 = vadd.f32 %v2058, %v2078
  %v2099 = vadd.f32 %v2059, %v2078
  %v2100 = vadd.f32 %v2060, %v2083
  %v2101 = vadd.f32 %v2061, %v2083
  %v2102 = vadd.f32 %v2062, %v2083
  %v2103 = vadd.f32 %v2063, %v2083
  %v2104 = vadd.f32 %v2064, %v2083
  %v2105 = vmax.f32 %v2085, 0.0
  %v2106 = vmax.f32 %v2086, 0.0
  %v2107 = vmax.f32 %v2087, 0.0
  %v2108 = vmax.f32 %v2088, 0.0
  %v2109 = vmax.f32 %v2089, 0.0
  %v2110 = vmax.f32 %v2090, 0.0
  %v2111 = vmax.f32 %v2091, 0.0
  %v2112 = vmax.f32 %v2092, 0.0
  %v2113 = vmax.f32 %v2093, 0.0
  %v2114 = vmax.f32 %v2094, 0.0
  %v2115 = vmax.f32 %v2095, 0.0
  %v2116 = vmax.f32 %v2096, 0.0
  %v2117 = vmax.f32 %v2097, 0.0
  %v2118 = vmax.f32 %v2098, 0.0
  %v2119 = vmax.f32 %v2099, 0.0
  %v2120 = vmax.f32 %v2100, 0.0
  %v2121 = vmax.f32 %v2101, 0.0
  %v2122 = vmax.f32 %v2102, 0.0
  %v2123 = vmax.f32 %v2103, 0.0
  %v2124 = vmax.f32 %v2104, 0.0
  %v2126 = vlaneseq
  %v2127 = vshrl.u32 %v2126, 7
  %v2128 = vsub.s32 0, %v2127
  %v2129 = vrot.slane %v93, %v2128
  %v2130 = vlaneseq
  %v2131 = vshrl.u32 %v2130, 7
  %v2132 = vsub.s32 1, %v2131
  %v2133 = vrot.slane %v93, %v2132
  %v2134 = vlaneseq
  %v2135 = vshrl.u32 %v2134, 7
  %v2136 = vsub.s32 2, %v2135
  %v2137 = vrot.slane %v93, %v2136
  %v2138 = vlaneseq
  %v2139 = vshrl.u32 %v2138, 7
  %v2140 = vsub.s32 3, %v2139
  %v2141 = vrot.slane %v93, %v2140
  %v2142 = vlaneseq
  %v2143 = vshrl.u32 %v2142, 7
  %v2144 = vsub.s32 4, %v2143
  %v2145 = vrot.slane %v93, %v2144
  %v2151 = vmul.f32 %v2105, %v2129
  %v2152 = vmul.f32 %v2106, %v2133
  %v2153 = vmul.f32 %v2107, %v2137
  %v2154 = vmul.f32 %v2108, %v2141
  %v2155 = vmul.f32 %v2109, %v2145
  %v2156 = vmul.f32 %v2110, %v2129
  %v2157 = vmul.f32 %v2111, %v2133
  %v2158 = vmul.f32 %v2112, %v2137
  %v2159 = vmul.f32 %v2113, %v2141
  %v2160 = vmul.f32 %v2114, %v2145
  %v2161 = vmul.f32 %v2115, %v2129
  %v2162 = vmul.f32 %v2116, %v2133
  %v2163 = vmul.f32 %v2117, %v2137
  %v2164 = vmul.f32 %v2118, %v2141
  %v2165 = vmul.f32 %v2119, %v2145
  %v2166 = vmul.f32 %v2120, %v2129
  %v2167 = vmul.f32 %v2121, %v2133
  %v2168 = vmul.f32 %v2122, %v2137
  %v2169 = vmul.f32 %v2123, %v2141
  %v2170 = vmul.f32 %v2124, %v2145
  %v2171 = vpack.c.bf16 %v2156, %v2151
  %v2172 = vpack.c.bf16 %v2157, %v2152
  %v2173 = vpack.c.bf16 %v2158, %v2153
  %v2174 = vpack.c.bf16 %v2159, %v2154
  %v2175 = vpack.c.bf16 %v2160, %v2155
  %v2176 = vpack.c.bf16 %v2166, %v2161
  %v2177 = vpack.c.bf16 %v2167, %v2162
  %v2178 = vpack.c.bf16 %v2168, %v2163
  %v2179 = vpack.c.bf16 %v2169, %v2164
  %v2180 = vpack.c.bf16 %v2170, %v2165
  %v2190 = vunpack.c.l.b16 %v73
  %v2191 = vunpack.c.l.b16 %v74
  %v2192 = vunpack.c.l.b16 %v75
  %v2193 = vunpack.c.l.b16 %v76
  %v2194 = vunpack.c.l.b16 %v77
  %v2195 = vunpack.c.l.b16 %v78
  %v2196 = vunpack.c.l.b16 %v79
  %v2197 = vunpack.c.l.b16 %v80
  %v2198 = vunpack.c.l.b16 %v81
  %v2199 = vpack.c.b16 %v2191, %v2190
  %v2200 = vpack.c.b16 %v2193, %v2192
  %v2201 = vpack.c.b16 %v2195, %v2194
  %v2202 = vpack.c.b16 %v2197, %v2196
  %v2203 = vpack.c.b16 %v2198, %v2198
  %vm2204 = vcmask 261120
  %v2206 = vsel %vm2204, %v2199, 0
  %v2209 = vsel %vm2204, %v2200, 0
  %v2212 = vsel %vm2204, %v2201, 0
  %v2215 = vsel %vm2204, %v2202, 0
  %v2218 = vsel %vm2204, %v2203, 0
  %2220 = vmatprep.subr.bf16.mxu0 %v2172
  %2221 = vmatpush1.bf16.msra.mxu0 %v2171
  %2222 = vmatprep.subr.bf16.mxu0 %v2177
  %2223 = vmatpush1.bf16.msra.mxu0 %v2176
  %2224 = vmatprep.subr.bf16.mxu0 0
  %2225 = vmatpush1.bf16.msra.mxu0 0
  %2226 = vmatprep.subr.bf16.mxu0 0
  %2227 = vmatpush1.bf16.msra.mxu0 0
  %2228 = vmatprep.subr.bf16.mxu0 0
  %2229 = vmatpush1.bf16.msra.mxu0 0
  %2230 = vmatprep.subr.bf16.mxu0 0
  %2231 = vmatpush1.bf16.msra.mxu0 0
  %2232 = vmatprep.subr.bf16.mxu0 0
  %2233 = vmatpush1.bf16.msra.mxu0 0
  %2234 = vmatprep.subr.bf16.mxu0 0
  %2235 = vmatpush1.bf16.msra.mxu0 0
  %2236 = vmatprep.subr.bf16.mxu0 0
  %2237 = vmatpush1.bf16.msra.mxu0 0
  %2238 = vmatprep.subr.bf16.mxu0 0
  %2239 = vmatpush1.bf16.msra.mxu0 0
  %2240 = vmatprep.subr.bf16.mxu0 0
  %2241 = vmatpush1.bf16.msra.mxu0 0
  %2242 = vmatprep.subr.bf16.mxu0 0
  %2243 = vmatpush1.bf16.msra.mxu0 0
  %2244 = vmatprep.subr.bf16.mxu0 0
  %2245 = vmatpush1.bf16.msra.mxu0 0
  %2246 = vmatprep.subr.bf16.mxu0 0
  %2247 = vmatpush1.bf16.msra.mxu0 0
  %2248 = vmatprep.subr.bf16.mxu0 0
  %2249 = vmatpush1.bf16.msra.mxu0 0
  %2250 = vmatprep.subr.bf16.mxu0 0
  %2251 = vmatpush1.bf16.msra.mxu0 0
  %2252 = vmatprep.mubr.bf16.mxu0 0
  %2253 = vmatmul.mubr.bf16.gmra.mrb[0].mxu0 %v2206
  %v2254 = vpop.f32.mrb[0].mxu0
  %v2255 = vadd.f32 0.0, %v2254
  %v2256 = vpop.f32.mrb[0].mxu0
  %v2257 = vadd.f32 0.0, %v2256
  %v2258 = vpop.f32.mrb[0].mxu0
  %v2259 = vadd.f32 0.0, %v2258
  %v2260 = vpop.f32.mrb[0].mxu0
  %v2261 = vadd.f32 0.0, %v2260
  %2262 = vmatprep.mubr.bf16.mxu0 0
  %2263 = vmatmul.mubr.bf16.gmra.mrb[0].mxu0 %v2209
  %v2264 = vpop.f32.mrb[0].mxu0
  %v2265 = vadd.f32 0.0, %v2264
  %v2266 = vpop.f32.mrb[0].mxu0
  %v2267 = vadd.f32 0.0, %v2266
  %v2268 = vpop.f32.mrb[0].mxu0
  %v2269 = vadd.f32 0.0, %v2268
  %v2270 = vpop.f32.mrb[0].mxu0
  %v2271 = vadd.f32 0.0, %v2270
  %2272 = vmatprep.mubr.bf16.mxu0 0
  %2273 = vmatmul.mubr.bf16.gmra.mrb[0].mxu0 %v2212
  %v2274 = vpop.f32.mrb[0].mxu0
  %v2275 = vadd.f32 0.0, %v2274
  %v2276 = vpop.f32.mrb[0].mxu0
  %v2277 = vadd.f32 0.0, %v2276
  %v2278 = vpop.f32.mrb[0].mxu0
  %v2279 = vadd.f32 0.0, %v2278
  %v2280 = vpop.f32.mrb[0].mxu0
  %v2281 = vadd.f32 0.0, %v2280
  %2282 = vmatprep.mubr.bf16.mxu0 0
  %2283 = vmatmul.mubr.bf16.gmra.mrb[0].mxu0 %v2215
  %v2284 = vpop.f32.mrb[0].mxu0
  %v2285 = vadd.f32 0.0, %v2284
  %v2286 = vpop.f32.mrb[0].mxu0
  %v2287 = vadd.f32 0.0, %v2286
  %v2288 = vpop.f32.mrb[0].mxu0
  %v2289 = vadd.f32 0.0, %v2288
  %v2290 = vpop.f32.mrb[0].mxu0
  %v2291 = vadd.f32 0.0, %v2290
  %2292 = vmatprep.mubr.bf16.mxu0 0
  %2293 = vmatmul.mubr.bf16.gmra.mrb[0].mxu0 %v2218
  %v2294 = vpop.f32.mrb[0].mxu0
  %v2295 = vadd.f32 0.0, %v2294
  %v2296 = vpop.f32.mrb[0].mxu0
  %v2297 = vadd.f32 0.0, %v2296
  %v2298 = vpop.f32.mrb[0].mxu0
  %v2299 = vpop.f32.mrb[0].mxu0
  %2300 = vdwg.mxu0
  %2301 = vmatprep.subr.bf16.mxu0 %v2174
  %2302 = vmatpush1.bf16.msra.mxu0 %v2173
  %2303 = vmatprep.subr.bf16.mxu0 %v2179
  %2304 = vmatpush1.bf16.msra.mxu0 %v2178
  %2305 = vmatprep.subr.bf16.mxu0 0
  %2306 = vmatpush1.bf16.msra.mxu0 0
  %2307 = vmatprep.subr.bf16.mxu0 0
  %2308 = vmatpush1.bf16.msra.mxu0 0
  %2309 = vmatprep.subr.bf16.mxu0 0
  %2310 = vmatpush1.bf16.msra.mxu0 0
  %2311 = vmatprep.subr.bf16.mxu0 0
  %2312 = vmatpush1.bf16.msra.mxu0 0
  %2313 = vmatprep.subr.bf16.mxu0 0
  %2314 = vmatpush1.bf16.msra.mxu0 0
  %2315 = vmatprep.subr.bf16.mxu0 0
  %2316 = vmatpush1.bf16.msra.mxu0 0
  %2317 = vmatprep.subr.bf16.mxu0 0
  %2318 = vmatpush1.bf16.msra.mxu0 0
  %2319 = vmatprep.subr.bf16.mxu0 0
  %2320 = vmatpush1.bf16.msra.mxu0 0
  %2321 = vmatprep.subr.bf16.mxu0 0
  %2322 = vmatpush1.bf16.msra.mxu0 0
  %2323 = vmatprep.subr.bf16.mxu0 0
  %2324 = vmatpush1.bf16.msra.mxu0 0
  %2325 = vmatprep.subr.bf16.mxu0 0
  %2326 = vmatpush1.bf16.msra.mxu0 0
  %2327 = vmatprep.subr.bf16.mxu0 0
  %2328 = vmatpush1.bf16.msra.mxu0 0
  %2329 = vmatprep.subr.bf16.mxu0 0
  %2330 = vmatpush1.bf16.msra.mxu0 0
  %2331 = vmatprep.subr.bf16.mxu0 0
  %2332 = vmatpush1.bf16.msra.mxu0 0
  %2333 = vmatprep.mubr.bf16.mxu0 0
  %2334 = vmatmul.mubr.bf16.gmra.mrb[0].mxu0 %v2206
  %v2335 = vpop.f32.mrb[0].mxu0
  %v2336 = vadd.f32 0.0, %v2335
  %v2337 = vpop.f32.mrb[0].mxu0
  %v2338 = vadd.f32 0.0, %v2337
  %v2339 = vpop.f32.mrb[0].mxu0
  %v2340 = vadd.f32 0.0, %v2339
  %v2341 = vpop.f32.mrb[0].mxu0
  %v2342 = vadd.f32 0.0, %v2341
  %2343 = vmatprep.mubr.bf16.mxu0 0
  %2344 = vmatmul.mubr.bf16.gmra.mrb[0].mxu0 %v2209
  %v2345 = vpop.f32.mrb[0].mxu0
  %v2346 = vadd.f32 0.0, %v2345
  %v2347 = vpop.f32.mrb[0].mxu0
  %v2348 = vadd.f32 0.0, %v2347
  %v2349 = vpop.f32.mrb[0].mxu0
  %v2350 = vadd.f32 0.0, %v2349
  %v2351 = vpop.f32.mrb[0].mxu0
  %v2352 = vadd.f32 0.0, %v2351
  %2353 = vmatprep.mubr.bf16.mxu0 0
  %2354 = vmatmul.mubr.bf16.gmra.mrb[0].mxu0 %v2212
  %v2355 = vpop.f32.mrb[0].mxu0
  %v2356 = vadd.f32 0.0, %v2355
  %v2357 = vpop.f32.mrb[0].mxu0
  %v2358 = vadd.f32 0.0, %v2357
  %v2359 = vpop.f32.mrb[0].mxu0
  %v2360 = vadd.f32 0.0, %v2359
  %v2361 = vpop.f32.mrb[0].mxu0
  %v2362 = vadd.f32 0.0, %v2361
  %2363 = vmatprep.mubr.bf16.mxu0 0
  %2364 = vmatmul.mubr.bf16.gmra.mrb[0].mxu0 %v2215
  %v2365 = vpop.f32.mrb[0].mxu0
  %v2366 = vadd.f32 0.0, %v2365
  %v2367 = vpop.f32.mrb[0].mxu0
  %v2368 = vadd.f32 0.0, %v2367
  %v2369 = vpop.f32.mrb[0].mxu0
  %v2370 = vadd.f32 0.0, %v2369
  %v2371 = vpop.f32.mrb[0].mxu0
  %v2372 = vadd.f32 0.0, %v2371
  %2373 = vmatprep.mubr.bf16.mxu0 0
  %2374 = vmatmul.mubr.bf16.gmra.mrb[0].mxu0 %v2218
  %v2375 = vpop.f32.mrb[0].mxu0
  %v2376 = vadd.f32 0.0, %v2375
  %v2377 = vpop.f32.mrb[0].mxu0
  %v2378 = vadd.f32 0.0, %v2377
  %v2379 = vpop.f32.mrb[0].mxu0
  %v2380 = vpop.f32.mrb[0].mxu0
  %2381 = vdwg.mxu0
  %2382 = vmatprep.subr.bf16.mxu0 0
  %2383 = vmatpush1.bf16.msra.mxu0 %v2175
  %2384 = vmatprep.subr.bf16.mxu0 0
  %2385 = vmatpush1.bf16.msra.mxu0 %v2180
  %2386 = vmatprep.subr.bf16.mxu0 0
  %2387 = vmatpush1.bf16.msra.mxu0 0
  %2388 = vmatprep.subr.bf16.mxu0 0
  %2389 = vmatpush1.bf16.msra.mxu0 0
  %2390 = vmatprep.subr.bf16.mxu0 0
  %2391 = vmatpush1.bf16.msra.mxu0 0
  %2392 = vmatprep.subr.bf16.mxu0 0
  %2393 = vmatpush1.bf16.msra.mxu0 0
  %2394 = vmatprep.subr.bf16.mxu0 0
  %2395 = vmatpush1.bf16.msra.mxu0 0
  %2396 = vmatprep.subr.bf16.mxu0 0
  %2397 = vmatpush1.bf16.msra.mxu0 0
  %2398 = vmatprep.subr.bf16.mxu0 0
  %2399 = vmatpush1.bf16.msra.mxu0 0
  %2400 = vmatprep.subr.bf16.mxu0 0
  %2401 = vmatpush1.bf16.msra.mxu0 0
  %2402 = vmatprep.subr.bf16.mxu0 0
  %2403 = vmatpush1.bf16.msra.mxu0 0
  %2404 = vmatprep.subr.bf16.mxu0 0
  %2405 = vmatpush1.bf16.msra.mxu0 0
  %2406 = vmatprep.subr.bf16.mxu0 0
  %2407 = vmatpush1.bf16.msra.mxu0 0
  %2408 = vmatprep.subr.bf16.mxu0 0
  %2409 = vmatpush1.bf16.msra.mxu0 0
  %2410 = vmatprep.subr.bf16.mxu0 0
  %2411 = vmatpush1.bf16.msra.mxu0 0
  %2412 = vmatprep.subr.bf16.mxu0 0
  %2413 = vmatpush1.bf16.msra.mxu0 0
  %2414 = vmatprep.mubr.bf16.mxu0 0
  %2415 = vmatmul.mubr.bf16.gmra.mrb[0].mxu0 %v2206
  %v2416 = vpop.f32.mrb[0].mxu0
  %v2417 = vadd.f32 0.0, %v2416
  %v2418 = vpop.f32.mrb[0].mxu0
  %v2419 = vpop.f32.mrb[0].mxu0
  %v2420 = vadd.f32 0.0, %v2419
  %v2421 = vpop.f32.mrb[0].mxu0
  %2422 = vmatprep.mubr.bf16.mxu0 0
  %2423 = vmatmul.mubr.bf16.gmra.mrb[0].mxu0 %v2209
  %v2424 = vpop.f32.mrb[0].mxu0
  %v2425 = vadd.f32 0.0, %v2424
  %v2426 = vpop.f32.mrb[0].mxu0
  %v2427 = vpop.f32.mrb[0].mxu0
  %v2428 = vadd.f32 0.0, %v2427
  %v2429 = vpop.f32.mrb[0].mxu0
  %2430 = vmatprep.mubr.bf16.mxu0 0
  %2431 = vmatmul.mubr.bf16.gmra.mrb[0].mxu0 %v2212
  %v2432 = vpop.f32.mrb[0].mxu0
  %v2433 = vadd.f32 0.0, %v2432
  %v2434 = vpop.f32.mrb[0].mxu0
  %v2435 = vpop.f32.mrb[0].mxu0
  %v2436 = vadd.f32 0.0, %v2435
  %v2437 = vpop.f32.mrb[0].mxu0
  %2438 = vmatprep.mubr.bf16.mxu0 0
  %2439 = vmatmul.mubr.bf16.gmra.mrb[0].mxu0 %v2215
  %v2440 = vpop.f32.mrb[0].mxu0
  %v2441 = vadd.f32 0.0, %v2440
  %v2442 = vpop.f32.mrb[0].mxu0
  %v2443 = vpop.f32.mrb[0].mxu0
  %v2444 = vadd.f32 0.0, %v2443
  %v2445 = vpop.f32.mrb[0].mxu0
  %2446 = vmatprep.mubr.bf16.mxu0 0
  %2447 = vmatmul.mubr.bf16.gmra.mrb[0].mxu0 %v2218
  %v2448 = vpop.f32.mrb[0].mxu0
  %v2449 = vadd.f32 0.0, %v2448
  %v2450 = vpop.f32.mrb[0].mxu0
  %v2451 = vpop.f32.mrb[0].mxu0
  %v2452 = vpop.f32.mrb[0].mxu0
  %2453 = vdwg.mxu0
  %2459 = vrot.lane.b32.xlu0 %v2259, 127
  %v2460 = vpop.permute.xlu0 %2459
  %2461 = vrot.lane.b32.xlu0 %v2261, 127
  %v2462 = vpop.permute.xlu0 %2461
  %2463 = vrot.lane.b32.xlu0 %v2340, 127
  %v2464 = vpop.permute.xlu0 %2463
  %2465 = vrot.lane.b32.xlu0 %v2342, 127
  %v2466 = vpop.permute.xlu0 %2465
  %2467 = vrot.lane.b32.xlu0 %v2420, 127
  %v2468 = vpop.permute.xlu0 %2467
  %v2469 = vsel %vm1071, %v2460, %v2462
  %v2470 = vsel %vm1071, %v2462, %v2464
  %v2471 = vsel %vm1071, %v2464, %v2466
  %v2472 = vsel %vm1071, %v2466, %v2468
  %v2478 = vadd.f32 %v2255, %v2469
  %v2479 = vadd.f32 %v2257, %v2470
  %v2480 = vadd.f32 %v2336, %v2471
  %v2481 = vadd.f32 %v2338, %v2472
  %v2482 = vadd.f32 %v2417, %v2468
  %2488 = vrot.lane.b32.xlu0 %v2269, 106
  %v2489 = vpop.permute.xlu0 %2488
  %2490 = vrot.lane.b32.xlu0 %v2271, 106
  %v2491 = vpop.permute.xlu0 %2490
  %2492 = vrot.lane.b32.xlu0 %v2350, 106
  %v2493 = vpop.permute.xlu0 %2492
  %2494 = vrot.lane.b32.xlu0 %v2352, 106
  %v2495 = vpop.permute.xlu0 %2494
  %2496 = vrot.lane.b32.xlu0 %v2428, 106
  %v2497 = vpop.permute.xlu0 %2496
  %v2498 = vsel %vm1200, %v2489, %v2491
  %v2499 = vsel %vm1200, %v2491, %v2493
  %v2500 = vsel %vm1200, %v2493, %v2495
  %v2501 = vsel %vm1200, %v2495, %v2497
  %v2507 = vadd.f32 %v2265, %v2498
  %v2508 = vadd.f32 %v2267, %v2499
  %v2509 = vadd.f32 %v2346, %v2500
  %v2510 = vadd.f32 %v2348, %v2501
  %v2511 = vadd.f32 %v2425, %v2497
  %2517 = vrot.lane.b32.xlu0 %v2279, 127
  %v2518 = vpop.permute.xlu0 %2517
  %2519 = vrot.lane.b32.xlu0 %v2281, 127
  %v2520 = vpop.permute.xlu0 %2519
  %2521 = vrot.lane.b32.xlu0 %v2360, 127
  %v2522 = vpop.permute.xlu0 %2521
  %2523 = vrot.lane.b32.xlu0 %v2362, 127
  %v2524 = vpop.permute.xlu0 %2523
  %2525 = vrot.lane.b32.xlu0 %v2436, 127
  %v2526 = vpop.permute.xlu0 %2525
  %v2527 = vsel %vm1071, %v2518, %v2520
  %v2528 = vsel %vm1071, %v2520, %v2522
  %v2529 = vsel %vm1071, %v2522, %v2524
  %v2530 = vsel %vm1071, %v2524, %v2526
  %v2536 = vadd.f32 %v2275, %v2527
  %v2537 = vadd.f32 %v2277, %v2528
  %v2538 = vadd.f32 %v2356, %v2529
  %v2539 = vadd.f32 %v2358, %v2530
  %v2540 = vadd.f32 %v2433, %v2526
  %2546 = vrot.lane.b32.xlu0 %v2289, 127
  %v2547 = vpop.permute.xlu0 %2546
  %2548 = vrot.lane.b32.xlu0 %v2291, 127
  %v2549 = vpop.permute.xlu0 %2548
  %2550 = vrot.lane.b32.xlu0 %v2370, 127
  %v2551 = vpop.permute.xlu0 %2550
  %2552 = vrot.lane.b32.xlu0 %v2372, 127
  %v2553 = vpop.permute.xlu0 %2552
  %2554 = vrot.lane.b32.xlu0 %v2444, 127
  %v2555 = vpop.permute.xlu0 %2554
  %v2556 = vsel %vm1071, %v2547, %v2549
  %v2557 = vsel %vm1071, %v2549, %v2551
  %v2558 = vsel %vm1071, %v2551, %v2553
  %v2559 = vsel %vm1071, %v2553, %v2555
  %v2565 = vadd.f32 %v2285, %v2556
  %v2566 = vadd.f32 %v2287, %v2557
  %v2567 = vadd.f32 %v2366, %v2558
  %v2568 = vadd.f32 %v2368, %v2559
  %v2569 = vadd.f32 %v2441, %v2555
  %2575 = vrot.lane.b32.xlu0 %v2507, 126
  %v2576 = vpop.permute.xlu0 %2575
  %2577 = vrot.lane.b32.xlu0 %v2508, 126
  %v2578 = vpop.permute.xlu0 %2577
  %2579 = vrot.lane.b32.xlu0 %v2509, 126
  %v2580 = vpop.permute.xlu0 %2579
  %2581 = vrot.lane.b32.xlu0 %v2510, 126
  %v2582 = vpop.permute.xlu0 %2581
  %2583 = vrot.lane.b32.xlu0 %v2511, 126
  %v2584 = vpop.permute.xlu0 %2583
  %v2585 = vsel %vm1601, %v2576, %v2578
  %v2586 = vsel %vm1601, %v2578, %v2580
  %v2587 = vsel %vm1601, %v2580, %v2582
  %v2588 = vsel %vm1601, %v2582, %v2584
  %v2594 = vadd.f32 %v2478, %v2585
  %v2595 = vadd.f32 %v2479, %v2586
  %v2596 = vadd.f32 %v2480, %v2587
  %v2597 = vadd.f32 %v2481, %v2588
  %v2598 = vadd.f32 %v2482, %v2584
  %2604 = vrot.lane.b32.xlu0 %v2565, 105
  %v2605 = vpop.permute.xlu0 %2604
  %2606 = vrot.lane.b32.xlu0 %v2566, 105
  %v2607 = vpop.permute.xlu0 %2606
  %2608 = vrot.lane.b32.xlu0 %v2567, 105
  %v2609 = vpop.permute.xlu0 %2608
  %2610 = vrot.lane.b32.xlu0 %v2568, 105
  %v2611 = vpop.permute.xlu0 %2610
  %2612 = vrot.lane.b32.xlu0 %v2569, 105
  %v2613 = vpop.permute.xlu0 %2612
  %v2614 = vsel %vm1730, %v2605, %v2607
  %v2615 = vsel %vm1730, %v2607, %v2609
  %v2616 = vsel %vm1730, %v2609, %v2611
  %v2617 = vsel %vm1730, %v2611, %v2613
  %v2623 = vadd.f32 %v2536, %v2614
  %v2624 = vadd.f32 %v2537, %v2615
  %v2625 = vadd.f32 %v2538, %v2616
  %v2626 = vadd.f32 %v2539, %v2617
  %v2627 = vadd.f32 %v2540, %v2613
  %2633 = vrot.lane.b32.xlu0 %v2623, 103
  %v2634 = vpop.permute.xlu0 %2633
  %2635 = vrot.lane.b32.xlu0 %v2624, 103
  %v2636 = vpop.permute.xlu0 %2635
  %2637 = vrot.lane.b32.xlu0 %v2625, 103
  %v2638 = vpop.permute.xlu0 %2637
  %2639 = vrot.lane.b32.xlu0 %v2626, 103
  %v2640 = vpop.permute.xlu0 %2639
  %2641 = vrot.lane.b32.xlu0 %v2627, 103
  %v2642 = vpop.permute.xlu0 %2641
  %v2643 = vsel %vm1871, %v2634, %v2636
  %v2644 = vsel %vm1871, %v2636, %v2638
  %v2645 = vsel %vm1871, %v2638, %v2640
  %v2646 = vsel %vm1871, %v2640, %v2642
  %v2652 = vadd.f32 %v2594, %v2643
  %v2653 = vadd.f32 %v2595, %v2644
  %v2654 = vadd.f32 %v2596, %v2645
  %v2655 = vadd.f32 %v2597, %v2646
  %v2656 = vadd.f32 %v2598, %v2642
  %2662 = vrot.lane.b32.xlu0 %v2295, 78
  %v2663 = vpop.permute.xlu0 %2662
  %2664 = vrot.lane.b32.xlu0 %v2297, 78
  %v2665 = vpop.permute.xlu0 %2664
  %2666 = vrot.lane.b32.xlu0 %v2376, 78
  %v2667 = vpop.permute.xlu0 %2666
  %2668 = vrot.lane.b32.xlu0 %v2378, 78
  %v2669 = vpop.permute.xlu0 %2668
  %2670 = vrot.lane.b32.xlu0 %v2449, 78
  %v2671 = vpop.permute.xlu0 %2670
  %v2672 = vsel %vm2004, %v2663, %v2665
  %v2673 = vsel %vm2004, %v2665, %v2667
  %v2674 = vsel %vm2004, %v2667, %v2669
  %v2675 = vsel %vm2004, %v2669, %v2671
  %v2681 = vadd.f32 %v2652, %v2672
  %v2682 = vadd.f32 %v2653, %v2673
  %v2683 = vadd.f32 %v2654, %v2674
  %v2684 = vadd.f32 %v2655, %v2675
  %v2685 = vadd.f32 %v2656, %v2671
  %2687 = vset.pattern.permute.xlu0 0
  %2688 = vperm.xlu0 %2687, %v82
  %v2689 = vpop.permute.xlu0 %2688
  %v2691 = vadd.f32 %v2681, %v2689
  %v2692 = vadd.f32 %v2682, %v2689
  %v2693 = vadd.f32 %v2683, %v2689
  %v2694 = vadd.f32 %v2684, %v2689
  %v2695 = vadd.f32 %v2685, %v2689
  %v2696 = vmax.f32 %v2691, 0.0
  %v2697 = vmax.f32 %v2692, 0.0
  %v2698 = vmax.f32 %v2693, 0.0
  %v2699 = vmax.f32 %v2694, 0.0
  %v2700 = vmax.f32 %v2695, 0.0
  %v2702 = vlaneseq
  %v2703 = vshrl.u32 %v2702, 7
  %v2704 = vsub.s32 0, %v2703
  %v2705 = vrot.slane %v94, %v2704
  %v2706 = vlaneseq
  %v2707 = vshrl.u32 %v2706, 7
  %v2708 = vsub.s32 1, %v2707
  %v2709 = vrot.slane %v94, %v2708
  %v2710 = vlaneseq
  %v2711 = vshrl.u32 %v2710, 7
  %v2712 = vsub.s32 2, %v2711
  %v2713 = vrot.slane %v94, %v2712
  %v2714 = vlaneseq
  %v2715 = vshrl.u32 %v2714, 7
  %v2716 = vsub.s32 3, %v2715
  %v2717 = vrot.slane %v94, %v2716
  %v2718 = vlaneseq
  %v2719 = vshrl.u32 %v2718, 7
  %v2720 = vsub.s32 4, %v2719
  %v2721 = vrot.slane %v94, %v2720
  %v2727 = vmul.f32 %v2696, %v2705
  %v2728 = vmul.f32 %v2697, %v2709
  %v2729 = vmul.f32 %v2698, %v2713
  %v2730 = vmul.f32 %v2699, %v2717
  %v2731 = vmul.f32 %v2700, %v2721
  %v2732 = vpack.c.bf16 %v2727, %v2727
  %v2733 = vpack.c.bf16 %v2728, %v2728
  %v2734 = vpack.c.bf16 %v2729, %v2729
  %v2735 = vpack.c.bf16 %v2730, %v2730
  %v2736 = vpack.c.bf16 %v2731, %v2731
  %v2746 = vunpack.c.l.b16 %v83
  %v2747 = vunpack.c.l.b16 %v84
  %v2748 = vunpack.c.l.b16 %v85
  %v2749 = vunpack.c.l.b16 %v86
  %v2750 = vunpack.c.l.b16 %v87
  %v2751 = vunpack.c.l.b16 %v88
  %v2752 = vunpack.c.l.b16 %v89
  %v2753 = vunpack.c.l.b16 %v90
  %v2754 = vunpack.c.l.b16 %v91
  %v2755 = vpack.c.b16 %v2747, %v2746
  %v2756 = vpack.c.b16 %v2749, %v2748
  %v2757 = vpack.c.b16 %v2751, %v2750
  %v2758 = vpack.c.b16 %v2753, %v2752
  %v2759 = vpack.c.b16 %v2754, %v2754
  %vm2760 = vcmask 48128
  %v2762 = vsel %vm2760, %v2755, 0
  %v2765 = vsel %vm2760, %v2756, 0
  %v2768 = vsel %vm2760, %v2757, 0
  %v2771 = vsel %vm2760, %v2758, 0
  %v2774 = vsel %vm2760, %v2759, 0
  %vm2776 = vcmask 1042432
  %v2778 = vsel %vm2776, %v2732, 0
  %v2781 = vsel %vm2776, %v2733, 0
  %v2784 = vsel %vm2776, %v2734, 0
  %v2787 = vsel %vm2776, %v2735, 0
  %v2790 = vsel %vm2776, %v2736, 0
  %2792 = vmatprep.subr.bf16.mxu0 %v2781
  %2793 = vmatpush1.bf16.msra.mxu0 %v2778
  %2794 = vmatprep.subr.bf16.mxu0 0
  %2795 = vmatpush1.bf16.msra.mxu0 0
  %2796 = vmatprep.subr.bf16.mxu0 0
  %2797 = vmatpush1.bf16.msra.mxu0 0
  %2798 = vmatprep.subr.bf16.mxu0 0
  %2799 = vmatpush1.bf16.msra.mxu0 0
  %2800 = vmatprep.subr.bf16.mxu0 0
  %2801 = vmatpush1.bf16.msra.mxu0 0
  %2802 = vmatprep.subr.bf16.mxu0 0
  %2803 = vmatpush1.bf16.msra.mxu0 0
  %2804 = vmatprep.subr.bf16.mxu0 0
  %2805 = vmatpush1.bf16.msra.mxu0 0
  %2806 = vmatprep.subr.bf16.mxu0 0
  %2807 = vmatpush1.bf16.msra.mxu0 0
  %2808 = vmatprep.subr.bf16.mxu0 0
  %2809 = vmatpush1.bf16.msra.mxu0 0
  %2810 = vmatprep.subr.bf16.mxu0 0
  %2811 = vmatpush1.bf16.msra.mxu0 0
  %2812 = vmatprep.subr.bf16.mxu0 0
  %2813 = vmatpush1.bf16.msra.mxu0 0
  %2814 = vmatprep.subr.bf16.mxu0 0
  %2815 = vmatpush1.bf16.msra.mxu0 0
  %2816 = vmatprep.subr.bf16.mxu0 0
  %2817 = vmatpush1.bf16.msra.mxu0 0
  %2818 = vmatprep.subr.bf16.mxu0 0
  %2819 = vmatpush1.bf16.msra.mxu0 0
  %2820 = vmatprep.subr.bf16.mxu0 0
  %2821 = vmatpush1.bf16.msra.mxu0 0
  %2822 = vmatprep.subr.bf16.mxu0 0
  %2823 = vmatpush1.bf16.msra.mxu0 0
  %2824 = vmatprep.mubr.bf16.mxu0 0
  %2825 = vmatmul.mubr.bf16.gmra.mrb[0].mxu0 %v2762
  %v2826 = vpop.f32.mrb[0].mxu0
  %v2827 = vadd.f32 0.0, %v2826
  %v2828 = vpop.f32.mrb[0].mxu0
  %v2829 = vadd.f32 0.0, %v2828
  %v2830 = vpop.f32.mrb[0].mxu0
  %v2831 = vadd.f32 0.0, %v2830
  %v2832 = vpop.f32.mrb[0].mxu0
  %v2833 = vadd.f32 0.0, %v2832
  %2834 = vmatprep.mubr.bf16.mxu0 0
  %2835 = vmatmul.mubr.bf16.gmra.mrb[0].mxu0 %v2765
  %v2836 = vpop.f32.mrb[0].mxu0
  %v2837 = vadd.f32 0.0, %v2836
  %v2838 = vpop.f32.mrb[0].mxu0
  %v2839 = vadd.f32 0.0, %v2838
  %v2840 = vpop.f32.mrb[0].mxu0
  %v2841 = vadd.f32 0.0, %v2840
  %v2842 = vpop.f32.mrb[0].mxu0
  %v2843 = vadd.f32 0.0, %v2842
  %2844 = vmatprep.mubr.bf16.mxu0 0
  %2845 = vmatmul.mubr.bf16.gmra.mrb[0].mxu0 %v2768
  %v2846 = vpop.f32.mrb[0].mxu0
  %v2847 = vadd.f32 0.0, %v2846
  %v2848 = vpop.f32.mrb[0].mxu0
  %v2849 = vadd.f32 0.0, %v2848
  %v2850 = vpop.f32.mrb[0].mxu0
  %v2851 = vadd.f32 0.0, %v2850
  %v2852 = vpop.f32.mrb[0].mxu0
  %v2853 = vadd.f32 0.0, %v2852
  %2854 = vmatprep.mubr.bf16.mxu0 0
  %2855 = vmatmul.mubr.bf16.gmra.mrb[0].mxu0 %v2771
  %v2856 = vpop.f32.mrb[0].mxu0
  %v2857 = vadd.f32 0.0, %v2856
  %v2858 = vpop.f32.mrb[0].mxu0
  %v2859 = vadd.f32 0.0, %v2858
  %v2860 = vpop.f32.mrb[0].mxu0
  %v2861 = vadd.f32 0.0, %v2860
  %v2862 = vpop.f32.mrb[0].mxu0
  %v2863 = vadd.f32 0.0, %v2862
  %2864 = vmatprep.mubr.bf16.mxu0 0
  %2865 = vmatmul.mubr.bf16.gmra.mrb[0].mxu0 %v2774
  %v2866 = vpop.f32.mrb[0].mxu0
  %v2867 = vadd.f32 0.0, %v2866
  %v2868 = vpop.f32.mrb[0].mxu0
  %v2869 = vadd.f32 0.0, %v2868
  %v2870 = vpop.f32.mrb[0].mxu0
  %v2871 = vpop.f32.mrb[0].mxu0
  %2872 = vdwg.mxu0
  %2873 = vmatprep.subr.bf16.mxu0 %v2787
  %2874 = vmatpush1.bf16.msra.mxu0 %v2784
  %2875 = vmatprep.subr.bf16.mxu0 0
  %2876 = vmatpush1.bf16.msra.mxu0 0
  %2877 = vmatprep.subr.bf16.mxu0 0
  %2878 = vmatpush1.bf16.msra.mxu0 0
  %2879 = vmatprep.subr.bf16.mxu0 0
  %2880 = vmatpush1.bf16.msra.mxu0 0
  %2881 = vmatprep.subr.bf16.mxu0 0
  %2882 = vmatpush1.bf16.msra.mxu0 0
  %2883 = vmatprep.subr.bf16.mxu0 0
  %2884 = vmatpush1.bf16.msra.mxu0 0
  %2885 = vmatprep.subr.bf16.mxu0 0
  %2886 = vmatpush1.bf16.msra.mxu0 0
  %2887 = vmatprep.subr.bf16.mxu0 0
  %2888 = vmatpush1.bf16.msra.mxu0 0
  %2889 = vmatprep.subr.bf16.mxu0 0
  %2890 = vmatpush1.bf16.msra.mxu0 0
  %2891 = vmatprep.subr.bf16.mxu0 0
  %2892 = vmatpush1.bf16.msra.mxu0 0
  %2893 = vmatprep.subr.bf16.mxu0 0
  %2894 = vmatpush1.bf16.msra.mxu0 0
  %2895 = vmatprep.subr.bf16.mxu0 0
  %2896 = vmatpush1.bf16.msra.mxu0 0
  %2897 = vmatprep.subr.bf16.mxu0 0
  %2898 = vmatpush1.bf16.msra.mxu0 0
  %2899 = vmatprep.subr.bf16.mxu0 0
  %2900 = vmatpush1.bf16.msra.mxu0 0
  %2901 = vmatprep.subr.bf16.mxu0 0
  %2902 = vmatpush1.bf16.msra.mxu0 0
  %2903 = vmatprep.subr.bf16.mxu0 0
  %2904 = vmatpush1.bf16.msra.mxu0 0
  %2905 = vmatprep.mubr.bf16.mxu0 0
  %2906 = vmatmul.mubr.bf16.gmra.mrb[0].mxu0 %v2762
  %v2907 = vpop.f32.mrb[0].mxu0
  %v2908 = vadd.f32 0.0, %v2907
  %v2909 = vpop.f32.mrb[0].mxu0
  %v2910 = vadd.f32 0.0, %v2909
  %v2911 = vpop.f32.mrb[0].mxu0
  %v2912 = vadd.f32 0.0, %v2911
  %v2913 = vpop.f32.mrb[0].mxu0
  %v2914 = vadd.f32 0.0, %v2913
  %2915 = vmatprep.mubr.bf16.mxu0 0
  %2916 = vmatmul.mubr.bf16.gmra.mrb[0].mxu0 %v2765
  %v2917 = vpop.f32.mrb[0].mxu0
  %v2918 = vadd.f32 0.0, %v2917
  %v2919 = vpop.f32.mrb[0].mxu0
  %v2920 = vadd.f32 0.0, %v2919
  %v2921 = vpop.f32.mrb[0].mxu0
  %v2922 = vadd.f32 0.0, %v2921
  %v2923 = vpop.f32.mrb[0].mxu0
  %v2924 = vadd.f32 0.0, %v2923
  %2925 = vmatprep.mubr.bf16.mxu0 0
  %2926 = vmatmul.mubr.bf16.gmra.mrb[0].mxu0 %v2768
  %v2927 = vpop.f32.mrb[0].mxu0
  %v2928 = vadd.f32 0.0, %v2927
  %v2929 = vpop.f32.mrb[0].mxu0
  %v2930 = vadd.f32 0.0, %v2929
  %v2931 = vpop.f32.mrb[0].mxu0
  %v2932 = vadd.f32 0.0, %v2931
  %v2933 = vpop.f32.mrb[0].mxu0
  %v2934 = vadd.f32 0.0, %v2933
  %2935 = vmatprep.mubr.bf16.mxu0 0
  %2936 = vmatmul.mubr.bf16.gmra.mrb[0].mxu0 %v2771
  %v2937 = vpop.f32.mrb[0].mxu0
  %v2938 = vadd.f32 0.0, %v2937
  %v2939 = vpop.f32.mrb[0].mxu0
  %v2940 = vadd.f32 0.0, %v2939
  %v2941 = vpop.f32.mrb[0].mxu0
  %v2942 = vadd.f32 0.0, %v2941
  %v2943 = vpop.f32.mrb[0].mxu0
  %v2944 = vadd.f32 0.0, %v2943
  %2945 = vmatprep.mubr.bf16.mxu0 0
  %2946 = vmatmul.mubr.bf16.gmra.mrb[0].mxu0 %v2774
  %v2947 = vpop.f32.mrb[0].mxu0
  %v2948 = vadd.f32 0.0, %v2947
  %v2949 = vpop.f32.mrb[0].mxu0
  %v2950 = vadd.f32 0.0, %v2949
  %v2951 = vpop.f32.mrb[0].mxu0
  %v2952 = vpop.f32.mrb[0].mxu0
  %2953 = vdwg.mxu0
  %2954 = vmatprep.subr.bf16.mxu0 0
  %2955 = vmatpush1.bf16.msra.mxu0 %v2790
  %2956 = vmatprep.subr.bf16.mxu0 0
  %2957 = vmatpush1.bf16.msra.mxu0 0
  %2958 = vmatprep.subr.bf16.mxu0 0
  %2959 = vmatpush1.bf16.msra.mxu0 0
  %2960 = vmatprep.subr.bf16.mxu0 0
  %2961 = vmatpush1.bf16.msra.mxu0 0
  %2962 = vmatprep.subr.bf16.mxu0 0
  %2963 = vmatpush1.bf16.msra.mxu0 0
  %2964 = vmatprep.subr.bf16.mxu0 0
  %2965 = vmatpush1.bf16.msra.mxu0 0
  %2966 = vmatprep.subr.bf16.mxu0 0
  %2967 = vmatpush1.bf16.msra.mxu0 0
  %2968 = vmatprep.subr.bf16.mxu0 0
  %2969 = vmatpush1.bf16.msra.mxu0 0
  %2970 = vmatprep.subr.bf16.mxu0 0
  %2971 = vmatpush1.bf16.msra.mxu0 0
  %2972 = vmatprep.subr.bf16.mxu0 0
  %2973 = vmatpush1.bf16.msra.mxu0 0
  %2974 = vmatprep.subr.bf16.mxu0 0
  %2975 = vmatpush1.bf16.msra.mxu0 0
  %2976 = vmatprep.subr.bf16.mxu0 0
  %2977 = vmatpush1.bf16.msra.mxu0 0
  %2978 = vmatprep.subr.bf16.mxu0 0
  %2979 = vmatpush1.bf16.msra.mxu0 0
  %2980 = vmatprep.subr.bf16.mxu0 0
  %2981 = vmatpush1.bf16.msra.mxu0 0
  %2982 = vmatprep.subr.bf16.mxu0 0
  %2983 = vmatpush1.bf16.msra.mxu0 0
  %2984 = vmatprep.subr.bf16.mxu0 0
  %2985 = vmatpush1.bf16.msra.mxu0 0
  %2986 = vmatprep.mubr.bf16.mxu0 0
  %2987 = vmatmul.mubr.bf16.gmra.mrb[0].mxu0 %v2762
  %v2988 = vpop.f32.mrb[0].mxu0
  %v2989 = vadd.f32 0.0, %v2988
  %v2990 = vpop.f32.mrb[0].mxu0
  %v2991 = vpop.f32.mrb[0].mxu0
  %v2992 = vadd.f32 0.0, %v2991
  %v2993 = vpop.f32.mrb[0].mxu0
  %2994 = vmatprep.mubr.bf16.mxu0 0
  %2995 = vmatmul.mubr.bf16.gmra.mrb[0].mxu0 %v2765
  %v2996 = vpop.f32.mrb[0].mxu0
  %v2997 = vadd.f32 0.0, %v2996
  %v2998 = vpop.f32.mrb[0].mxu0
  %v2999 = vpop.f32.mrb[0].mxu0
  %v3000 = vadd.f32 0.0, %v2999
  %v3001 = vpop.f32.mrb[0].mxu0
  %3002 = vmatprep.mubr.bf16.mxu0 0
  %3003 = vmatmul.mubr.bf16.gmra.mrb[0].mxu0 %v2768
  %v3004 = vpop.f32.mrb[0].mxu0
  %v3005 = vadd.f32 0.0, %v3004
  %v3006 = vpop.f32.mrb[0].mxu0
  %v3007 = vpop.f32.mrb[0].mxu0
  %v3008 = vadd.f32 0.0, %v3007
  %v3009 = vpop.f32.mrb[0].mxu0
  %3010 = vmatprep.mubr.bf16.mxu0 0
  %3011 = vmatmul.mubr.bf16.gmra.mrb[0].mxu0 %v2771
  %v3012 = vpop.f32.mrb[0].mxu0
  %v3013 = vadd.f32 0.0, %v3012
  %v3014 = vpop.f32.mrb[0].mxu0
  %v3015 = vpop.f32.mrb[0].mxu0
  %v3016 = vadd.f32 0.0, %v3015
  %v3017 = vpop.f32.mrb[0].mxu0
  %3018 = vmatprep.mubr.bf16.mxu0 0
  %3019 = vmatmul.mubr.bf16.gmra.mrb[0].mxu0 %v2774
  %v3020 = vpop.f32.mrb[0].mxu0
  %v3021 = vadd.f32 0.0, %v3020
  %v3022 = vpop.f32.mrb[0].mxu0
  %v3023 = vpop.f32.mrb[0].mxu0
  %v3024 = vpop.f32.mrb[0].mxu0
  %3025 = vdwg.mxu0
  %3031 = vrot.lane.b32.xlu0 %v2831, 127
  %v3032 = vpop.permute.xlu0 %3031
  %3033 = vrot.lane.b32.xlu0 %v2833, 127
  %v3034 = vpop.permute.xlu0 %3033
  %3035 = vrot.lane.b32.xlu0 %v2912, 127
  %v3036 = vpop.permute.xlu0 %3035
  %3037 = vrot.lane.b32.xlu0 %v2914, 127
  %v3038 = vpop.permute.xlu0 %3037
  %3039 = vrot.lane.b32.xlu0 %v2992, 127
  %v3040 = vpop.permute.xlu0 %3039
  %v3041 = vsel %vm1071, %v3032, %v3034
  %v3042 = vsel %vm1071, %v3034, %v3036
  %v3043 = vsel %vm1071, %v3036, %v3038
  %v3044 = vsel %vm1071, %v3038, %v3040
  %v3050 = vadd.f32 %v2827, %v3041
  %v3051 = vadd.f32 %v2829, %v3042
  %v3052 = vadd.f32 %v2908, %v3043
  %v3053 = vadd.f32 %v2910, %v3044
  %v3054 = vadd.f32 %v2989, %v3040
  %3060 = vrot.lane.b32.xlu0 %v2841, 106
  %v3061 = vpop.permute.xlu0 %3060
  %3062 = vrot.lane.b32.xlu0 %v2843, 106
  %v3063 = vpop.permute.xlu0 %3062
  %3064 = vrot.lane.b32.xlu0 %v2922, 106
  %v3065 = vpop.permute.xlu0 %3064
  %3066 = vrot.lane.b32.xlu0 %v2924, 106
  %v3067 = vpop.permute.xlu0 %3066
  %3068 = vrot.lane.b32.xlu0 %v3000, 106
  %v3069 = vpop.permute.xlu0 %3068
  %v3070 = vsel %vm1200, %v3061, %v3063
  %v3071 = vsel %vm1200, %v3063, %v3065
  %v3072 = vsel %vm1200, %v3065, %v3067
  %v3073 = vsel %vm1200, %v3067, %v3069
  %v3079 = vadd.f32 %v2837, %v3070
  %v3080 = vadd.f32 %v2839, %v3071
  %v3081 = vadd.f32 %v2918, %v3072
  %v3082 = vadd.f32 %v2920, %v3073
  %v3083 = vadd.f32 %v2997, %v3069
  %3089 = vrot.lane.b32.xlu0 %v2851, 127
  %v3090 = vpop.permute.xlu0 %3089
  %3091 = vrot.lane.b32.xlu0 %v2853, 127
  %v3092 = vpop.permute.xlu0 %3091
  %3093 = vrot.lane.b32.xlu0 %v2932, 127
  %v3094 = vpop.permute.xlu0 %3093
  %3095 = vrot.lane.b32.xlu0 %v2934, 127
  %v3096 = vpop.permute.xlu0 %3095
  %3097 = vrot.lane.b32.xlu0 %v3008, 127
  %v3098 = vpop.permute.xlu0 %3097
  %v3099 = vsel %vm1071, %v3090, %v3092
  %v3100 = vsel %vm1071, %v3092, %v3094
  %v3101 = vsel %vm1071, %v3094, %v3096
  %v3102 = vsel %vm1071, %v3096, %v3098
  %v3108 = vadd.f32 %v2847, %v3099
  %v3109 = vadd.f32 %v2849, %v3100
  %v3110 = vadd.f32 %v2928, %v3101
  %v3111 = vadd.f32 %v2930, %v3102
  %v3112 = vadd.f32 %v3005, %v3098
  %3118 = vrot.lane.b32.xlu0 %v2861, 127
  %v3119 = vpop.permute.xlu0 %3118
  %3120 = vrot.lane.b32.xlu0 %v2863, 127
  %v3121 = vpop.permute.xlu0 %3120
  %3122 = vrot.lane.b32.xlu0 %v2942, 127
  %v3123 = vpop.permute.xlu0 %3122
  %3124 = vrot.lane.b32.xlu0 %v2944, 127
  %v3125 = vpop.permute.xlu0 %3124
  %3126 = vrot.lane.b32.xlu0 %v3016, 127
  %v3127 = vpop.permute.xlu0 %3126
  %v3128 = vsel %vm1071, %v3119, %v3121
  %v3129 = vsel %vm1071, %v3121, %v3123
  %v3130 = vsel %vm1071, %v3123, %v3125
  %v3131 = vsel %vm1071, %v3125, %v3127
  %v3137 = vadd.f32 %v2857, %v3128
  %v3138 = vadd.f32 %v2859, %v3129
  %v3139 = vadd.f32 %v2938, %v3130
  %v3140 = vadd.f32 %v2940, %v3131
  %v3141 = vadd.f32 %v3013, %v3127
  %3147 = vrot.lane.b32.xlu0 %v3079, 126
  %v3148 = vpop.permute.xlu0 %3147
  %3149 = vrot.lane.b32.xlu0 %v3080, 126
  %v3150 = vpop.permute.xlu0 %3149
  %3151 = vrot.lane.b32.xlu0 %v3081, 126
  %v3152 = vpop.permute.xlu0 %3151
  %3153 = vrot.lane.b32.xlu0 %v3082, 126
  %v3154 = vpop.permute.xlu0 %3153
  %3155 = vrot.lane.b32.xlu0 %v3083, 126
  %v3156 = vpop.permute.xlu0 %3155
  %v3157 = vsel %vm1601, %v3148, %v3150
  %v3158 = vsel %vm1601, %v3150, %v3152
  %v3159 = vsel %vm1601, %v3152, %v3154
  %v3160 = vsel %vm1601, %v3154, %v3156
  %v3166 = vadd.f32 %v3050, %v3157
  %v3167 = vadd.f32 %v3051, %v3158
  %v3168 = vadd.f32 %v3052, %v3159
  %v3169 = vadd.f32 %v3053, %v3160
  %v3170 = vadd.f32 %v3054, %v3156
  %3176 = vrot.lane.b32.xlu0 %v3137, 105
  %v3177 = vpop.permute.xlu0 %3176
  %3178 = vrot.lane.b32.xlu0 %v3138, 105
  %v3179 = vpop.permute.xlu0 %3178
  %3180 = vrot.lane.b32.xlu0 %v3139, 105
  %v3181 = vpop.permute.xlu0 %3180
  %3182 = vrot.lane.b32.xlu0 %v3140, 105
  %v3183 = vpop.permute.xlu0 %3182
  %3184 = vrot.lane.b32.xlu0 %v3141, 105
  %v3185 = vpop.permute.xlu0 %3184
  %v3186 = vsel %vm1730, %v3177, %v3179
  %v3187 = vsel %vm1730, %v3179, %v3181
  %v3188 = vsel %vm1730, %v3181, %v3183
  %v3189 = vsel %vm1730, %v3183, %v3185
  %v3195 = vadd.f32 %v3108, %v3186
  %v3196 = vadd.f32 %v3109, %v3187
  %v3197 = vadd.f32 %v3110, %v3188
  %v3198 = vadd.f32 %v3111, %v3189
  %v3199 = vadd.f32 %v3112, %v3185
  %3205 = vrot.lane.b32.xlu0 %v3195, 103
  %v3206 = vpop.permute.xlu0 %3205
  %3207 = vrot.lane.b32.xlu0 %v3196, 103
  %v3208 = vpop.permute.xlu0 %3207
  %3209 = vrot.lane.b32.xlu0 %v3197, 103
  %v3210 = vpop.permute.xlu0 %3209
  %3211 = vrot.lane.b32.xlu0 %v3198, 103
  %v3212 = vpop.permute.xlu0 %3211
  %3213 = vrot.lane.b32.xlu0 %v3199, 103
  %v3214 = vpop.permute.xlu0 %3213
  %v3215 = vsel %vm1871, %v3206, %v3208
  %v3216 = vsel %vm1871, %v3208, %v3210
  %v3217 = vsel %vm1871, %v3210, %v3212
  %v3218 = vsel %vm1871, %v3212, %v3214
  %v3224 = vadd.f32 %v3166, %v3215
  %v3225 = vadd.f32 %v3167, %v3216
  %v3226 = vadd.f32 %v3168, %v3217
  %v3227 = vadd.f32 %v3169, %v3218
  %v3228 = vadd.f32 %v3170, %v3214
  %3234 = vrot.lane.b32.xlu0 %v2867, 78
  %v3235 = vpop.permute.xlu0 %3234
  %3236 = vrot.lane.b32.xlu0 %v2869, 78
  %v3237 = vpop.permute.xlu0 %3236
  %3238 = vrot.lane.b32.xlu0 %v2948, 78
  %v3239 = vpop.permute.xlu0 %3238
  %3240 = vrot.lane.b32.xlu0 %v2950, 78
  %v3241 = vpop.permute.xlu0 %3240
  %3242 = vrot.lane.b32.xlu0 %v3021, 78
  %v3243 = vpop.permute.xlu0 %3242
  %v3244 = vsel %vm2004, %v3235, %v3237
  %v3245 = vsel %vm2004, %v3237, %v3239
  %v3246 = vsel %vm2004, %v3239, %v3241
  %v3247 = vsel %vm2004, %v3241, %v3243
  %v3253 = vadd.f32 %v3224, %v3244
  %v3254 = vadd.f32 %v3225, %v3245
  %v3255 = vadd.f32 %v3226, %v3246
  %v3256 = vadd.f32 %v3227, %v3247
  %v3257 = vadd.f32 %v3228, %v3243
  %3259 = vset.pattern.permute.xlu0 0
  %3260 = vperm.xlu0 %3259, %v92
  %v3261 = vpop.permute.xlu0 %3260
  %v3263 = vadd.f32 %v3253, %v3261
  %v3264 = vadd.f32 %v3254, %v3261
  %v3265 = vadd.f32 %v3255, %v3261
  %v3266 = vadd.f32 %v3256, %v3261
  %v3267 = vadd.f32 %v3257, %v3261
  %v3268 = vtanh.pop %v3263
  %v3269 = vtanh.pop %v3264
  %v3270 = vtanh.pop %v3265
  %v3271 = vtanh.pop %v3266
  %v3272 = vtanh.pop %v3267
  %v3277 = vcombine.low %v3268, %v3269
  %v3278 = vcombine.low %v3270, %v3271
  %3281 = vst [vmem:[%s9] sm:$0x77] %v3277
  %3282 = vst [vmem:[%s9 + $0x8] sm:$0x77] %v3278
  %vm3283 = vcmask 124928
  %3284 = vst.msk [vmem:[%s9 + $0x10] sm:$0x7] %vm3283, %v3272
  %s3285 = scalar_lea.vmem %s0, 192
  %v3286 = vld [vmem:[%s3285] sm:$0xff]
  %v3287 = vld [vmem:[%s3285 + $0x8] sm:$0xff]
  %v3288 = vld [vmem:[%s3285 + $0x10] sm:$0xff]
  %v3289 = vld [vmem:[%s3285 + $0x18] sm:$0xff]
  %v3290 = vld [vmem:[%s3285 + $0x20] sm:$0xff]
  %v3291 = vld [vmem:[%s3285 + $0x28] sm:$0xff]
  %v3292 = vld [vmem:[%s3285 + $0x30] sm:$0xff]
  %v3293 = vld [vmem:[%s3285 + $0x38] sm:$0xff]
  %v3294 = vld [vmem:[%s3285 + $0x40] sm:$0xff]
  %v3295 = vld [vmem:[%s3285 + $0x48] sm:$0xff]
  %v3296 = vld [vmem:[%s3285 + $0x50] sm:$0xff]
  %v3297 = vld [vmem:[%s3285 + $0x58] sm:$0xff]
  %v3298 = vld [vmem:[%s3285 + $0x60] sm:$0xff]
  %v3299 = vld [vmem:[%s3285 + $0x68] sm:$0xff]
  %v3300 = vld [vmem:[%s3285 + $0x70] sm:$0xff]
  %v3301 = vld [vmem:[%s3285 + $0x78] sm:$0xff]
  %v3302 = vld [vmem:[%s3285 + $0x80] sm:$0xff]
  %v3303 = vld [vmem:[%s3285 + $0x88] sm:$0xff]
  %v3304 = vld [vmem:[%s3285 + $0x90] sm:$0xff]
  %v3305 = vld [vmem:[%s3285 + $0x98] sm:$0xff]
  %v3306 = vld [vmem:[%s3285 + $0xa0] sm:$0xff]
  %v3307 = vld [vmem:[%s3285 + $0xa8] sm:$0xff]
  %v3308 = vld [vmem:[%s3285 + $0xb0] sm:$0xff]
  %v3309 = vld [vmem:[%s3285 + $0xb8] sm:$0xff]
  %v3334 = vunpack.c.l.b16 %v3286
  %v3335 = vunpack.c.h.b16 %v3286
  %v3336 = vunpack.c.l.b16 %v3287
  %v3337 = vunpack.c.h.b16 %v3287
  %v3338 = vunpack.c.l.b16 %v3288
  %v3339 = vunpack.c.h.b16 %v3288
  %v3340 = vunpack.c.l.b16 %v3289
  %v3341 = vunpack.c.h.b16 %v3289
  %v3342 = vunpack.c.l.b16 %v3290
  %v3343 = vunpack.c.h.b16 %v3290
  %v3344 = vunpack.c.l.b16 %v3291
  %v3345 = vunpack.c.h.b16 %v3291
  %v3346 = vunpack.c.l.b16 %v3292
  %v3347 = vunpack.c.h.b16 %v3292
  %v3348 = vunpack.c.l.b16 %v3293
  %v3349 = vunpack.c.h.b16 %v3293
  %v3350 = vunpack.c.l.b16 %v3294
  %v3351 = vunpack.c.h.b16 %v3294
  %v3352 = vunpack.c.l.b16 %v3295
  %v3353 = vunpack.c.h.b16 %v3295
  %v3354 = vunpack.c.l.b16 %v3296
  %v3355 = vunpack.c.h.b16 %v3296
  %v3356 = vunpack.c.l.b16 %v3297
  %v3357 = vunpack.c.h.b16 %v3297
  %v3358 = vunpack.c.l.b16 %v3298
  %v3359 = vunpack.c.h.b16 %v3298
  %v3360 = vunpack.c.l.b16 %v3299
  %v3361 = vunpack.c.h.b16 %v3299
  %v3362 = vunpack.c.l.b16 %v3300
  %v3363 = vunpack.c.h.b16 %v3300
  %v3364 = vunpack.c.l.b16 %v3301
  %v3365 = vunpack.c.h.b16 %v3301
  %v3366 = vunpack.c.l.b16 %v3302
  %v3367 = vunpack.c.h.b16 %v3302
  %v3368 = vunpack.c.l.b16 %v3303
  %v3369 = vunpack.c.h.b16 %v3303
  %v3370 = vunpack.c.l.b16 %v3304
  %v3371 = vunpack.c.h.b16 %v3304
  %v3372 = vunpack.c.l.b16 %v3305
  %v3373 = vunpack.c.h.b16 %v3305
  %v3374 = vunpack.c.l.b16 %v3306
  %v3375 = vunpack.c.h.b16 %v3306
  %v3376 = vunpack.c.l.b16 %v3307
  %v3377 = vunpack.c.h.b16 %v3307
  %v3378 = vunpack.c.l.b16 %v3308
  %v3379 = vunpack.c.h.b16 %v3308
  %v3380 = vunpack.c.l.b16 %v3309
  %v3381 = vunpack.c.h.b16 %v3309
  %v3382 = vpack.c.b16 %v3340, %v3334
  %v3383 = vpack.c.b16 %v3341, %v3335
  %v3384 = vpack.c.b16 %v3342, %v3336
  %v3385 = vpack.c.b16 %v3343, %v3337
  %v3386 = vpack.c.b16 %v3344, %v3338
  %v3387 = vpack.c.b16 %v3345, %v3339
  %v3388 = vpack.c.b16 %v3352, %v3346
  %v3389 = vpack.c.b16 %v3353, %v3347
  %v3390 = vpack.c.b16 %v3354, %v3348
  %v3391 = vpack.c.b16 %v3355, %v3349
  %v3392 = vpack.c.b16 %v3356, %v3350
  %v3393 = vpack.c.b16 %v3357, %v3351
  %v3394 = vpack.c.b16 %v3364, %v3358
  %v3395 = vpack.c.b16 %v3365, %v3359
  %v3396 = vpack.c.b16 %v3366, %v3360
  %v3397 = vpack.c.b16 %v3367, %v3361
  %v3398 = vpack.c.b16 %v3368, %v3362
  %v3399 = vpack.c.b16 %v3369, %v3363
  %v3400 = vpack.c.b16 %v3376, %v3370
  %v3401 = vpack.c.b16 %v3377, %v3371
  %v3402 = vpack.c.b16 %v3378, %v3372
  %v3403 = vpack.c.b16 %v3379, %v3373
  %v3404 = vpack.c.b16 %v3380, %v3374
  %v3405 = vpack.c.b16 %v3381, %v3375
  %3430 = vmatprep.subr.bf16.mxu0 %v3383
  %3431 = vmatpush1.bf16.msra.mxu0 %v3382
  %3432 = vmatprep.subr.bf16.mxu0 %v3389
  %3433 = vmatpush1.bf16.msra.mxu0 %v3388
  %3434 = vmatprep.subr.bf16.mxu0 %v3395
  %3435 = vmatpush1.bf16.msra.mxu0 %v3394
  %3436 = vmatprep.subr.bf16.mxu0 %v3401
  %3437 = vmatpush1.bf16.msra.mxu0 %v3400
  %3438 = vmatprep.subr.bf16.mxu0 0
  %3439 = vmatpush1.bf16.msra.mxu0 0
  %3440 = vmatprep.subr.bf16.mxu0 0
  %3441 = vmatpush1.bf16.msra.mxu0 0
  %3442 = vmatprep.subr.bf16.mxu0 0
  %3443 = vmatpush1.bf16.msra.mxu0 0
  %3444 = vmatprep.subr.bf16.mxu0 0
  %3445 = vmatpush1.bf16.msra.mxu0 0
  %3446 = vmatprep.subr.bf16.mxu0 0
  %3447 = vmatpush1.bf16.msra.mxu0 0
  %3448 = vmatprep.subr.bf16.mxu0 0
  %3449 = vmatpush1.bf16.msra.mxu0 0
  %3450 = vmatprep.subr.bf16.mxu0 0
  %3451 = vmatpush1.bf16.msra.mxu0 0
  %3452 = vmatprep.subr.bf16.mxu0 0
  %3453 = vmatpush1.bf16.msra.mxu0 0
  %3454 = vmatprep.subr.bf16.mxu0 0
  %3455 = vmatpush1.bf16.msra.mxu0 0
  %3456 = vmatprep.subr.bf16.mxu0 0
  %3457 = vmatpush1.bf16.msra.mxu0 0
  %3458 = vmatprep.subr.bf16.mxu0 0
  %3459 = vmatpush1.bf16.msra.mxu0 0
  %3460 = vmatprep.subr.bf16.mxu0 0
  %3461 = vmatpush1.bf16.msra.mxu0 0
  %3462 = vmatprep.mubr.bf16.mxu0 0
  %3463 = vmatmul.mubr.bf16.gmra.mrb[0].mxu0 %v331
  %v3464 = vpop.f32.mrb[0].mxu0
  %v3465 = vadd.f32 0.0, %v3464
  %v3466 = vpop.f32.mrb[0].mxu0
  %v3467 = vadd.f32 0.0, %v3466
  %v3468 = vpop.f32.mrb[0].mxu0
  %v3469 = vadd.f32 0.0, %v3468
  %v3470 = vpop.f32.mrb[0].mxu0
  %v3471 = vadd.f32 0.0, %v3470
  %3472 = vmatprep.mubr.bf16.mxu0 0
  %3473 = vmatmul.mubr.bf16.gmra.mrb[0].mxu0 %v334
  %v3474 = vpop.f32.mrb[0].mxu0
  %v3475 = vadd.f32 0.0, %v3474
  %v3476 = vpop.f32.mrb[0].mxu0
  %v3477 = vadd.f32 0.0, %v3476
  %v3478 = vpop.f32.mrb[0].mxu0
  %v3479 = vadd.f32 0.0, %v3478
  %v3480 = vpop.f32.mrb[0].mxu0
  %v3481 = vadd.f32 0.0, %v3480
  %3482 = vmatprep.mubr.bf16.mxu0 0
  %3483 = vmatmul.mubr.bf16.gmra.mrb[0].mxu0 %v337
  %v3484 = vpop.f32.mrb[0].mxu0
  %v3485 = vadd.f32 0.0, %v3484
  %v3486 = vpop.f32.mrb[0].mxu0
  %v3487 = vadd.f32 0.0, %v3486
  %v3488 = vpop.f32.mrb[0].mxu0
  %v3489 = vadd.f32 0.0, %v3488
  %v3490 = vpop.f32.mrb[0].mxu0
  %v3491 = vadd.f32 0.0, %v3490
  %3492 = vmatprep.mubr.bf16.mxu0 0
  %3493 = vmatmul.mubr.bf16.gmra.mrb[0].mxu0 %v340
  %v3494 = vpop.f32.mrb[0].mxu0
  %v3495 = vadd.f32 0.0, %v3494
  %v3496 = vpop.f32.mrb[0].mxu0
  %v3497 = vadd.f32 0.0, %v3496
  %v3498 = vpop.f32.mrb[0].mxu0
  %v3499 = vadd.f32 0.0, %v3498
  %v3500 = vpop.f32.mrb[0].mxu0
  %v3501 = vadd.f32 0.0, %v3500
  %3502 = vmatprep.mubr.bf16.mxu0 0
  %3503 = vmatmul.mubr.bf16.gmra.mrb[0].mxu0 %v343
  %v3504 = vpop.f32.mrb[0].mxu0
  %v3505 = vadd.f32 0.0, %v3504
  %v3506 = vpop.f32.mrb[0].mxu0
  %v3507 = vadd.f32 0.0, %v3506
  %v3508 = vpop.f32.mrb[0].mxu0
  %v3509 = vadd.f32 0.0, %v3508
  %v3510 = vpop.f32.mrb[0].mxu0
  %v3511 = vadd.f32 0.0, %v3510
  %3512 = vmatprep.mubr.bf16.mxu0 0
  %3513 = vmatmul.mubr.bf16.gmra.mrb[0].mxu0 %v346
  %v3514 = vpop.f32.mrb[0].mxu0
  %v3515 = vadd.f32 0.0, %v3514
  %v3516 = vpop.f32.mrb[0].mxu0
  %v3517 = vadd.f32 0.0, %v3516
  %v3518 = vpop.f32.mrb[0].mxu0
  %v3519 = vadd.f32 0.0, %v3518
  %v3520 = vpop.f32.mrb[0].mxu0
  %v3521 = vadd.f32 0.0, %v3520
  %3522 = vmatprep.mubr.bf16.mxu0 0
  %3523 = vmatmul.mubr.bf16.gmra.mrb[0].mxu0 %v349
  %v3524 = vpop.f32.mrb[0].mxu0
  %v3525 = vadd.f32 0.0, %v3524
  %v3526 = vpop.f32.mrb[0].mxu0
  %v3527 = vadd.f32 0.0, %v3526
  %v3528 = vpop.f32.mrb[0].mxu0
  %v3529 = vadd.f32 0.0, %v3528
  %v3530 = vpop.f32.mrb[0].mxu0
  %v3531 = vadd.f32 0.0, %v3530
  %3532 = vmatprep.mubr.bf16.mxu0 0
  %3533 = vmatmul.mubr.bf16.gmra.mrb[0].mxu0 %v352
  %v3534 = vpop.f32.mrb[0].mxu0
  %v3535 = vadd.f32 0.0, %v3534
  %v3536 = vpop.f32.mrb[0].mxu0
  %v3537 = vadd.f32 0.0, %v3536
  %v3538 = vpop.f32.mrb[0].mxu0
  %v3539 = vadd.f32 0.0, %v3538
  %v3540 = vpop.f32.mrb[0].mxu0
  %v3541 = vadd.f32 0.0, %v3540
  %3542 = vmatprep.mubr.bf16.mxu0 0
  %3543 = vmatmul.mubr.bf16.gmra.mrb[0].mxu0 %v355
  %v3544 = vpop.f32.mrb[0].mxu0
  %v3545 = vadd.f32 0.0, %v3544
  %v3546 = vpop.f32.mrb[0].mxu0
  %v3547 = vadd.f32 0.0, %v3546
  %v3548 = vpop.f32.mrb[0].mxu0
  %v3549 = vadd.f32 0.0, %v3548
  %v3550 = vpop.f32.mrb[0].mxu0
  %v3551 = vadd.f32 0.0, %v3550
  %3552 = vmatprep.mubr.bf16.mxu0 0
  %3553 = vmatmul.mubr.bf16.gmra.mrb[0].mxu0 %v358
  %v3554 = vpop.f32.mrb[0].mxu0
  %v3555 = vadd.f32 0.0, %v3554
  %v3556 = vpop.f32.mrb[0].mxu0
  %v3557 = vadd.f32 0.0, %v3556
  %v3558 = vpop.f32.mrb[0].mxu0
  %v3559 = vadd.f32 0.0, %v3558
  %v3560 = vpop.f32.mrb[0].mxu0
  %v3561 = vadd.f32 0.0, %v3560
  %3562 = vmatprep.mubr.bf16.mxu0 0
  %3563 = vmatmul.mubr.bf16.gmra.mrb[0].mxu0 %v361
  %v3564 = vpop.f32.mrb[0].mxu0
  %v3565 = vadd.f32 0.0, %v3564
  %v3566 = vpop.f32.mrb[0].mxu0
  %v3567 = vadd.f32 0.0, %v3566
  %v3568 = vpop.f32.mrb[0].mxu0
  %v3569 = vadd.f32 0.0, %v3568
  %v3570 = vpop.f32.mrb[0].mxu0
  %v3571 = vadd.f32 0.0, %v3570
  %3572 = vmatprep.mubr.bf16.mxu0 0
  %3573 = vmatmul.mubr.bf16.gmra.mrb[0].mxu0 %v364
  %v3574 = vpop.f32.mrb[0].mxu0
  %v3575 = vadd.f32 0.0, %v3574
  %v3576 = vpop.f32.mrb[0].mxu0
  %v3577 = vadd.f32 0.0, %v3576
  %v3578 = vpop.f32.mrb[0].mxu0
  %v3579 = vadd.f32 0.0, %v3578
  %v3580 = vpop.f32.mrb[0].mxu0
  %v3581 = vadd.f32 0.0, %v3580
  %3582 = vmatprep.mubr.bf16.mxu0 0
  %3583 = vmatmul.mubr.bf16.gmra.mrb[0].mxu0 %v367
  %v3584 = vpop.f32.mrb[0].mxu0
  %v3585 = vadd.f32 0.0, %v3584
  %v3586 = vpop.f32.mrb[0].mxu0
  %v3587 = vadd.f32 0.0, %v3586
  %v3588 = vpop.f32.mrb[0].mxu0
  %v3589 = vadd.f32 0.0, %v3588
  %v3590 = vpop.f32.mrb[0].mxu0
  %v3591 = vadd.f32 0.0, %v3590
  %3592 = vmatprep.mubr.bf16.mxu0 0
  %3593 = vmatmul.mubr.bf16.gmra.mrb[0].mxu0 %v370
  %v3594 = vpop.f32.mrb[0].mxu0
  %v3595 = vadd.f32 0.0, %v3594
  %v3596 = vpop.f32.mrb[0].mxu0
  %v3597 = vadd.f32 0.0, %v3596
  %v3598 = vpop.f32.mrb[0].mxu0
  %v3599 = vadd.f32 0.0, %v3598
  %v3600 = vpop.f32.mrb[0].mxu0
  %v3601 = vadd.f32 0.0, %v3600
  %3602 = vmatprep.mubr.bf16.mxu0 0
  %3603 = vmatmul.mubr.bf16.gmra.mrb[0].mxu0 %v373
  %v3604 = vpop.f32.mrb[0].mxu0
  %v3605 = vadd.f32 0.0, %v3604
  %v3606 = vpop.f32.mrb[0].mxu0
  %v3607 = vadd.f32 0.0, %v3606
  %v3608 = vpop.f32.mrb[0].mxu0
  %v3609 = vadd.f32 0.0, %v3608
  %v3610 = vpop.f32.mrb[0].mxu0
  %v3611 = vadd.f32 0.0, %v3610
  %3612 = vmatprep.mubr.bf16.mxu0 0
  %3613 = vmatmul.mubr.bf16.gmra.mrb[0].mxu0 %v376
  %v3614 = vpop.f32.mrb[0].mxu0
  %v3615 = vadd.f32 0.0, %v3614
  %v3616 = vpop.f32.mrb[0].mxu0
  %v3617 = vadd.f32 0.0, %v3616
  %v3618 = vpop.f32.mrb[0].mxu0
  %v3619 = vadd.f32 0.0, %v3618
  %v3620 = vpop.f32.mrb[0].mxu0
  %v3621 = vadd.f32 0.0, %v3620
  %3622 = vmatprep.mubr.bf16.mxu0 0
  %3623 = vmatmul.mubr.bf16.gmra.mrb[0].mxu0 %v379
  %v3624 = vpop.f32.mrb[0].mxu0
  %v3625 = vadd.f32 0.0, %v3624
  %v3626 = vpop.f32.mrb[0].mxu0
  %v3627 = vadd.f32 0.0, %v3626
  %v3628 = vpop.f32.mrb[0].mxu0
  %v3629 = vadd.f32 0.0, %v3628
  %v3630 = vpop.f32.mrb[0].mxu0
  %v3631 = vadd.f32 0.0, %v3630
  %3632 = vmatprep.mubr.bf16.mxu0 0
  %3633 = vmatmul.mubr.bf16.gmra.mrb[0].mxu0 %v382
  %v3634 = vpop.f32.mrb[0].mxu0
  %v3635 = vadd.f32 0.0, %v3634
  %v3636 = vpop.f32.mrb[0].mxu0
  %v3637 = vadd.f32 0.0, %v3636
  %v3638 = vpop.f32.mrb[0].mxu0
  %v3639 = vadd.f32 0.0, %v3638
  %v3640 = vpop.f32.mrb[0].mxu0
  %v3641 = vadd.f32 0.0, %v3640
  %3642 = vdwg.mxu0
  %3643 = vmatprep.subr.bf16.mxu0 %v3385
  %3644 = vmatpush1.bf16.msra.mxu0 %v3384
  %3645 = vmatprep.subr.bf16.mxu0 %v3391
  %3646 = vmatpush1.bf16.msra.mxu0 %v3390
  %3647 = vmatprep.subr.bf16.mxu0 %v3397
  %3648 = vmatpush1.bf16.msra.mxu0 %v3396
  %3649 = vmatprep.subr.bf16.mxu0 %v3403
  %3650 = vmatpush1.bf16.msra.mxu0 %v3402
  %3651 = vmatprep.subr.bf16.mxu0 0
  %3652 = vmatpush1.bf16.msra.mxu0 0
  %3653 = vmatprep.subr.bf16.mxu0 0
  %3654 = vmatpush1.bf16.msra.mxu0 0
  %3655 = vmatprep.subr.bf16.mxu0 0
  %3656 = vmatpush1.bf16.msra.mxu0 0
  %3657 = vmatprep.subr.bf16.mxu0 0
  %3658 = vmatpush1.bf16.msra.mxu0 0
  %3659 = vmatprep.subr.bf16.mxu0 0
  %3660 = vmatpush1.bf16.msra.mxu0 0
  %3661 = vmatprep.subr.bf16.mxu0 0
  %3662 = vmatpush1.bf16.msra.mxu0 0
  %3663 = vmatprep.subr.bf16.mxu0 0
  %3664 = vmatpush1.bf16.msra.mxu0 0
  %3665 = vmatprep.subr.bf16.mxu0 0
  %3666 = vmatpush1.bf16.msra.mxu0 0
  %3667 = vmatprep.subr.bf16.mxu0 0
  %3668 = vmatpush1.bf16.msra.mxu0 0
  %3669 = vmatprep.subr.bf16.mxu0 0
  %3670 = vmatpush1.bf16.msra.mxu0 0
  %3671 = vmatprep.subr.bf16.mxu0 0
  %3672 = vmatpush1.bf16.msra.mxu0 0
  %3673 = vmatprep.subr.bf16.mxu0 0
  %3674 = vmatpush1.bf16.msra.mxu0 0
  %3675 = vmatprep.mubr.bf16.mxu0 0
  %3676 = vmatmul.mubr.bf16.gmra.mrb[0].mxu0 %v331
  %v3677 = vpop.f32.mrb[0].mxu0
  %v3678 = vadd.f32 0.0, %v3677
  %v3679 = vpop.f32.mrb[0].mxu0
  %v3680 = vadd.f32 0.0, %v3679
  %v3681 = vpop.f32.mrb[0].mxu0
  %v3682 = vadd.f32 0.0, %v3681
  %v3683 = vpop.f32.mrb[0].mxu0
  %v3684 = vadd.f32 0.0, %v3683
  %3685 = vmatprep.mubr.bf16.mxu0 0
  %3686 = vmatmul.mubr.bf16.gmra.mrb[0].mxu0 %v334
  %v3687 = vpop.f32.mrb[0].mxu0
  %v3688 = vadd.f32 0.0, %v3687
  %v3689 = vpop.f32.mrb[0].mxu0
  %v3690 = vadd.f32 0.0, %v3689
  %v3691 = vpop.f32.mrb[0].mxu0
  %v3692 = vadd.f32 0.0, %v3691
  %v3693 = vpop.f32.mrb[0].mxu0
  %v3694 = vadd.f32 0.0, %v3693
  %3695 = vmatprep.mubr.bf16.mxu0 0
  %3696 = vmatmul.mubr.bf16.gmra.mrb[0].mxu0 %v337
  %v3697 = vpop.f32.mrb[0].mxu0
  %v3698 = vadd.f32 0.0, %v3697
  %v3699 = vpop.f32.mrb[0].mxu0
  %v3700 = vadd.f32 0.0, %v3699
  %v3701 = vpop.f32.mrb[0].mxu0
  %v3702 = vadd.f32 0.0, %v3701
  %v3703 = vpop.f32.mrb[0].mxu0
  %v3704 = vadd.f32 0.0, %v3703
  %3705 = vmatprep.mubr.bf16.mxu0 0
  %3706 = vmatmul.mubr.bf16.gmra.mrb[0].mxu0 %v340
  %v3707 = vpop.f32.mrb[0].mxu0
  %v3708 = vadd.f32 0.0, %v3707
  %v3709 = vpop.f32.mrb[0].mxu0
  %v3710 = vadd.f32 0.0, %v3709
  %v3711 = vpop.f32.mrb[0].mxu0
  %v3712 = vadd.f32 0.0, %v3711
  %v3713 = vpop.f32.mrb[0].mxu0
  %v3714 = vadd.f32 0.0, %v3713
  %3715 = vmatprep.mubr.bf16.mxu0 0
  %3716 = vmatmul.mubr.bf16.gmra.mrb[0].mxu0 %v343
  %v3717 = vpop.f32.mrb[0].mxu0
  %v3718 = vadd.f32 0.0, %v3717
  %v3719 = vpop.f32.mrb[0].mxu0
  %v3720 = vadd.f32 0.0, %v3719
  %v3721 = vpop.f32.mrb[0].mxu0
  %v3722 = vadd.f32 0.0, %v3721
  %v3723 = vpop.f32.mrb[0].mxu0
  %v3724 = vadd.f32 0.0, %v3723
  %3725 = vmatprep.mubr.bf16.mxu0 0
  %3726 = vmatmul.mubr.bf16.gmra.mrb[0].mxu0 %v346
  %v3727 = vpop.f32.mrb[0].mxu0
  %v3728 = vadd.f32 0.0, %v3727
  %v3729 = vpop.f32.mrb[0].mxu0
  %v3730 = vadd.f32 0.0, %v3729
  %v3731 = vpop.f32.mrb[0].mxu0
  %v3732 = vadd.f32 0.0, %v3731
  %v3733 = vpop.f32.mrb[0].mxu0
  %v3734 = vadd.f32 0.0, %v3733
  %3735 = vmatprep.mubr.bf16.mxu0 0
  %3736 = vmatmul.mubr.bf16.gmra.mrb[0].mxu0 %v349
  %v3737 = vpop.f32.mrb[0].mxu0
  %v3738 = vadd.f32 0.0, %v3737
  %v3739 = vpop.f32.mrb[0].mxu0
  %v3740 = vadd.f32 0.0, %v3739
  %v3741 = vpop.f32.mrb[0].mxu0
  %v3742 = vadd.f32 0.0, %v3741
  %v3743 = vpop.f32.mrb[0].mxu0
  %v3744 = vadd.f32 0.0, %v3743
  %3745 = vmatprep.mubr.bf16.mxu0 0
  %3746 = vmatmul.mubr.bf16.gmra.mrb[0].mxu0 %v352
  %v3747 = vpop.f32.mrb[0].mxu0
  %v3748 = vadd.f32 0.0, %v3747
  %v3749 = vpop.f32.mrb[0].mxu0
  %v3750 = vadd.f32 0.0, %v3749
  %v3751 = vpop.f32.mrb[0].mxu0
  %v3752 = vadd.f32 0.0, %v3751
  %v3753 = vpop.f32.mrb[0].mxu0
  %v3754 = vadd.f32 0.0, %v3753
  %3755 = vmatprep.mubr.bf16.mxu0 0
  %3756 = vmatmul.mubr.bf16.gmra.mrb[0].mxu0 %v355
  %v3757 = vpop.f32.mrb[0].mxu0
  %v3758 = vadd.f32 0.0, %v3757
  %v3759 = vpop.f32.mrb[0].mxu0
  %v3760 = vadd.f32 0.0, %v3759
  %v3761 = vpop.f32.mrb[0].mxu0
  %v3762 = vadd.f32 0.0, %v3761
  %v3763 = vpop.f32.mrb[0].mxu0
  %v3764 = vadd.f32 0.0, %v3763
  %3765 = vmatprep.mubr.bf16.mxu0 0
  %3766 = vmatmul.mubr.bf16.gmra.mrb[0].mxu0 %v358
  %v3767 = vpop.f32.mrb[0].mxu0
  %v3768 = vadd.f32 0.0, %v3767
  %v3769 = vpop.f32.mrb[0].mxu0
  %v3770 = vadd.f32 0.0, %v3769
  %v3771 = vpop.f32.mrb[0].mxu0
  %v3772 = vadd.f32 0.0, %v3771
  %v3773 = vpop.f32.mrb[0].mxu0
  %v3774 = vadd.f32 0.0, %v3773
  %3775 = vmatprep.mubr.bf16.mxu0 0
  %3776 = vmatmul.mubr.bf16.gmra.mrb[0].mxu0 %v361
  %v3777 = vpop.f32.mrb[0].mxu0
  %v3778 = vadd.f32 0.0, %v3777
  %v3779 = vpop.f32.mrb[0].mxu0
  %v3780 = vadd.f32 0.0, %v3779
  %v3781 = vpop.f32.mrb[0].mxu0
  %v3782 = vadd.f32 0.0, %v3781
  %v3783 = vpop.f32.mrb[0].mxu0
  %v3784 = vadd.f32 0.0, %v3783
  %3785 = vmatprep.mubr.bf16.mxu0 0
  %3786 = vmatmul.mubr.bf16.gmra.mrb[0].mxu0 %v364
  %v3787 = vpop.f32.mrb[0].mxu0
  %v3788 = vadd.f32 0.0, %v3787
  %v3789 = vpop.f32.mrb[0].mxu0
  %v3790 = vadd.f32 0.0, %v3789
  %v3791 = vpop.f32.mrb[0].mxu0
  %v3792 = vadd.f32 0.0, %v3791
  %v3793 = vpop.f32.mrb[0].mxu0
  %v3794 = vadd.f32 0.0, %v3793
  %3795 = vmatprep.mubr.bf16.mxu0 0
  %3796 = vmatmul.mubr.bf16.gmra.mrb[0].mxu0 %v367
  %v3797 = vpop.f32.mrb[0].mxu0
  %v3798 = vadd.f32 0.0, %v3797
  %v3799 = vpop.f32.mrb[0].mxu0
  %v3800 = vadd.f32 0.0, %v3799
  %v3801 = vpop.f32.mrb[0].mxu0
  %v3802 = vadd.f32 0.0, %v3801
  %v3803 = vpop.f32.mrb[0].mxu0
  %v3804 = vadd.f32 0.0, %v3803
  %3805 = vmatprep.mubr.bf16.mxu0 0
  %3806 = vmatmul.mubr.bf16.gmra.mrb[0].mxu0 %v370
  %v3807 = vpop.f32.mrb[0].mxu0
  %v3808 = vadd.f32 0.0, %v3807
  %v3809 = vpop.f32.mrb[0].mxu0
  %v3810 = vadd.f32 0.0, %v3809
  %v3811 = vpop.f32.mrb[0].mxu0
  %v3812 = vadd.f32 0.0, %v3811
  %v3813 = vpop.f32.mrb[0].mxu0
  %v3814 = vadd.f32 0.0, %v3813
  %3815 = vmatprep.mubr.bf16.mxu0 0
  %3816 = vmatmul.mubr.bf16.gmra.mrb[0].mxu0 %v373
  %v3817 = vpop.f32.mrb[0].mxu0
  %v3818 = vadd.f32 0.0, %v3817
  %v3819 = vpop.f32.mrb[0].mxu0
  %v3820 = vadd.f32 0.0, %v3819
  %v3821 = vpop.f32.mrb[0].mxu0
  %v3822 = vadd.f32 0.0, %v3821
  %v3823 = vpop.f32.mrb[0].mxu0
  %v3824 = vadd.f32 0.0, %v3823
  %3825 = vmatprep.mubr.bf16.mxu0 0
  %3826 = vmatmul.mubr.bf16.gmra.mrb[0].mxu0 %v376
  %v3827 = vpop.f32.mrb[0].mxu0
  %v3828 = vadd.f32 0.0, %v3827
  %v3829 = vpop.f32.mrb[0].mxu0
  %v3830 = vadd.f32 0.0, %v3829
  %v3831 = vpop.f32.mrb[0].mxu0
  %v3832 = vadd.f32 0.0, %v3831
  %v3833 = vpop.f32.mrb[0].mxu0
  %v3834 = vadd.f32 0.0, %v3833
  %3835 = vmatprep.mubr.bf16.mxu0 0
  %3836 = vmatmul.mubr.bf16.gmra.mrb[0].mxu0 %v379
  %v3837 = vpop.f32.mrb[0].mxu0
  %v3838 = vadd.f32 0.0, %v3837
  %v3839 = vpop.f32.mrb[0].mxu0
  %v3840 = vadd.f32 0.0, %v3839
  %v3841 = vpop.f32.mrb[0].mxu0
  %v3842 = vadd.f32 0.0, %v3841
  %v3843 = vpop.f32.mrb[0].mxu0
  %v3844 = vadd.f32 0.0, %v3843
  %3845 = vmatprep.mubr.bf16.mxu0 0
  %3846 = vmatmul.mubr.bf16.gmra.mrb[0].mxu0 %v382
  %v3847 = vpop.f32.mrb[0].mxu0
  %v3848 = vadd.f32 0.0, %v3847
  %v3849 = vpop.f32.mrb[0].mxu0
  %v3850 = vadd.f32 0.0, %v3849
  %v3851 = vpop.f32.mrb[0].mxu0
  %v3852 = vadd.f32 0.0, %v3851
  %v3853 = vpop.f32.mrb[0].mxu0
  %v3854 = vadd.f32 0.0, %v3853
  %3855 = vdwg.mxu0
  %3856 = vmatprep.subr.bf16.mxu0 %v3387
  %3857 = vmatpush1.bf16.msra.mxu0 %v3386
  %3858 = vmatprep.subr.bf16.mxu0 %v3393
  %3859 = vmatpush1.bf16.msra.mxu0 %v3392
  %3860 = vmatprep.subr.bf16.mxu0 %v3399
  %3861 = vmatpush1.bf16.msra.mxu0 %v3398
  %3862 = vmatprep.subr.bf16.mxu0 %v3405
  %3863 = vmatpush1.bf16.msra.mxu0 %v3404
  %3864 = vmatprep.subr.bf16.mxu0 0
  %3865 = vmatpush1.bf16.msra.mxu0 0
  %3866 = vmatprep.subr.bf16.mxu0 0
  %3867 = vmatpush1.bf16.msra.mxu0 0
  %3868 = vmatprep.subr.bf16.mxu0 0
  %3869 = vmatpush1.bf16.msra.mxu0 0
  %3870 = vmatprep.subr.bf16.mxu0 0
  %3871 = vmatpush1.bf16.msra.mxu0 0
  %3872 = vmatprep.subr.bf16.mxu0 0
  %3873 = vmatpush1.bf16.msra.mxu0 0
  %3874 = vmatprep.subr.bf16.mxu0 0
  %3875 = vmatpush1.bf16.msra.mxu0 0
  %3876 = vmatprep.subr.bf16.mxu0 0
  %3877 = vmatpush1.bf16.msra.mxu0 0
  %3878 = vmatprep.subr.bf16.mxu0 0
  %3879 = vmatpush1.bf16.msra.mxu0 0
  %3880 = vmatprep.subr.bf16.mxu0 0
  %3881 = vmatpush1.bf16.msra.mxu0 0
  %3882 = vmatprep.subr.bf16.mxu0 0
  %3883 = vmatpush1.bf16.msra.mxu0 0
  %3884 = vmatprep.subr.bf16.mxu0 0
  %3885 = vmatpush1.bf16.msra.mxu0 0
  %3886 = vmatprep.subr.bf16.mxu0 0
  %3887 = vmatpush1.bf16.msra.mxu0 0
  %3888 = vmatprep.mubr.bf16.mxu0 0
  %3889 = vmatmul.mubr.bf16.gmra.mrb[0].mxu0 %v331
  %v3890 = vpop.f32.mrb[0].mxu0
  %v3891 = vadd.f32 0.0, %v3890
  %v3892 = vpop.f32.mrb[0].mxu0
  %v3893 = vpop.f32.mrb[0].mxu0
  %v3894 = vadd.f32 0.0, %v3893
  %v3895 = vpop.f32.mrb[0].mxu0
  %3896 = vmatprep.mubr.bf16.mxu0 0
  %3897 = vmatmul.mubr.bf16.gmra.mrb[0].mxu0 %v334
  %v3898 = vpop.f32.mrb[0].mxu0
  %v3899 = vadd.f32 0.0, %v3898
  %v3900 = vpop.f32.mrb[0].mxu0
  %v3901 = vpop.f32.mrb[0].mxu0
  %v3902 = vadd.f32 0.0, %v3901
  %v3903 = vpop.f32.mrb[0].mxu0
  %3904 = vmatprep.mubr.bf16.mxu0 0
  %3905 = vmatmul.mubr.bf16.gmra.mrb[0].mxu0 %v337
  %v3906 = vpop.f32.mrb[0].mxu0
  %v3907 = vadd.f32 0.0, %v3906
  %v3908 = vpop.f32.mrb[0].mxu0
  %v3909 = vpop.f32.mrb[0].mxu0
  %v3910 = vadd.f32 0.0, %v3909
  %v3911 = vpop.f32.mrb[0].mxu0
  %3912 = vmatprep.mubr.bf16.mxu0 0
  %3913 = vmatmul.mubr.bf16.gmra.mrb[0].mxu0 %v340
  %v3914 = vpop.f32.mrb[0].mxu0
  %v3915 = vadd.f32 0.0, %v3914
  %v3916 = vpop.f32.mrb[0].mxu0
  %v3917 = vpop.f32.mrb[0].mxu0
  %v3918 = vadd.f32 0.0, %v3917
  %v3919 = vpop.f32.mrb[0].mxu0
  %3920 = vmatprep.mubr.bf16.mxu0 0
  %3921 = vmatmul.mubr.bf16.gmra.mrb[0].mxu0 %v343
  %v3922 = vpop.f32.mrb[0].mxu0
  %v3923 = vadd.f32 0.0, %v3922
  %v3924 = vpop.f32.mrb[0].mxu0
  %v3925 = vpop.f32.mrb[0].mxu0
  %v3926 = vadd.f32 0.0, %v3925
  %v3927 = vpop.f32.mrb[0].mxu0
  %3928 = vmatprep.mubr.bf16.mxu0 0
  %3929 = vmatmul.mubr.bf16.gmra.mrb[0].mxu0 %v346
  %v3930 = vpop.f32.mrb[0].mxu0
  %v3931 = vadd.f32 0.0, %v3930
  %v3932 = vpop.f32.mrb[0].mxu0
  %v3933 = vpop.f32.mrb[0].mxu0
  %v3934 = vadd.f32 0.0, %v3933
  %v3935 = vpop.f32.mrb[0].mxu0
  %3936 = vmatprep.mubr.bf16.mxu0 0
  %3937 = vmatmul.mubr.bf16.gmra.mrb[0].mxu0 %v349
  %v3938 = vpop.f32.mrb[0].mxu0
  %v3939 = vadd.f32 0.0, %v3938
  %v3940 = vpop.f32.mrb[0].mxu0
  %v3941 = vadd.f32 0.0, %v3940
  %v3942 = vpop.f32.mrb[0].mxu0
  %v3943 = vadd.f32 0.0, %v3942
  %v3944 = vpop.f32.mrb[0].mxu0
  %v3945 = vadd.f32 0.0, %v3944
  %3946 = vmatprep.mubr.bf16.mxu0 0
  %3947 = vmatmul.mubr.bf16.gmra.mrb[0].mxu0 %v352
  %v3948 = vpop.f32.mrb[0].mxu0
  %v3949 = vadd.f32 0.0, %v3948
  %v3950 = vpop.f32.mrb[0].mxu0
  %v3951 = vadd.f32 0.0, %v3950
  %v3952 = vpop.f32.mrb[0].mxu0
  %v3953 = vadd.f32 0.0, %v3952
  %v3954 = vpop.f32.mrb[0].mxu0
  %v3955 = vadd.f32 0.0, %v3954
  %3956 = vmatprep.mubr.bf16.mxu0 0
  %3957 = vmatmul.mubr.bf16.gmra.mrb[0].mxu0 %v355
  %v3958 = vpop.f32.mrb[0].mxu0
  %v3959 = vadd.f32 0.0, %v3958
  %v3960 = vpop.f32.mrb[0].mxu0
  %v3961 = vadd.f32 0.0, %v3960
  %v3962 = vpop.f32.mrb[0].mxu0
  %v3963 = vadd.f32 0.0, %v3962
  %v3964 = vpop.f32.mrb[0].mxu0
  %v3965 = vadd.f32 0.0, %v3964
  %3966 = vmatprep.mubr.bf16.mxu0 0
  %3967 = vmatmul.mubr.bf16.gmra.mrb[0].mxu0 %v358
  %v3968 = vpop.f32.mrb[0].mxu0
  %v3969 = vadd.f32 0.0, %v3968
  %v3970 = vpop.f32.mrb[0].mxu0
  %v3971 = vadd.f32 0.0, %v3970
  %v3972 = vpop.f32.mrb[0].mxu0
  %v3973 = vadd.f32 0.0, %v3972
  %v3974 = vpop.f32.mrb[0].mxu0
  %v3975 = vadd.f32 0.0, %v3974
  %3976 = vmatprep.mubr.bf16.mxu0 0
  %3977 = vmatmul.mubr.bf16.gmra.mrb[0].mxu0 %v361
  %v3978 = vpop.f32.mrb[0].mxu0
  %v3979 = vadd.f32 0.0, %v3978
  %v3980 = vpop.f32.mrb[0].mxu0
  %v3981 = vadd.f32 0.0, %v3980
  %v3982 = vpop.f32.mrb[0].mxu0
  %v3983 = vadd.f32 0.0, %v3982
  %v3984 = vpop.f32.mrb[0].mxu0
  %v3985 = vadd.f32 0.0, %v3984
  %3986 = vmatprep.mubr.bf16.mxu0 0
  %3987 = vmatmul.mubr.bf16.gmra.mrb[0].mxu0 %v364
  %v3988 = vpop.f32.mrb[0].mxu0
  %v3989 = vadd.f32 0.0, %v3988
  %v3990 = vpop.f32.mrb[0].mxu0
  %v3991 = vadd.f32 0.0, %v3990
  %v3992 = vpop.f32.mrb[0].mxu0
  %v3993 = vadd.f32 0.0, %v3992
  %v3994 = vpop.f32.mrb[0].mxu0
  %v3995 = vadd.f32 0.0, %v3994
  %3996 = vmatprep.mubr.bf16.mxu0 0
  %3997 = vmatmul.mubr.bf16.gmra.mrb[0].mxu0 %v367
  %v3998 = vpop.f32.mrb[0].mxu0
  %v3999 = vadd.f32 0.0, %v3998
  %v4000 = vpop.f32.mrb[0].mxu0
  %v4001 = vadd.f32 0.0, %v4000
  %v4002 = vpop.f32.mrb[0].mxu0
  %v4003 = vadd.f32 0.0, %v4002
  %v4004 = vpop.f32.mrb[0].mxu0
  %v4005 = vadd.f32 0.0, %v4004
  %4006 = vmatprep.mubr.bf16.mxu0 0
  %4007 = vmatmul.mubr.bf16.gmra.mrb[0].mxu0 %v370
  %v4008 = vpop.f32.mrb[0].mxu0
  %v4009 = vadd.f32 0.0, %v4008
  %v4010 = vpop.f32.mrb[0].mxu0
  %v4011 = vadd.f32 0.0, %v4010
  %v4012 = vpop.f32.mrb[0].mxu0
  %v4013 = vadd.f32 0.0, %v4012
  %v4014 = vpop.f32.mrb[0].mxu0
  %v4015 = vadd.f32 0.0, %v4014
  %4016 = vmatprep.mubr.bf16.mxu0 0
  %4017 = vmatmul.mubr.bf16.gmra.mrb[0].mxu0 %v373
  %v4018 = vpop.f32.mrb[0].mxu0
  %v4019 = vadd.f32 0.0, %v4018
  %v4020 = vpop.f32.mrb[0].mxu0
  %v4021 = vadd.f32 0.0, %v4020
  %v4022 = vpop.f32.mrb[0].mxu0
  %v4023 = vadd.f32 0.0, %v4022
  %v4024 = vpop.f32.mrb[0].mxu0
  %v4025 = vadd.f32 0.0, %v4024
  %4026 = vmatprep.mubr.bf16.mxu0 0
  %4027 = vmatmul.mubr.bf16.gmra.mrb[0].mxu0 %v376
  %v4028 = vpop.f32.mrb[0].mxu0
  %v4029 = vadd.f32 0.0, %v4028
  %v4030 = vpop.f32.mrb[0].mxu0
  %v4031 = vadd.f32 0.0, %v4030
  %v4032 = vpop.f32.mrb[0].mxu0
  %v4033 = vadd.f32 0.0, %v4032
  %v4034 = vpop.f32.mrb[0].mxu0
  %v4035 = vadd.f32 0.0, %v4034
  %4036 = vmatprep.mubr.bf16.mxu0 0
  %4037 = vmatmul.mubr.bf16.gmra.mrb[0].mxu0 %v379
  %v4038 = vpop.f32.mrb[0].mxu0
  %v4039 = vadd.f32 0.0, %v4038
  %v4040 = vpop.f32.mrb[0].mxu0
  %v4041 = vadd.f32 0.0, %v4040
  %v4042 = vpop.f32.mrb[0].mxu0
  %v4043 = vadd.f32 0.0, %v4042
  %v4044 = vpop.f32.mrb[0].mxu0
  %v4045 = vadd.f32 0.0, %v4044
  %4046 = vmatprep.mubr.bf16.mxu0 0
  %4047 = vmatmul.mubr.bf16.gmra.mrb[0].mxu0 %v382
  %v4048 = vpop.f32.mrb[0].mxu0
  %v4049 = vadd.f32 0.0, %v4048
  %v4050 = vpop.f32.mrb[0].mxu0
  %v4051 = vadd.f32 0.0, %v4050
  %v4052 = vpop.f32.mrb[0].mxu0
  %v4053 = vadd.f32 0.0, %v4052
  %v4054 = vpop.f32.mrb[0].mxu0
  %v4055 = vadd.f32 0.0, %v4054
  %4056 = vdwg.mxu0
  %4077 = vrot.lane.b32.xlu0 %v3485, 127
  %v4078 = vpop.permute.xlu0 %4077
  %4079 = vrot.lane.b32.xlu0 %v3487, 127
  %v4080 = vpop.permute.xlu0 %4079
  %4081 = vrot.lane.b32.xlu0 %v3698, 127
  %v4082 = vpop.permute.xlu0 %4081
  %4083 = vrot.lane.b32.xlu0 %v3700, 127
  %v4084 = vpop.permute.xlu0 %4083
  %4085 = vrot.lane.b32.xlu0 %v3907, 127
  %v4086 = vpop.permute.xlu0 %4085
  %4087 = vrot.lane.b32.xlu0 %v3489, 127
  %v4088 = vpop.permute.xlu0 %4087
  %4089 = vrot.lane.b32.xlu0 %v3491, 127
  %v4090 = vpop.permute.xlu0 %4089
  %4091 = vrot.lane.b32.xlu0 %v3702, 127
  %v4092 = vpop.permute.xlu0 %4091
  %4093 = vrot.lane.b32.xlu0 %v3704, 127
  %v4094 = vpop.permute.xlu0 %4093
  %4095 = vrot.lane.b32.xlu0 %v3910, 127
  %v4096 = vpop.permute.xlu0 %4095
  %4097 = vrot.lane.b32.xlu0 %v3495, 127
  %v4098 = vpop.permute.xlu0 %4097
  %4099 = vrot.lane.b32.xlu0 %v3497, 127
  %v4100 = vpop.permute.xlu0 %4099
  %4101 = vrot.lane.b32.xlu0 %v3708, 127
  %v4102 = vpop.permute.xlu0 %4101
  %4103 = vrot.lane.b32.xlu0 %v3710, 127
  %v4104 = vpop.permute.xlu0 %4103
  %4105 = vrot.lane.b32.xlu0 %v3915, 127
  %v4106 = vpop.permute.xlu0 %4105
  %4107 = vrot.lane.b32.xlu0 %v3499, 127
  %v4108 = vpop.permute.xlu0 %4107
  %4109 = vrot.lane.b32.xlu0 %v3501, 127
  %v4110 = vpop.permute.xlu0 %4109
  %4111 = vrot.lane.b32.xlu0 %v3712, 127
  %v4112 = vpop.permute.xlu0 %4111
  %4113 = vrot.lane.b32.xlu0 %v3714, 127
  %v4114 = vpop.permute.xlu0 %4113
  %4115 = vrot.lane.b32.xlu0 %v3918, 127
  %v4116 = vpop.permute.xlu0 %4115
  %v4117 = vsel %vm1071, %v4078, %v4080
  %v4118 = vsel %vm1071, %v4080, %v4082
  %v4119 = vsel %vm1071, %v4082, %v4084
  %v4120 = vsel %vm1071, %v4084, %v4086
  %v4121 = vsel %vm1071, %v4088, %v4090
  %v4122 = vsel %vm1071, %v4090, %v4092
  %v4123 = vsel %vm1071, %v4092, %v4094
  %v4124 = vsel %vm1071, %v4094, %v4096
  %v4125 = vsel %vm1071, %v4098, %v4100
  %v4126 = vsel %vm1071, %v4100, %v4102
  %v4127 = vsel %vm1071, %v4102, %v4104
  %v4128 = vsel %vm1071, %v4104, %v4106
  %v4129 = vsel %vm1071, %v4108, %v4110
  %v4130 = vsel %vm1071, %v4110, %v4112
  %v4131 = vsel %vm1071, %v4112, %v4114
  %v4132 = vsel %vm1071, %v4114, %v4116
  %v4153 = vadd.f32 %v3465, %v4117
  %v4154 = vadd.f32 %v3467, %v4118
  %v4155 = vadd.f32 %v3678, %v4119
  %v4156 = vadd.f32 %v3680, %v4120
  %v4157 = vadd.f32 %v3891, %v4086
  %v4158 = vadd.f32 %v3469, %v4121
  %v4159 = vadd.f32 %v3471, %v4122
  %v4160 = vadd.f32 %v3682, %v4123
  %v4161 = vadd.f32 %v3684, %v4124
  %v4162 = vadd.f32 %v3894, %v4096
  %v4163 = vadd.f32 %v3475, %v4125
  %v4164 = vadd.f32 %v3477, %v4126
  %v4165 = vadd.f32 %v3688, %v4127
  %v4166 = vadd.f32 %v3690, %v4128
  %v4167 = vadd.f32 %v3899, %v4106
  %v4168 = vadd.f32 %v3479, %v4129
  %v4169 = vadd.f32 %v3481, %v4130
  %v4170 = vadd.f32 %v3692, %v4131
  %v4171 = vadd.f32 %v3694, %v4132
  %v4172 = vadd.f32 %v3902, %v4116
  %4197 = vrot.lane.b32.xlu0 %v3525, 106
  %v4198 = vpop.permute.xlu0 %4197
  %4199 = vrot.lane.b32.xlu0 %v3527, 106
  %v4200 = vpop.permute.xlu0 %4199
  %4201 = vrot.lane.b32.xlu0 %v3738, 106
  %v4202 = vpop.permute.xlu0 %4201
  %4203 = vrot.lane.b32.xlu0 %v3740, 106
  %v4204 = vpop.permute.xlu0 %4203
  %4205 = vrot.lane.b32.xlu0 %v3939, 106
  %v4206 = vpop.permute.xlu0 %4205
  %4207 = vrot.lane.b32.xlu0 %v3941, 106
  %v4208 = vpop.permute.xlu0 %4207
  %4209 = vrot.lane.b32.xlu0 %v3529, 106
  %v4210 = vpop.permute.xlu0 %4209
  %4211 = vrot.lane.b32.xlu0 %v3531, 106
  %v4212 = vpop.permute.xlu0 %4211
  %4213 = vrot.lane.b32.xlu0 %v3742, 106
  %v4214 = vpop.permute.xlu0 %4213
  %4215 = vrot.lane.b32.xlu0 %v3744, 106
  %v4216 = vpop.permute.xlu0 %4215
  %4217 = vrot.lane.b32.xlu0 %v3943, 106
  %v4218 = vpop.permute.xlu0 %4217
  %4219 = vrot.lane.b32.xlu0 %v3945, 106
  %v4220 = vpop.permute.xlu0 %4219
  %4221 = vrot.lane.b32.xlu0 %v3535, 106
  %v4222 = vpop.permute.xlu0 %4221
  %4223 = vrot.lane.b32.xlu0 %v3537, 106
  %v4224 = vpop.permute.xlu0 %4223
  %4225 = vrot.lane.b32.xlu0 %v3748, 106
  %v4226 = vpop.permute.xlu0 %4225
  %4227 = vrot.lane.b32.xlu0 %v3750, 106
  %v4228 = vpop.permute.xlu0 %4227
  %4229 = vrot.lane.b32.xlu0 %v3949, 106
  %v4230 = vpop.permute.xlu0 %4229
  %4231 = vrot.lane.b32.xlu0 %v3951, 106
  %v4232 = vpop.permute.xlu0 %4231
  %4233 = vrot.lane.b32.xlu0 %v3539, 106
  %v4234 = vpop.permute.xlu0 %4233
  %4235 = vrot.lane.b32.xlu0 %v3541, 106
  %v4236 = vpop.permute.xlu0 %4235
  %4237 = vrot.lane.b32.xlu0 %v3752, 106
  %v4238 = vpop.permute.xlu0 %4237
  %4239 = vrot.lane.b32.xlu0 %v3754, 106
  %v4240 = vpop.permute.xlu0 %4239
  %4241 = vrot.lane.b32.xlu0 %v3953, 106
  %v4242 = vpop.permute.xlu0 %4241
  %4243 = vrot.lane.b32.xlu0 %v3955, 106
  %v4244 = vpop.permute.xlu0 %4243
  %v4245 = vsel %vm1200, %v4198, %v4200
  %v4246 = vsel %vm1200, %v4200, %v4202
  %v4247 = vsel %vm1200, %v4202, %v4204
  %v4248 = vsel %vm1200, %v4204, %v4206
  %v4249 = vsel %vm1200, %v4206, %v4208
  %v4250 = vsel %vm1200, %v4210, %v4212
  %v4251 = vsel %vm1200, %v4212, %v4214
  %v4252 = vsel %vm1200, %v4214, %v4216
  %v4253 = vsel %vm1200, %v4216, %v4218
  %v4254 = vsel %vm1200, %v4218, %v4220
  %v4255 = vsel %vm1200, %v4222, %v4224
  %v4256 = vsel %vm1200, %v4224, %v4226
  %v4257 = vsel %vm1200, %v4226, %v4228
  %v4258 = vsel %vm1200, %v4228, %v4230
  %v4259 = vsel %vm1200, %v4230, %v4232
  %v4260 = vsel %vm1200, %v4234, %v4236
  %v4261 = vsel %vm1200, %v4236, %v4238
  %v4262 = vsel %vm1200, %v4238, %v4240
  %v4263 = vsel %vm1200, %v4240, %v4242
  %v4264 = vsel %vm1200, %v4242, %v4244
  %v4285 = vadd.f32 %v3505, %v4245
  %v4286 = vadd.f32 %v3507, %v4246
  %v4287 = vadd.f32 %v3718, %v4247
  %v4288 = vadd.f32 %v3720, %v4248
  %v4289 = vadd.f32 %v3923, %v4249
  %v4290 = vadd.f32 %v3509, %v4250
  %v4291 = vadd.f32 %v3511, %v4251
  %v4292 = vadd.f32 %v3722, %v4252
  %v4293 = vadd.f32 %v3724, %v4253
  %v4294 = vadd.f32 %v3926, %v4254
  %v4295 = vadd.f32 %v3515, %v4255
  %v4296 = vadd.f32 %v3517, %v4256
  %v4297 = vadd.f32 %v3728, %v4257
  %v4298 = vadd.f32 %v3730, %v4258
  %v4299 = vadd.f32 %v3931, %v4259
  %v4300 = vadd.f32 %v3519, %v4260
  %v4301 = vadd.f32 %v3521, %v4261
  %v4302 = vadd.f32 %v3732, %v4262
  %v4303 = vadd.f32 %v3734, %v4263
  %v4304 = vadd.f32 %v3934, %v4264
  %4329 = vrot.lane.b32.xlu0 %v3565, 127
  %v4330 = vpop.permute.xlu0 %4329
  %4331 = vrot.lane.b32.xlu0 %v3567, 127
  %v4332 = vpop.permute.xlu0 %4331
  %4333 = vrot.lane.b32.xlu0 %v3778, 127
  %v4334 = vpop.permute.xlu0 %4333
  %4335 = vrot.lane.b32.xlu0 %v3780, 127
  %v4336 = vpop.permute.xlu0 %4335
  %4337 = vrot.lane.b32.xlu0 %v3979, 127
  %v4338 = vpop.permute.xlu0 %4337
  %4339 = vrot.lane.b32.xlu0 %v3981, 127
  %v4340 = vpop.permute.xlu0 %4339
  %4341 = vrot.lane.b32.xlu0 %v3569, 127
  %v4342 = vpop.permute.xlu0 %4341
  %4343 = vrot.lane.b32.xlu0 %v3571, 127
  %v4344 = vpop.permute.xlu0 %4343
  %4345 = vrot.lane.b32.xlu0 %v3782, 127
  %v4346 = vpop.permute.xlu0 %4345
  %4347 = vrot.lane.b32.xlu0 %v3784, 127
  %v4348 = vpop.permute.xlu0 %4347
  %4349 = vrot.lane.b32.xlu0 %v3983, 127
  %v4350 = vpop.permute.xlu0 %4349
  %4351 = vrot.lane.b32.xlu0 %v3985, 127
  %v4352 = vpop.permute.xlu0 %4351
  %4353 = vrot.lane.b32.xlu0 %v3575, 127
  %v4354 = vpop.permute.xlu0 %4353
  %4355 = vrot.lane.b32.xlu0 %v3577, 127
  %v4356 = vpop.permute.xlu0 %4355
  %4357 = vrot.lane.b32.xlu0 %v3788, 127
  %v4358 = vpop.permute.xlu0 %4357
  %4359 = vrot.lane.b32.xlu0 %v3790, 127
  %v4360 = vpop.permute.xlu0 %4359
  %4361 = vrot.lane.b32.xlu0 %v3989, 127
  %v4362 = vpop.permute.xlu0 %4361
  %4363 = vrot.lane.b32.xlu0 %v3991, 127
  %v4364 = vpop.permute.xlu0 %4363
  %4365 = vrot.lane.b32.xlu0 %v3579, 127
  %v4366 = vpop.permute.xlu0 %4365
  %4367 = vrot.lane.b32.xlu0 %v3581, 127
  %v4368 = vpop.permute.xlu0 %4367
  %4369 = vrot.lane.b32.xlu0 %v3792, 127
  %v4370 = vpop.permute.xlu0 %4369
  %4371 = vrot.lane.b32.xlu0 %v3794, 127
  %v4372 = vpop.permute.xlu0 %4371
  %4373 = vrot.lane.b32.xlu0 %v3993, 127
  %v4374 = vpop.permute.xlu0 %4373
  %4375 = vrot.lane.b32.xlu0 %v3995, 127
  %v4376 = vpop.permute.xlu0 %4375
  %v4377 = vsel %vm1071, %v4330, %v4332
  %v4378 = vsel %vm1071, %v4332, %v4334
  %v4379 = vsel %vm1071, %v4334, %v4336
  %v4380 = vsel %vm1071, %v4336, %v4338
  %v4381 = vsel %vm1071, %v4338, %v4340
  %v4382 = vsel %vm1071, %v4342, %v4344
  %v4383 = vsel %vm1071, %v4344, %v4346
  %v4384 = vsel %vm1071, %v4346, %v4348
  %v4385 = vsel %vm1071, %v4348, %v4350
  %v4386 = vsel %vm1071, %v4350, %v4352
  %v4387 = vsel %vm1071, %v4354, %v4356
  %v4388 = vsel %vm1071, %v4356, %v4358
  %v4389 = vsel %vm1071, %v4358, %v4360
  %v4390 = vsel %vm1071, %v4360, %v4362
  %v4391 = vsel %vm1071, %v4362, %v4364
  %v4392 = vsel %vm1071, %v4366, %v4368
  %v4393 = vsel %vm1071, %v4368, %v4370
  %v4394 = vsel %vm1071, %v4370, %v4372
  %v4395 = vsel %vm1071, %v4372, %v4374
  %v4396 = vsel %vm1071, %v4374, %v4376
  %v4421 = vadd.f32 %v3545, %v4377
  %v4422 = vadd.f32 %v3547, %v4378
  %v4423 = vadd.f32 %v3758, %v4379
  %v4424 = vadd.f32 %v3760, %v4380
  %v4425 = vadd.f32 %v3959, %v4381
  %v4426 = vadd.f32 %v3961, %v4340
  %v4427 = vadd.f32 %v3549, %v4382
  %v4428 = vadd.f32 %v3551, %v4383
  %v4429 = vadd.f32 %v3762, %v4384
  %v4430 = vadd.f32 %v3764, %v4385
  %v4431 = vadd.f32 %v3963, %v4386
  %v4432 = vadd.f32 %v3965, %v4352
  %v4433 = vadd.f32 %v3555, %v4387
  %v4434 = vadd.f32 %v3557, %v4388
  %v4435 = vadd.f32 %v3768, %v4389
  %v4436 = vadd.f32 %v3770, %v4390
  %v4437 = vadd.f32 %v3969, %v4391
  %v4438 = vadd.f32 %v3971, %v4364
  %v4439 = vadd.f32 %v3559, %v4392
  %v4440 = vadd.f32 %v3561, %v4393
  %v4441 = vadd.f32 %v3772, %v4394
  %v4442 = vadd.f32 %v3774, %v4395
  %v4443 = vadd.f32 %v3973, %v4396
  %v4444 = vadd.f32 %v3975, %v4376
  %4469 = vrot.lane.b32.xlu0 %v3605, 127
  %v4470 = vpop.permute.xlu0 %4469
  %4471 = vrot.lane.b32.xlu0 %v3607, 127
  %v4472 = vpop.permute.xlu0 %4471
  %4473 = vrot.lane.b32.xlu0 %v3818, 127
  %v4474 = vpop.permute.xlu0 %4473
  %4475 = vrot.lane.b32.xlu0 %v3820, 127
  %v4476 = vpop.permute.xlu0 %4475
  %4477 = vrot.lane.b32.xlu0 %v4019, 127
  %v4478 = vpop.permute.xlu0 %4477
  %4479 = vrot.lane.b32.xlu0 %v4021, 127
  %v4480 = vpop.permute.xlu0 %4479
  %4481 = vrot.lane.b32.xlu0 %v3609, 127
  %v4482 = vpop.permute.xlu0 %4481
  %4483 = vrot.lane.b32.xlu0 %v3611, 127
  %v4484 = vpop.permute.xlu0 %4483
  %4485 = vrot.lane.b32.xlu0 %v3822, 127
  %v4486 = vpop.permute.xlu0 %4485
  %4487 = vrot.lane.b32.xlu0 %v3824, 127
  %v4488 = vpop.permute.xlu0 %4487
  %4489 = vrot.lane.b32.xlu0 %v4023, 127
  %v4490 = vpop.permute.xlu0 %4489
  %4491 = vrot.lane.b32.xlu0 %v4025, 127
  %v4492 = vpop.permute.xlu0 %4491
  %4493 = vrot.lane.b32.xlu0 %v3615, 127
  %v4494 = vpop.permute.xlu0 %4493
  %4495 = vrot.lane.b32.xlu0 %v3617, 127
  %v4496 = vpop.permute.xlu0 %4495
  %4497 = vrot.lane.b32.xlu0 %v3828, 127
  %v4498 = vpop.permute.xlu0 %4497
  %4499 = vrot.lane.b32.xlu0 %v3830, 127
  %v4500 = vpop.permute.xlu0 %4499
  %4501 = vrot.lane.b32.xlu0 %v4029, 127
  %v4502 = vpop.permute.xlu0 %4501
  %4503 = vrot.lane.b32.xlu0 %v4031, 127
  %v4504 = vpop.permute.xlu0 %4503
  %4505 = vrot.lane.b32.xlu0 %v3619, 127
  %v4506 = vpop.permute.xlu0 %4505
  %4507 = vrot.lane.b32.xlu0 %v3621, 127
  %v4508 = vpop.permute.xlu0 %4507
  %4509 = vrot.lane.b32.xlu0 %v3832, 127
  %v4510 = vpop.permute.xlu0 %4509
  %4511 = vrot.lane.b32.xlu0 %v3834, 127
  %v4512 = vpop.permute.xlu0 %4511
  %4513 = vrot.lane.b32.xlu0 %v4033, 127
  %v4514 = vpop.permute.xlu0 %4513
  %4515 = vrot.lane.b32.xlu0 %v4035, 127
  %v4516 = vpop.permute.xlu0 %4515
  %v4517 = vsel %vm1071, %v4470, %v4472
  %v4518 = vsel %vm1071, %v4472, %v4474
  %v4519 = vsel %vm1071, %v4474, %v4476
  %v4520 = vsel %vm1071, %v4476, %v4478
  %v4521 = vsel %vm1071, %v4478, %v4480
  %v4522 = vsel %vm1071, %v4482, %v4484
  %v4523 = vsel %vm1071, %v4484, %v4486
  %v4524 = vsel %vm1071, %v4486, %v4488
  %v4525 = vsel %vm1071, %v4488, %v4490
  %v4526 = vsel %vm1071, %v4490, %v4492
  %v4527 = vsel %vm1071, %v4494, %v4496
  %v4528 = vsel %vm1071, %v4496, %v4498
  %v4529 = vsel %vm1071, %v4498, %v4500
  %v4530 = vsel %vm1071, %v4500, %v4502
  %v4531 = vsel %vm1071, %v4502, %v4504
  %v4532 = vsel %vm1071, %v4506, %v4508
  %v4533 = vsel %vm1071, %v4508, %v4510
  %v4534 = vsel %vm1071, %v4510, %v4512
  %v4535 = vsel %vm1071, %v4512, %v4514
  %v4536 = vsel %vm1071, %v4514, %v4516
  %v4561 = vadd.f32 %v3585, %v4517
  %v4562 = vadd.f32 %v3587, %v4518
  %v4563 = vadd.f32 %v3798, %v4519
  %v4564 = vadd.f32 %v3800, %v4520
  %v4565 = vadd.f32 %v3999, %v4521
  %v4566 = vadd.f32 %v4001, %v4480
  %v4567 = vadd.f32 %v3589, %v4522
  %v4568 = vadd.f32 %v3591, %v4523
  %v4569 = vadd.f32 %v3802, %v4524
  %v4570 = vadd.f32 %v3804, %v4525
  %v4571 = vadd.f32 %v4003, %v4526
  %v4572 = vadd.f32 %v4005, %v4492
  %v4573 = vadd.f32 %v3595, %v4527
  %v4574 = vadd.f32 %v3597, %v4528
  %v4575 = vadd.f32 %v3808, %v4529
  %v4576 = vadd.f32 %v3810, %v4530
  %v4577 = vadd.f32 %v4009, %v4531
  %v4578 = vadd.f32 %v4011, %v4504
  %v4579 = vadd.f32 %v3599, %v4532
  %v4580 = vadd.f32 %v3601, %v4533
  %v4581 = vadd.f32 %v3812, %v4534
  %v4582 = vadd.f32 %v3814, %v4535
  %v4583 = vadd.f32 %v4013, %v4536
  %v4584 = vadd.f32 %v4015, %v4516
  %4605 = vrot.lane.b32.xlu0 %v4285, 126
  %v4606 = vpop.permute.xlu0 %4605
  %4607 = vrot.lane.b32.xlu0 %v4286, 126
  %v4608 = vpop.permute.xlu0 %4607
  %4609 = vrot.lane.b32.xlu0 %v4287, 126
  %v4610 = vpop.permute.xlu0 %4609
  %4611 = vrot.lane.b32.xlu0 %v4288, 126
  %v4612 = vpop.permute.xlu0 %4611
  %4613 = vrot.lane.b32.xlu0 %v4289, 126
  %v4614 = vpop.permute.xlu0 %4613
  %4615 = vrot.lane.b32.xlu0 %v4290, 126
  %v4616 = vpop.permute.xlu0 %4615
  %4617 = vrot.lane.b32.xlu0 %v4291, 126
  %v4618 = vpop.permute.xlu0 %4617
  %4619 = vrot.lane.b32.xlu0 %v4292, 126
  %v4620 = vpop.permute.xlu0 %4619
  %4621 = vrot.lane.b32.xlu0 %v4293, 126
  %v4622 = vpop.permute.xlu0 %4621
  %4623 = vrot.lane.b32.xlu0 %v4294, 126
  %v4624 = vpop.permute.xlu0 %4623
  %4625 = vrot.lane.b32.xlu0 %v4295, 126
  %v4626 = vpop.permute.xlu0 %4625
  %4627 = vrot.lane.b32.xlu0 %v4296, 126
  %v4628 = vpop.permute.xlu0 %4627
  %4629 = vrot.lane.b32.xlu0 %v4297, 126
  %v4630 = vpop.permute.xlu0 %4629
  %4631 = vrot.lane.b32.xlu0 %v4298, 126
  %v4632 = vpop.permute.xlu0 %4631
  %4633 = vrot.lane.b32.xlu0 %v4299, 126
  %v4634 = vpop.permute.xlu0 %4633
  %4635 = vrot.lane.b32.xlu0 %v4300, 126
  %v4636 = vpop.permute.xlu0 %4635
  %4637 = vrot.lane.b32.xlu0 %v4301, 126
  %v4638 = vpop.permute.xlu0 %4637
  %4639 = vrot.lane.b32.xlu0 %v4302, 126
  %v4640 = vpop.permute.xlu0 %4639
  %4641 = vrot.lane.b32.xlu0 %v4303, 126
  %v4642 = vpop.permute.xlu0 %4641
  %4643 = vrot.lane.b32.xlu0 %v4304, 126
  %v4644 = vpop.permute.xlu0 %4643
  %v4645 = vsel %vm1601, %v4606, %v4608
  %v4646 = vsel %vm1601, %v4608, %v4610
  %v4647 = vsel %vm1601, %v4610, %v4612
  %v4648 = vsel %vm1601, %v4612, %v4614
  %v4649 = vsel %vm1601, %v4616, %v4618
  %v4650 = vsel %vm1601, %v4618, %v4620
  %v4651 = vsel %vm1601, %v4620, %v4622
  %v4652 = vsel %vm1601, %v4622, %v4624
  %v4653 = vsel %vm1601, %v4626, %v4628
  %v4654 = vsel %vm1601, %v4628, %v4630
  %v4655 = vsel %vm1601, %v4630, %v4632
  %v4656 = vsel %vm1601, %v4632, %v4634
  %v4657 = vsel %vm1601, %v4636, %v4638
  %v4658 = vsel %vm1601, %v4638, %v4640
  %v4659 = vsel %vm1601, %v4640, %v4642
  %v4660 = vsel %vm1601, %v4642, %v4644
  %v4681 = vadd.f32 %v4153, %v4645
  %v4682 = vadd.f32 %v4154, %v4646
  %v4683 = vadd.f32 %v4155, %v4647
  %v4684 = vadd.f32 %v4156, %v4648
  %v4685 = vadd.f32 %v4157, %v4614
  %v4686 = vadd.f32 %v4158, %v4649
  %v4687 = vadd.f32 %v4159, %v4650
  %v4688 = vadd.f32 %v4160, %v4651
  %v4689 = vadd.f32 %v4161, %v4652
  %v4690 = vadd.f32 %v4162, %v4624
  %v4691 = vadd.f32 %v4163, %v4653
  %v4692 = vadd.f32 %v4164, %v4654
  %v4693 = vadd.f32 %v4165, %v4655
  %v4694 = vadd.f32 %v4166, %v4656
  %v4695 = vadd.f32 %v4167, %v4634
  %v4696 = vadd.f32 %v4168, %v4657
  %v4697 = vadd.f32 %v4169, %v4658
  %v4698 = vadd.f32 %v4170, %v4659
  %v4699 = vadd.f32 %v4171, %v4660
  %v4700 = vadd.f32 %v4172, %v4644
  %4725 = vrot.lane.b32.xlu0 %v4561, 105
  %v4726 = vpop.permute.xlu0 %4725
  %4727 = vrot.lane.b32.xlu0 %v4562, 105
  %v4728 = vpop.permute.xlu0 %4727
  %4729 = vrot.lane.b32.xlu0 %v4563, 105
  %v4730 = vpop.permute.xlu0 %4729
  %4731 = vrot.lane.b32.xlu0 %v4564, 105
  %v4732 = vpop.permute.xlu0 %4731
  %4733 = vrot.lane.b32.xlu0 %v4565, 105
  %v4734 = vpop.permute.xlu0 %4733
  %4735 = vrot.lane.b32.xlu0 %v4566, 105
  %v4736 = vpop.permute.xlu0 %4735
  %4737 = vrot.lane.b32.xlu0 %v4567, 105
  %v4738 = vpop.permute.xlu0 %4737
  %4739 = vrot.lane.b32.xlu0 %v4568, 105
  %v4740 = vpop.permute.xlu0 %4739
  %4741 = vrot.lane.b32.xlu0 %v4569, 105
  %v4742 = vpop.permute.xlu0 %4741
  %4743 = vrot.lane.b32.xlu0 %v4570, 105
  %v4744 = vpop.permute.xlu0 %4743
  %4745 = vrot.lane.b32.xlu0 %v4571, 105
  %v4746 = vpop.permute.xlu0 %4745
  %4747 = vrot.lane.b32.xlu0 %v4572, 105
  %v4748 = vpop.permute.xlu0 %4747
  %4749 = vrot.lane.b32.xlu0 %v4573, 105
  %v4750 = vpop.permute.xlu0 %4749
  %4751 = vrot.lane.b32.xlu0 %v4574, 105
  %v4752 = vpop.permute.xlu0 %4751
  %4753 = vrot.lane.b32.xlu0 %v4575, 105
  %v4754 = vpop.permute.xlu0 %4753
  %4755 = vrot.lane.b32.xlu0 %v4576, 105
  %v4756 = vpop.permute.xlu0 %4755
  %4757 = vrot.lane.b32.xlu0 %v4577, 105
  %v4758 = vpop.permute.xlu0 %4757
  %4759 = vrot.lane.b32.xlu0 %v4578, 105
  %v4760 = vpop.permute.xlu0 %4759
  %4761 = vrot.lane.b32.xlu0 %v4579, 105
  %v4762 = vpop.permute.xlu0 %4761
  %4763 = vrot.lane.b32.xlu0 %v4580, 105
  %v4764 = vpop.permute.xlu0 %4763
  %4765 = vrot.lane.b32.xlu0 %v4581, 105
  %v4766 = vpop.permute.xlu0 %4765
  %4767 = vrot.lane.b32.xlu0 %v4582, 105
  %v4768 = vpop.permute.xlu0 %4767
  %4769 = vrot.lane.b32.xlu0 %v4583, 105
  %v4770 = vpop.permute.xlu0 %4769
  %4771 = vrot.lane.b32.xlu0 %v4584, 105
  %v4772 = vpop.permute.xlu0 %4771
  %v4773 = vsel %vm1730, %v4726, %v4728
  %v4774 = vsel %vm1730, %v4728, %v4730
  %v4775 = vsel %vm1730, %v4730, %v4732
  %v4776 = vsel %vm1730, %v4732, %v4734
  %v4777 = vsel %vm1730, %v4734, %v4736
  %v4778 = vsel %vm1730, %v4738, %v4740
  %v4779 = vsel %vm1730, %v4740, %v4742
  %v4780 = vsel %vm1730, %v4742, %v4744
  %v4781 = vsel %vm1730, %v4744, %v4746
  %v4782 = vsel %vm1730, %v4746, %v4748
  %v4783 = vsel %vm1730, %v4750, %v4752
  %v4784 = vsel %vm1730, %v4752, %v4754
  %v4785 = vsel %vm1730, %v4754, %v4756
  %v4786 = vsel %vm1730, %v4756, %v4758
  %v4787 = vsel %vm1730, %v4758, %v4760
  %v4788 = vsel %vm1730, %v4762, %v4764
  %v4789 = vsel %vm1730, %v4764, %v4766
  %v4790 = vsel %vm1730, %v4766, %v4768
  %v4791 = vsel %vm1730, %v4768, %v4770
  %v4792 = vsel %vm1730, %v4770, %v4772
  %v4817 = vadd.f32 %v4421, %v4773
  %v4818 = vadd.f32 %v4422, %v4774
  %v4819 = vadd.f32 %v4423, %v4775
  %v4820 = vadd.f32 %v4424, %v4776
  %v4821 = vadd.f32 %v4425, %v4777
  %v4822 = vadd.f32 %v4426, %v4736
  %v4823 = vadd.f32 %v4427, %v4778
  %v4824 = vadd.f32 %v4428, %v4779
  %v4825 = vadd.f32 %v4429, %v4780
  %v4826 = vadd.f32 %v4430, %v4781
  %v4827 = vadd.f32 %v4431, %v4782
  %v4828 = vadd.f32 %v4432, %v4748
  %v4829 = vadd.f32 %v4433, %v4783
  %v4830 = vadd.f32 %v4434, %v4784
  %v4831 = vadd.f32 %v4435, %v4785
  %v4832 = vadd.f32 %v4436, %v4786
  %v4833 = vadd.f32 %v4437, %v4787
  %v4834 = vadd.f32 %v4438, %v4760
  %v4835 = vadd.f32 %v4439, %v4788
  %v4836 = vadd.f32 %v4440, %v4789
  %v4837 = vadd.f32 %v4441, %v4790
  %v4838 = vadd.f32 %v4442, %v4791
  %v4839 = vadd.f32 %v4443, %v4792
  %v4840 = vadd.f32 %v4444, %v4772
  %4865 = vrot.lane.b32.xlu0 %v4817, 103
  %v4866 = vpop.permute.xlu0 %4865
  %4867 = vrot.lane.b32.xlu0 %v4818, 103
  %v4868 = vpop.permute.xlu0 %4867
  %4869 = vrot.lane.b32.xlu0 %v4819, 103
  %v4870 = vpop.permute.xlu0 %4869
  %4871 = vrot.lane.b32.xlu0 %v4820, 103
  %v4872 = vpop.permute.xlu0 %4871
  %4873 = vrot.lane.b32.xlu0 %v4821, 103
  %v4874 = vpop.permute.xlu0 %4873
  %4875 = vrot.lane.b32.xlu0 %v4822, 103
  %v4876 = vpop.permute.xlu0 %4875
  %4877 = vrot.lane.b32.xlu0 %v4823, 103
  %v4878 = vpop.permute.xlu0 %4877
  %4879 = vrot.lane.b32.xlu0 %v4824, 103
  %v4880 = vpop.permute.xlu0 %4879
  %4881 = vrot.lane.b32.xlu0 %v4825, 103
  %v4882 = vpop.permute.xlu0 %4881
  %4883 = vrot.lane.b32.xlu0 %v4826, 103
  %v4884 = vpop.permute.xlu0 %4883
  %4885 = vrot.lane.b32.xlu0 %v4827, 103
  %v4886 = vpop.permute.xlu0 %4885
  %4887 = vrot.lane.b32.xlu0 %v4828, 103
  %v4888 = vpop.permute.xlu0 %4887
  %4889 = vrot.lane.b32.xlu0 %v4829, 103
  %v4890 = vpop.permute.xlu0 %4889
  %4891 = vrot.lane.b32.xlu0 %v4830, 103
  %v4892 = vpop.permute.xlu0 %4891
  %4893 = vrot.lane.b32.xlu0 %v4831, 103
  %v4894 = vpop.permute.xlu0 %4893
  %4895 = vrot.lane.b32.xlu0 %v4832, 103
  %v4896 = vpop.permute.xlu0 %4895
  %4897 = vrot.lane.b32.xlu0 %v4833, 103
  %v4898 = vpop.permute.xlu0 %4897
  %4899 = vrot.lane.b32.xlu0 %v4834, 103
  %v4900 = vpop.permute.xlu0 %4899
  %4901 = vrot.lane.b32.xlu0 %v4835, 103
  %v4902 = vpop.permute.xlu0 %4901
  %4903 = vrot.lane.b32.xlu0 %v4836, 103
  %v4904 = vpop.permute.xlu0 %4903
  %4905 = vrot.lane.b32.xlu0 %v4837, 103
  %v4906 = vpop.permute.xlu0 %4905
  %4907 = vrot.lane.b32.xlu0 %v4838, 103
  %v4908 = vpop.permute.xlu0 %4907
  %4909 = vrot.lane.b32.xlu0 %v4839, 103
  %v4910 = vpop.permute.xlu0 %4909
  %4911 = vrot.lane.b32.xlu0 %v4840, 103
  %v4912 = vpop.permute.xlu0 %4911
  %v4913 = vsel %vm1871, %v4866, %v4868
  %v4914 = vsel %vm1871, %v4868, %v4870
  %v4915 = vsel %vm1871, %v4870, %v4872
  %v4916 = vsel %vm1871, %v4872, %v4874
  %v4917 = vsel %vm1871, %v4874, %v4876
  %v4918 = vsel %vm1871, %v4878, %v4880
  %v4919 = vsel %vm1871, %v4880, %v4882
  %v4920 = vsel %vm1871, %v4882, %v4884
  %v4921 = vsel %vm1871, %v4884, %v4886
  %v4922 = vsel %vm1871, %v4886, %v4888
  %v4923 = vsel %vm1871, %v4890, %v4892
  %v4924 = vsel %vm1871, %v4892, %v4894
  %v4925 = vsel %vm1871, %v4894, %v4896
  %v4926 = vsel %vm1871, %v4896, %v4898
  %v4927 = vsel %vm1871, %v4898, %v4900
  %v4928 = vsel %vm1871, %v4902, %v4904
  %v4929 = vsel %vm1871, %v4904, %v4906
  %v4930 = vsel %vm1871, %v4906, %v4908
  %v4931 = vsel %vm1871, %v4908, %v4910
  %v4932 = vsel %vm1871, %v4910, %v4912
  %v4953 = vadd.f32 %v4681, %v4913
  %v4954 = vadd.f32 %v4682, %v4914
  %v4955 = vadd.f32 %v4683, %v4915
  %v4956 = vadd.f32 %v4684, %v4916
  %v4957 = vadd.f32 %v4685, %v4917
  %v4958 = vadd.f32 %v4686, %v4918
  %v4959 = vadd.f32 %v4687, %v4919
  %v4960 = vadd.f32 %v4688, %v4920
  %v4961 = vadd.f32 %v4689, %v4921
  %v4962 = vadd.f32 %v4690, %v4922
  %v4963 = vadd.f32 %v4691, %v4923
  %v4964 = vadd.f32 %v4692, %v4924
  %v4965 = vadd.f32 %v4693, %v4925
  %v4966 = vadd.f32 %v4694, %v4926
  %v4967 = vadd.f32 %v4695, %v4927
  %v4968 = vadd.f32 %v4696, %v4928
  %v4969 = vadd.f32 %v4697, %v4929
  %v4970 = vadd.f32 %v4698, %v4930
  %v4971 = vadd.f32 %v4699, %v4931
  %v4972 = vadd.f32 %v4700, %v4932
  %4997 = vrot.lane.b32.xlu0 %v3625, 78
  %v4998 = vpop.permute.xlu0 %4997
  %4999 = vrot.lane.b32.xlu0 %v3627, 78
  %v5000 = vpop.permute.xlu0 %4999
  %5001 = vrot.lane.b32.xlu0 %v3838, 78
  %v5002 = vpop.permute.xlu0 %5001
  %5003 = vrot.lane.b32.xlu0 %v3840, 78
  %v5004 = vpop.permute.xlu0 %5003
  %5005 = vrot.lane.b32.xlu0 %v4039, 78
  %v5006 = vpop.permute.xlu0 %5005
  %5007 = vrot.lane.b32.xlu0 %v4041, 78
  %v5008 = vpop.permute.xlu0 %5007
  %5009 = vrot.lane.b32.xlu0 %v3629, 78
  %v5010 = vpop.permute.xlu0 %5009
  %5011 = vrot.lane.b32.xlu0 %v3631, 78
  %v5012 = vpop.permute.xlu0 %5011
  %5013 = vrot.lane.b32.xlu0 %v3842, 78
  %v5014 = vpop.permute.xlu0 %5013
  %5015 = vrot.lane.b32.xlu0 %v3844, 78
  %v5016 = vpop.permute.xlu0 %5015
  %5017 = vrot.lane.b32.xlu0 %v4043, 78
  %v5018 = vpop.permute.xlu0 %5017
  %5019 = vrot.lane.b32.xlu0 %v4045, 78
  %v5020 = vpop.permute.xlu0 %5019
  %5021 = vrot.lane.b32.xlu0 %v3635, 78
  %v5022 = vpop.permute.xlu0 %5021
  %5023 = vrot.lane.b32.xlu0 %v3637, 78
  %v5024 = vpop.permute.xlu0 %5023
  %5025 = vrot.lane.b32.xlu0 %v3848, 78
  %v5026 = vpop.permute.xlu0 %5025
  %5027 = vrot.lane.b32.xlu0 %v3850, 78
  %v5028 = vpop.permute.xlu0 %5027
  %5029 = vrot.lane.b32.xlu0 %v4049, 78
  %v5030 = vpop.permute.xlu0 %5029
  %5031 = vrot.lane.b32.xlu0 %v4051, 78
  %v5032 = vpop.permute.xlu0 %5031
  %5033 = vrot.lane.b32.xlu0 %v3639, 78
  %v5034 = vpop.permute.xlu0 %5033
  %5035 = vrot.lane.b32.xlu0 %v3641, 78
  %v5036 = vpop.permute.xlu0 %5035
  %5037 = vrot.lane.b32.xlu0 %v3852, 78
  %v5038 = vpop.permute.xlu0 %5037
  %5039 = vrot.lane.b32.xlu0 %v3854, 78
  %v5040 = vpop.permute.xlu0 %5039
  %5041 = vrot.lane.b32.xlu0 %v4053, 78
  %v5042 = vpop.permute.xlu0 %5041
  %5043 = vrot.lane.b32.xlu0 %v4055, 78
  %v5044 = vpop.permute.xlu0 %5043
  %v5045 = vsel %vm2004, %v4998, %v5000
  %v5046 = vsel %vm2004, %v5000, %v5002
  %v5047 = vsel %vm2004, %v5002, %v5004
  %v5048 = vsel %vm2004, %v5004, %v5006
  %v5049 = vsel %vm2004, %v5006, %v5008
  %v5050 = vsel %vm2004, %v5010, %v5012
  %v5051 = vsel %vm2004, %v5012, %v5014
  %v5052 = vsel %vm2004, %v5014, %v5016
  %v5053 = vsel %vm2004, %v5016, %v5018
  %v5054 = vsel %vm2004, %v5018, %v5020
  %v5055 = vsel %vm2004, %v5022, %v5024
  %v5056 = vsel %vm2004, %v5024, %v5026
  %v5057 = vsel %vm2004, %v5026, %v5028
  %v5058 = vsel %vm2004, %v5028, %v5030
  %v5059 = vsel %vm2004, %v5030, %v5032
  %v5060 = vsel %vm2004, %v5034, %v5036
  %v5061 = vsel %vm2004, %v5036, %v5038
  %v5062 = vsel %vm2004, %v5038, %v5040
  %v5063 = vsel %vm2004, %v5040, %v5042
  %v5064 = vsel %vm2004, %v5042, %v5044
  %v5085 = vadd.f32 %v4953, %v5045
  %v5086 = vadd.f32 %v4954, %v5046
  %v5087 = vadd.f32 %v4955, %v5047
  %v5088 = vadd.f32 %v4956, %v5048
  %v5089 = vadd.f32 %v4957, %v5049
  %v5090 = vadd.f32 %v4958, %v5050
  %v5091 = vadd.f32 %v4959, %v5051
  %v5092 = vadd.f32 %v4960, %v5052
  %v5093 = vadd.f32 %v4961, %v5053
  %v5094 = vadd.f32 %v4962, %v5054
  %v5095 = vadd.f32 %v4963, %v5055
  %v5096 = vadd.f32 %v4964, %v5056
  %v5097 = vadd.f32 %v4965, %v5057
  %v5098 = vadd.f32 %v4966, %v5058
  %v5099 = vadd.f32 %v4967, %v5059
  %v5100 = vadd.f32 %v4968, %v5060
  %v5101 = vadd.f32 %v4969, %v5061
  %v5102 = vadd.f32 %v4970, %v5062
  %v5103 = vadd.f32 %v4971, %v5063
  %v5104 = vadd.f32 %v4972, %v5064
  %v5105 = vadd.f32 %v5085, %v2068
  %v5106 = vadd.f32 %v5086, %v2068
  %v5107 = vadd.f32 %v5087, %v2068
  %v5108 = vadd.f32 %v5088, %v2068
  %v5109 = vadd.f32 %v5089, %v2068
  %v5110 = vadd.f32 %v5090, %v2073
  %v5111 = vadd.f32 %v5091, %v2073
  %v5112 = vadd.f32 %v5092, %v2073
  %v5113 = vadd.f32 %v5093, %v2073
  %v5114 = vadd.f32 %v5094, %v2073
  %v5115 = vadd.f32 %v5095, %v2078
  %v5116 = vadd.f32 %v5096, %v2078
  %v5117 = vadd.f32 %v5097, %v2078
  %v5118 = vadd.f32 %v5098, %v2078
  %v5119 = vadd.f32 %v5099, %v2078
  %v5120 = vadd.f32 %v5100, %v2083
  %v5121 = vadd.f32 %v5101, %v2083
  %v5122 = vadd.f32 %v5102, %v2083
  %v5123 = vadd.f32 %v5103, %v2083
  %v5124 = vadd.f32 %v5104, %v2083
  %v5125 = vmax.f32 %v5105, 0.0
  %v5126 = vmax.f32 %v5106, 0.0
  %v5127 = vmax.f32 %v5107, 0.0
  %v5128 = vmax.f32 %v5108, 0.0
  %v5129 = vmax.f32 %v5109, 0.0
  %v5130 = vmax.f32 %v5110, 0.0
  %v5131 = vmax.f32 %v5111, 0.0
  %v5132 = vmax.f32 %v5112, 0.0
  %v5133 = vmax.f32 %v5113, 0.0
  %v5134 = vmax.f32 %v5114, 0.0
  %v5135 = vmax.f32 %v5115, 0.0
  %v5136 = vmax.f32 %v5116, 0.0
  %v5137 = vmax.f32 %v5117, 0.0
  %v5138 = vmax.f32 %v5118, 0.0
  %v5139 = vmax.f32 %v5119, 0.0
  %v5140 = vmax.f32 %v5120, 0.0
  %v5141 = vmax.f32 %v5121, 0.0
  %v5142 = vmax.f32 %v5122, 0.0
  %v5143 = vmax.f32 %v5123, 0.0
  %v5144 = vmax.f32 %v5124, 0.0
  %v5145 = vmul.f32 %v5125, %v2129
  %v5146 = vmul.f32 %v5126, %v2133
  %v5147 = vmul.f32 %v5127, %v2137
  %v5148 = vmul.f32 %v5128, %v2141
  %v5149 = vmul.f32 %v5129, %v2145
  %v5150 = vmul.f32 %v5130, %v2129
  %v5151 = vmul.f32 %v5131, %v2133
  %v5152 = vmul.f32 %v5132, %v2137
  %v5153 = vmul.f32 %v5133, %v2141
  %v5154 = vmul.f32 %v5134, %v2145
  %v5155 = vmul.f32 %v5135, %v2129
  %v5156 = vmul.f32 %v5136, %v2133
  %v5157 = vmul.f32 %v5137, %v2137
  %v5158 = vmul.f32 %v5138, %v2141
  %v5159 = vmul.f32 %v5139, %v2145
  %v5160 = vmul.f32 %v5140, %v2129
  %v5161 = vmul.f32 %v5141, %v2133
  %v5162 = vmul.f32 %v5142, %v2137
  %v5163 = vmul.f32 %v5143, %v2141
  %v5164 = vmul.f32 %v5144, %v2145
  %v5165 = vpack.c.bf16 %v5150, %v5145
  %v5166 = vpack.c.bf16 %v5151, %v5146
  %v5167 = vpack.c.bf16 %v5152, %v5147
  %v5168 = vpack.c.bf16 %v5153, %v5148
  %v5169 = vpack.c.bf16 %v5154, %v5149
  %v5170 = vpack.c.bf16 %v5160, %v5155
  %v5171 = vpack.c.bf16 %v5161, %v5156
  %v5172 = vpack.c.bf16 %v5162, %v5157
  %v5173 = vpack.c.bf16 %v5163, %v5158
  %v5174 = vpack.c.bf16 %v5164, %v5159
  %5175 = vmatprep.subr.bf16.mxu0 %v5166
  %5176 = vmatpush1.bf16.msra.mxu0 %v5165
  %5177 = vmatprep.subr.bf16.mxu0 %v5171
  %5178 = vmatpush1.bf16.msra.mxu0 %v5170
  %5179 = vmatprep.subr.bf16.mxu0 0
  %5180 = vmatpush1.bf16.msra.mxu0 0
  %5181 = vmatprep.subr.bf16.mxu0 0
  %5182 = vmatpush1.bf16.msra.mxu0 0
  %5183 = vmatprep.subr.bf16.mxu0 0
  %5184 = vmatpush1.bf16.msra.mxu0 0
  %5185 = vmatprep.subr.bf16.mxu0 0
  %5186 = vmatpush1.bf16.msra.mxu0 0
  %5187 = vmatprep.subr.bf16.mxu0 0
  %5188 = vmatpush1.bf16.msra.mxu0 0
  %5189 = vmatprep.subr.bf16.mxu0 0
  %5190 = vmatpush1.bf16.msra.mxu0 0
  %5191 = vmatprep.subr.bf16.mxu0 0
  %5192 = vmatpush1.bf16.msra.mxu0 0
  %5193 = vmatprep.subr.bf16.mxu0 0
  %5194 = vmatpush1.bf16.msra.mxu0 0
  %5195 = vmatprep.subr.bf16.mxu0 0
  %5196 = vmatpush1.bf16.msra.mxu0 0
  %5197 = vmatprep.subr.bf16.mxu0 0
  %5198 = vmatpush1.bf16.msra.mxu0 0
  %5199 = vmatprep.subr.bf16.mxu0 0
  %5200 = vmatpush1.bf16.msra.mxu0 0
  %5201 = vmatprep.subr.bf16.mxu0 0
  %5202 = vmatpush1.bf16.msra.mxu0 0
  %5203 = vmatprep.subr.bf16.mxu0 0
  %5204 = vmatpush1.bf16.msra.mxu0 0
  %5205 = vmatprep.subr.bf16.mxu0 0
  %5206 = vmatpush1.bf16.msra.mxu0 0
  %5207 = vmatprep.mubr.bf16.mxu0 0
  %5208 = vmatmul.mubr.bf16.gmra.mrb[0].mxu0 %v2206
  %v5209 = vpop.f32.mrb[0].mxu0
  %v5210 = vadd.f32 0.0, %v5209
  %v5211 = vpop.f32.mrb[0].mxu0
  %v5212 = vadd.f32 0.0, %v5211
  %v5213 = vpop.f32.mrb[0].mxu0
  %v5214 = vadd.f32 0.0, %v5213
  %v5215 = vpop.f32.mrb[0].mxu0
  %v5216 = vadd.f32 0.0, %v5215
  %5217 = vmatprep.mubr.bf16.mxu0 0
  %5218 = vmatmul.mubr.bf16.gmra.mrb[0].mxu0 %v2209
  %v5219 = vpop.f32.mrb[0].mxu0
  %v5220 = vadd.f32 0.0, %v5219
  %v5221 = vpop.f32.mrb[0].mxu0
  %v5222 = vadd.f32 0.0, %v5221
  %v5223 = vpop.f32.mrb[0].mxu0
  %v5224 = vadd.f32 0.0, %v5223
  %v5225 = vpop.f32.mrb[0].mxu0
  %v5226 = vadd.f32 0.0, %v5225
  %5227 = vmatprep.mubr.bf16.mxu0 0
  %5228 = vmatmul.mubr.bf16.gmra.mrb[0].mxu0 %v2212
  %v5229 = vpop.f32.mrb[0].mxu0
  %v5230 = vadd.f32 0.0, %v5229
  %v5231 = vpop.f32.mrb[0].mxu0
  %v5232 = vadd.f32 0.0, %v5231
  %v5233 = vpop.f32.mrb[0].mxu0
  %v5234 = vadd.f32 0.0, %v5233
  %v5235 = vpop.f32.mrb[0].mxu0
  %v5236 = vadd.f32 0.0, %v5235
  %5237 = vmatprep.mubr.bf16.mxu0 0
  %5238 = vmatmul.mubr.bf16.gmra.mrb[0].mxu0 %v2215
  %v5239 = vpop.f32.mrb[0].mxu0
  %v5240 = vadd.f32 0.0, %v5239
  %v5241 = vpop.f32.mrb[0].mxu0
  %v5242 = vadd.f32 0.0, %v5241
  %v5243 = vpop.f32.mrb[0].mxu0
  %v5244 = vadd.f32 0.0, %v5243
  %v5245 = vpop.f32.mrb[0].mxu0
  %v5246 = vadd.f32 0.0, %v5245
  %5247 = vmatprep.mubr.bf16.mxu0 0
  %5248 = vmatmul.mubr.bf16.gmra.mrb[0].mxu0 %v2218
  %v5249 = vpop.f32.mrb[0].mxu0
  %v5250 = vadd.f32 0.0, %v5249
  %v5251 = vpop.f32.mrb[0].mxu0
  %v5252 = vadd.f32 0.0, %v5251
  %v5253 = vpop.f32.mrb[0].mxu0
  %v5254 = vpop.f32.mrb[0].mxu0
  %5255 = vdwg.mxu0
  %5256 = vmatprep.subr.bf16.mxu0 %v5168
  %5257 = vmatpush1.bf16.msra.mxu0 %v5167
  %5258 = vmatprep.subr.bf16.mxu0 %v5173
  %5259 = vmatpush1.bf16.msra.mxu0 %v5172
  %5260 = vmatprep.subr.bf16.mxu0 0
  %5261 = vmatpush1.bf16.msra.mxu0 0
  %5262 = vmatprep.subr.bf16.mxu0 0
  %5263 = vmatpush1.bf16.msra.mxu0 0
  %5264 = vmatprep.subr.bf16.mxu0 0
  %5265 = vmatpush1.bf16.msra.mxu0 0
  %5266 = vmatprep.subr.bf16.mxu0 0
  %5267 = vmatpush1.bf16.msra.mxu0 0
  %5268 = vmatprep.subr.bf16.mxu0 0
  %5269 = vmatpush1.bf16.msra.mxu0 0
  %5270 = vmatprep.subr.bf16.mxu0 0
  %5271 = vmatpush1.bf16.msra.mxu0 0
  %5272 = vmatprep.subr.bf16.mxu0 0
  %5273 = vmatpush1.bf16.msra.mxu0 0
  %5274 = vmatprep.subr.bf16.mxu0 0
  %5275 = vmatpush1.bf16.msra.mxu0 0
  %5276 = vmatprep.subr.bf16.mxu0 0
  %5277 = vmatpush1.bf16.msra.mxu0 0
  %5278 = vmatprep.subr.bf16.mxu0 0
  %5279 = vmatpush1.bf16.msra.mxu0 0
  %5280 = vmatprep.subr.bf16.mxu0 0
  %5281 = vmatpush1.bf16.msra.mxu0 0
  %5282 = vmatprep.subr.bf16.mxu0 0
  %5283 = vmatpush1.bf16.msra.mxu0 0
  %5284 = vmatprep.subr.bf16.mxu0 0
  %5285 = vmatpush1.bf16.msra.mxu0 0
  %5286 = vmatprep.subr.bf16.mxu0 0
  %5287 = vmatpush1.bf16.msra.mxu0 0
  %5288 = vmatprep.mubr.bf16.mxu0 0
  %5289 = vmatmul.mubr.bf16.gmra.mrb[0].mxu0 %v2206
  %v5290 = vpop.f32.mrb[0].mxu0
  %v5291 = vadd.f32 0.0, %v5290
  %v5292 = vpop.f32.mrb[0].mxu0
  %v5293 = vadd.f32 0.0, %v5292
  %v5294 = vpop.f32.mrb[0].mxu0
  %v5295 = vadd.f32 0.0, %v5294
  %v5296 = vpop.f32.mrb[0].mxu0
  %v5297 = vadd.f32 0.0, %v5296
  %5298 = vmatprep.mubr.bf16.mxu0 0
  %5299 = vmatmul.mubr.bf16.gmra.mrb[0].mxu0 %v2209
  %v5300 = vpop.f32.mrb[0].mxu0
  %v5301 = vadd.f32 0.0, %v5300
  %v5302 = vpop.f32.mrb[0].mxu0
  %v5303 = vadd.f32 0.0, %v5302
  %v5304 = vpop.f32.mrb[0].mxu0
  %v5305 = vadd.f32 0.0, %v5304
  %v5306 = vpop.f32.mrb[0].mxu0
  %v5307 = vadd.f32 0.0, %v5306
  %5308 = vmatprep.mubr.bf16.mxu0 0
  %5309 = vmatmul.mubr.bf16.gmra.mrb[0].mxu0 %v2212
  %v5310 = vpop.f32.mrb[0].mxu0
  %v5311 = vadd.f32 0.0, %v5310
  %v5312 = vpop.f32.mrb[0].mxu0
  %v5313 = vadd.f32 0.0, %v5312
  %v5314 = vpop.f32.mrb[0].mxu0
  %v5315 = vadd.f32 0.0, %v5314
  %v5316 = vpop.f32.mrb[0].mxu0
  %v5317 = vadd.f32 0.0, %v5316
  %5318 = vmatprep.mubr.bf16.mxu0 0
  %5319 = vmatmul.mubr.bf16.gmra.mrb[0].mxu0 %v2215
  %v5320 = vpop.f32.mrb[0].mxu0
  %v5321 = vadd.f32 0.0, %v5320
  %v5322 = vpop.f32.mrb[0].mxu0
  %v5323 = vadd.f32 0.0, %v5322
  %v5324 = vpop.f32.mrb[0].mxu0
  %v5325 = vadd.f32 0.0, %v5324
  %v5326 = vpop.f32.mrb[0].mxu0
  %v5327 = vadd.f32 0.0, %v5326
  %5328 = vmatprep.mubr.bf16.mxu0 0
  %5329 = vmatmul.mubr.bf16.gmra.mrb[0].mxu0 %v2218
  %v5330 = vpop.f32.mrb[0].mxu0
  %v5331 = vadd.f32 0.0, %v5330
  %v5332 = vpop.f32.mrb[0].mxu0
  %v5333 = vadd.f32 0.0, %v5332
  %v5334 = vpop.f32.mrb[0].mxu0
  %v5335 = vpop.f32.mrb[0].mxu0
  %5336 = vdwg.mxu0
  %5337 = vmatprep.subr.bf16.mxu0 0
  %5338 = vmatpush1.bf16.msra.mxu0 %v5169
  %5339 = vmatprep.subr.bf16.mxu0 0
  %5340 = vmatpush1.bf16.msra.mxu0 %v5174
  %5341 = vmatprep.subr.bf16.mxu0 0
  %5342 = vmatpush1.bf16.msra.mxu0 0
  %5343 = vmatprep.subr.bf16.mxu0 0
  %5344 = vmatpush1.bf16.msra.mxu0 0
  %5345 = vmatprep.subr.bf16.mxu0 0
  %5346 = vmatpush1.bf16.msra.mxu0 0
  %5347 = vmatprep.subr.bf16.mxu0 0
  %5348 = vmatpush1.bf16.msra.mxu0 0
  %5349 = vmatprep.subr.bf16.mxu0 0
  %5350 = vmatpush1.bf16.msra.mxu0 0
  %5351 = vmatprep.subr.bf16.mxu0 0
  %5352 = vmatpush1.bf16.msra.mxu0 0
  %5353 = vmatprep.subr.bf16.mxu0 0
  %5354 = vmatpush1.bf16.msra.mxu0 0
  %5355 = vmatprep.subr.bf16.mxu0 0
  %5356 = vmatpush1.bf16.msra.mxu0 0
  %5357 = vmatprep.subr.bf16.mxu0 0
  %5358 = vmatpush1.bf16.msra.mxu0 0
  %5359 = vmatprep.subr.bf16.mxu0 0
  %5360 = vmatpush1.bf16.msra.mxu0 0
  %5361 = vmatprep.subr.bf16.mxu0 0
  %5362 = vmatpush1.bf16.msra.mxu0 0
  %5363 = vmatprep.subr.bf16.mxu0 0
  %5364 = vmatpush1.bf16.msra.mxu0 0
  %5365 = vmatprep.subr.bf16.mxu0 0
  %5366 = vmatpush1.bf16.msra.mxu0 0
  %5367 = vmatprep.subr.bf16.mxu0 0
  %5368 = vmatpush1.bf16.msra.mxu0 0
  %5369 = vmatprep.mubr.bf16.mxu0 0
  %5370 = vmatmul.mubr.bf16.gmra.mrb[0].mxu0 %v2206
  %v5371 = vpop.f32.mrb[0].mxu0
  %v5372 = vadd.f32 0.0, %v5371
  %v5373 = vpop.f32.mrb[0].mxu0
  %v5374 = vpop.f32.mrb[0].mxu0
  %v5375 = vadd.f32 0.0, %v5374
  %v5376 = vpop.f32.mrb[0].mxu0
  %5377 = vmatprep.mubr.bf16.mxu0 0
  %5378 = vmatmul.mubr.bf16.gmra.mrb[0].mxu0 %v2209
  %v5379 = vpop.f32.mrb[0].mxu0
  %v5380 = vadd.f32 0.0, %v5379
  %v5381 = vpop.f32.mrb[0].mxu0
  %v5382 = vpop.f32.mrb[0].mxu0
  %v5383 = vadd.f32 0.0, %v5382
  %v5384 = vpop.f32.mrb[0].mxu0
  %5385 = vmatprep.mubr.bf16.mxu0 0
  %5386 = vmatmul.mubr.bf16.gmra.mrb[0].mxu0 %v2212
  %v5387 = vpop.f32.mrb[0].mxu0
  %v5388 = vadd.f32 0.0, %v5387
  %v5389 = vpop.f32.mrb[0].mxu0
  %v5390 = vpop.f32.mrb[0].mxu0
  %v5391 = vadd.f32 0.0, %v5390
  %v5392 = vpop.f32.mrb[0].mxu0
  %5393 = vmatprep.mubr.bf16.mxu0 0
  %5394 = vmatmul.mubr.bf16.gmra.mrb[0].mxu0 %v2215
  %v5395 = vpop.f32.mrb[0].mxu0
  %v5396 = vadd.f32 0.0, %v5395
  %v5397 = vpop.f32.mrb[0].mxu0
  %v5398 = vpop.f32.mrb[0].mxu0
  %v5399 = vadd.f32 0.0, %v5398
  %v5400 = vpop.f32.mrb[0].mxu0
  %5401 = vmatprep.mubr.bf16.mxu0 0
  %5402 = vmatmul.mubr.bf16.gmra.mrb[0].mxu0 %v2218
  %v5403 = vpop.f32.mrb[0].mxu0
  %v5404 = vadd.f32 0.0, %v5403
  %v5405 = vpop.f32.mrb[0].mxu0
  %v5406 = vpop.f32.mrb[0].mxu0
  %v5407 = vpop.f32.mrb[0].mxu0
  %5408 = vdwg.mxu0
  %5414 = vrot.lane.b32.xlu0 %v5214, 127
  %v5415 = vpop.permute.xlu0 %5414
  %5416 = vrot.lane.b32.xlu0 %v5216, 127
  %v5417 = vpop.permute.xlu0 %5416
  %5418 = vrot.lane.b32.xlu0 %v5295, 127
  %v5419 = vpop.permute.xlu0 %5418
  %5420 = vrot.lane.b32.xlu0 %v5297, 127
  %v5421 = vpop.permute.xlu0 %5420
  %5422 = vrot.lane.b32.xlu0 %v5375, 127
  %v5423 = vpop.permute.xlu0 %5422
  %v5424 = vsel %vm1071, %v5415, %v5417
  %v5425 = vsel %vm1071, %v5417, %v5419
  %v5426 = vsel %vm1071, %v5419, %v5421
  %v5427 = vsel %vm1071, %v5421, %v5423
  %v5433 = vadd.f32 %v5210, %v5424
  %v5434 = vadd.f32 %v5212, %v5425
  %v5435 = vadd.f32 %v5291, %v5426
  %v5436 = vadd.f32 %v5293, %v5427
  %v5437 = vadd.f32 %v5372, %v5423
  %5443 = vrot.lane.b32.xlu0 %v5224, 106
  %v5444 = vpop.permute.xlu0 %5443
  %5445 = vrot.lane.b32.xlu0 %v5226, 106
  %v5446 = vpop.permute.xlu0 %5445
  %5447 = vrot.lane.b32.xlu0 %v5305, 106
  %v5448 = vpop.permute.xlu0 %5447
  %5449 = vrot.lane.b32.xlu0 %v5307, 106
  %v5450 = vpop.permute.xlu0 %5449
  %5451 = vrot.lane.b32.xlu0 %v5383, 106
  %v5452 = vpop.permute.xlu0 %5451
  %v5453 = vsel %vm1200, %v5444, %v5446
  %v5454 = vsel %vm1200, %v5446, %v5448
  %v5455 = vsel %vm1200, %v5448, %v5450
  %v5456 = vsel %vm1200, %v5450, %v5452
  %v5462 = vadd.f32 %v5220, %v5453
  %v5463 = vadd.f32 %v5222, %v5454
  %v5464 = vadd.f32 %v5301, %v5455
  %v5465 = vadd.f32 %v5303, %v5456
  %v5466 = vadd.f32 %v5380, %v5452
  %5472 = vrot.lane.b32.xlu0 %v5234, 127
  %v5473 = vpop.permute.xlu0 %5472
  %5474 = vrot.lane.b32.xlu0 %v5236, 127
  %v5475 = vpop.permute.xlu0 %5474
  %5476 = vrot.lane.b32.xlu0 %v5315, 127
  %v5477 = vpop.permute.xlu0 %5476
  %5478 = vrot.lane.b32.xlu0 %v5317, 127
  %v5479 = vpop.permute.xlu0 %5478
  %5480 = vrot.lane.b32.xlu0 %v5391, 127
  %v5481 = vpop.permute.xlu0 %5480
  %v5482 = vsel %vm1071, %v5473, %v5475
  %v5483 = vsel %vm1071, %v5475, %v5477
  %v5484 = vsel %vm1071, %v5477, %v5479
  %v5485 = vsel %vm1071, %v5479, %v5481
  %v5491 = vadd.f32 %v5230, %v5482
  %v5492 = vadd.f32 %v5232, %v5483
  %v5493 = vadd.f32 %v5311, %v5484
  %v5494 = vadd.f32 %v5313, %v5485
  %v5495 = vadd.f32 %v5388, %v5481
  %5501 = vrot.lane.b32.xlu0 %v5244, 127
  %v5502 = vpop.permute.xlu0 %5501
  %5503 = vrot.lane.b32.xlu0 %v5246, 127
  %v5504 = vpop.permute.xlu0 %5503
  %5505 = vrot.lane.b32.xlu0 %v5325, 127
  %v5506 = vpop.permute.xlu0 %5505
  %5507 = vrot.lane.b32.xlu0 %v5327, 127
  %v5508 = vpop.permute.xlu0 %5507
  %5509 = vrot.lane.b32.xlu0 %v5399, 127
  %v5510 = vpop.permute.xlu0 %5509
  %v5511 = vsel %vm1071, %v5502, %v5504
  %v5512 = vsel %vm1071, %v5504, %v5506
  %v5513 = vsel %vm1071, %v5506, %v5508
  %v5514 = vsel %vm1071, %v5508, %v5510
  %v5520 = vadd.f32 %v5240, %v5511
  %v5521 = vadd.f32 %v5242, %v5512
  %v5522 = vadd.f32 %v5321, %v5513
  %v5523 = vadd.f32 %v5323, %v5514
  %v5524 = vadd.f32 %v5396, %v5510
  %5530 = vrot.lane.b32.xlu0 %v5462, 126
  %v5531 = vpop.permute.xlu0 %5530
  %5532 = vrot.lane.b32.xlu0 %v5463, 126
  %v5533 = vpop.permute.xlu0 %5532
  %5534 = vrot.lane.b32.xlu0 %v5464, 126
  %v5535 = vpop.permute.xlu0 %5534
  %5536 = vrot.lane.b32.xlu0 %v5465, 126
  %v5537 = vpop.permute.xlu0 %5536
  %5538 = vrot.lane.b32.xlu0 %v5466, 126
  %v5539 = vpop.permute.xlu0 %5538
  %v5540 = vsel %vm1601, %v5531, %v5533
  %v5541 = vsel %vm1601, %v5533, %v5535
  %v5542 = vsel %vm1601, %v5535, %v5537
  %v5543 = vsel %vm1601, %v5537, %v5539
  %v5549 = vadd.f32 %v5433, %v5540
  %v5550 = vadd.f32 %v5434, %v5541
  %v5551 = vadd.f32 %v5435, %v5542
  %v5552 = vadd.f32 %v5436, %v5543
  %v5553 = vadd.f32 %v5437, %v5539
  %5559 = vrot.lane.b32.xlu0 %v5520, 105
  %v5560 = vpop.permute.xlu0 %5559
  %5561 = vrot.lane.b32.xlu0 %v5521, 105
  %v5562 = vpop.permute.xlu0 %5561
  %5563 = vrot.lane.b32.xlu0 %v5522, 105
  %v5564 = vpop.permute.xlu0 %5563
  %5565 = vrot.lane.b32.xlu0 %v5523, 105
  %v5566 = vpop.permute.xlu0 %5565
  %5567 = vrot.lane.b32.xlu0 %v5524, 105
  %v5568 = vpop.permute.xlu0 %5567
  %v5569 = vsel %vm1730, %v5560, %v5562
  %v5570 = vsel %vm1730, %v5562, %v5564
  %v5571 = vsel %vm1730, %v5564, %v5566
  %v5572 = vsel %vm1730, %v5566, %v5568
  %v5578 = vadd.f32 %v5491, %v5569
  %v5579 = vadd.f32 %v5492, %v5570
  %v5580 = vadd.f32 %v5493, %v5571
  %v5581 = vadd.f32 %v5494, %v5572
  %v5582 = vadd.f32 %v5495, %v5568
  %5588 = vrot.lane.b32.xlu0 %v5578, 103
  %v5589 = vpop.permute.xlu0 %5588
  %5590 = vrot.lane.b32.xlu0 %v5579, 103
  %v5591 = vpop.permute.xlu0 %5590
  %5592 = vrot.lane.b32.xlu0 %v5580, 103
  %v5593 = vpop.permute.xlu0 %5592
  %5594 = vrot.lane.b32.xlu0 %v5581, 103
  %v5595 = vpop.permute.xlu0 %5594
  %5596 = vrot.lane.b32.xlu0 %v5582, 103
  %v5597 = vpop.permute.xlu0 %5596
  %v5598 = vsel %vm1871, %v5589, %v5591
  %v5599 = vsel %vm1871, %v5591, %v5593
  %v5600 = vsel %vm1871, %v5593, %v5595
  %v5601 = vsel %vm1871, %v5595, %v5597
  %v5607 = vadd.f32 %v5549, %v5598
  %v5608 = vadd.f32 %v5550, %v5599
  %v5609 = vadd.f32 %v5551, %v5600
  %v5610 = vadd.f32 %v5552, %v5601
  %v5611 = vadd.f32 %v5553, %v5597
  %5617 = vrot.lane.b32.xlu0 %v5250, 78
  %v5618 = vpop.permute.xlu0 %5617
  %5619 = vrot.lane.b32.xlu0 %v5252, 78
  %v5620 = vpop.permute.xlu0 %5619
  %5621 = vrot.lane.b32.xlu0 %v5331, 78
  %v5622 = vpop.permute.xlu0 %5621
  %5623 = vrot.lane.b32.xlu0 %v5333, 78
  %v5624 = vpop.permute.xlu0 %5623
  %5625 = vrot.lane.b32.xlu0 %v5404, 78
  %v5626 = vpop.permute.xlu0 %5625
  %v5627 = vsel %vm2004, %v5618, %v5620
  %v5628 = vsel %vm2004, %v5620, %v5622
  %v5629 = vsel %vm2004, %v5622, %v5624
  %v5630 = vsel %vm2004, %v5624, %v5626
  %v5636 = vadd.f32 %v5607, %v5627
  %v5637 = vadd.f32 %v5608, %v5628
  %v5638 = vadd.f32 %v5609, %v5629
  %v5639 = vadd.f32 %v5610, %v5630
  %v5640 = vadd.f32 %v5611, %v5626
  %v5641 = vadd.f32 %v5636, %v2689
  %v5642 = vadd.f32 %v5637, %v2689
  %v5643 = vadd.f32 %v5638, %v2689
  %v5644 = vadd.f32 %v5639, %v2689
  %v5645 = vadd.f32 %v5640, %v2689
  %v5646 = vmax.f32 %v5641, 0.0
  %v5647 = vmax.f32 %v5642, 0.0
  %v5648 = vmax.f32 %v5643, 0.0
  %v5649 = vmax.f32 %v5644, 0.0
  %v5650 = vmax.f32 %v5645, 0.0
  %v5651 = vmul.f32 %v5646, %v2705
  %v5652 = vmul.f32 %v5647, %v2709
  %v5653 = vmul.f32 %v5648, %v2713
  %v5654 = vmul.f32 %v5649, %v2717
  %v5655 = vmul.f32 %v5650, %v2721
  %v5656 = vpack.c.bf16 %v5651, %v5651
  %v5657 = vpack.c.bf16 %v5652, %v5652
  %v5658 = vpack.c.bf16 %v5653, %v5653
  %v5659 = vpack.c.bf16 %v5654, %v5654
  %v5660 = vpack.c.bf16 %v5655, %v5655
  %v5662 = vsel %vm2776, %v5656, 0
  %v5665 = vsel %vm2776, %v5657, 0
  %v5668 = vsel %vm2776, %v5658, 0
  %v5671 = vsel %vm2776, %v5659, 0
  %v5674 = vsel %vm2776, %v5660, 0
  %5676 = vmatprep.subr.bf16.mxu0 %v5665
  %5677 = vmatpush1.bf16.msra.mxu0 %v5662
  %5678 = vmatprep.subr.bf16.mxu0 0
  %5679 = vmatpush1.bf16.msra.mxu0 0
  %5680 = vmatprep.subr.bf16.mxu0 0
  %5681 = vmatpush1.bf16.msra.mxu0 0
  %5682 = vmatprep.subr.bf16.mxu0 0
  %5683 = vmatpush1.bf16.msra.mxu0 0
  %5684 = vmatprep.subr.bf16.mxu0 0
  %5685 = vmatpush1.bf16.msra.mxu0 0
  %5686 = vmatprep.subr.bf16.mxu0 0
  %5687 = vmatpush1.bf16.msra.mxu0 0
  %5688 = vmatprep.subr.bf16.mxu0 0
  %5689 = vmatpush1.bf16.msra.mxu0 0
  %5690 = vmatprep.subr.bf16.mxu0 0
  %5691 = vmatpush1.bf16.msra.mxu0 0
  %5692 = vmatprep.subr.bf16.mxu0 0
  %5693 = vmatpush1.bf16.msra.mxu0 0
  %5694 = vmatprep.subr.bf16.mxu0 0
  %5695 = vmatpush1.bf16.msra.mxu0 0
  %5696 = vmatprep.subr.bf16.mxu0 0
  %5697 = vmatpush1.bf16.msra.mxu0 0
  %5698 = vmatprep.subr.bf16.mxu0 0
  %5699 = vmatpush1.bf16.msra.mxu0 0
  %5700 = vmatprep.subr.bf16.mxu0 0
  %5701 = vmatpush1.bf16.msra.mxu0 0
  %5702 = vmatprep.subr.bf16.mxu0 0
  %5703 = vmatpush1.bf16.msra.mxu0 0
  %5704 = vmatprep.subr.bf16.mxu0 0
  %5705 = vmatpush1.bf16.msra.mxu0 0
  %5706 = vmatprep.subr.bf16.mxu0 0
  %5707 = vmatpush1.bf16.msra.mxu0 0
  %5708 = vmatprep.mubr.bf16.mxu0 0
  %5709 = vmatmul.mubr.bf16.gmra.mrb[0].mxu0 %v2762
  %v5710 = vpop.f32.mrb[0].mxu0
  %v5711 = vadd.f32 0.0, %v5710
  %v5712 = vpop.f32.mrb[0].mxu0
  %v5713 = vadd.f32 0.0, %v5712
  %v5714 = vpop.f32.mrb[0].mxu0
  %v5715 = vadd.f32 0.0, %v5714
  %v5716 = vpop.f32.mrb[0].mxu0
  %v5717 = vadd.f32 0.0, %v5716
  %5718 = vmatprep.mubr.bf16.mxu0 0
  %5719 = vmatmul.mubr.bf16.gmra.mrb[0].mxu0 %v2765
  %v5720 = vpop.f32.mrb[0].mxu0
  %v5721 = vadd.f32 0.0, %v5720
  %v5722 = vpop.f32.mrb[0].mxu0
  %v5723 = vadd.f32 0.0, %v5722
  %v5724 = vpop.f32.mrb[0].mxu0
  %v5725 = vadd.f32 0.0, %v5724
  %v5726 = vpop.f32.mrb[0].mxu0
  %v5727 = vadd.f32 0.0, %v5726
  %5728 = vmatprep.mubr.bf16.mxu0 0
  %5729 = vmatmul.mubr.bf16.gmra.mrb[0].mxu0 %v2768
  %v5730 = vpop.f32.mrb[0].mxu0
  %v5731 = vadd.f32 0.0, %v5730
  %v5732 = vpop.f32.mrb[0].mxu0
  %v5733 = vadd.f32 0.0, %v5732
  %v5734 = vpop.f32.mrb[0].mxu0
  %v5735 = vadd.f32 0.0, %v5734
  %v5736 = vpop.f32.mrb[0].mxu0
  %v5737 = vadd.f32 0.0, %v5736
  %5738 = vmatprep.mubr.bf16.mxu0 0
  %5739 = vmatmul.mubr.bf16.gmra.mrb[0].mxu0 %v2771
  %v5740 = vpop.f32.mrb[0].mxu0
  %v5741 = vadd.f32 0.0, %v5740
  %v5742 = vpop.f32.mrb[0].mxu0
  %v5743 = vadd.f32 0.0, %v5742
  %v5744 = vpop.f32.mrb[0].mxu0
  %v5745 = vadd.f32 0.0, %v5744
  %v5746 = vpop.f32.mrb[0].mxu0
  %v5747 = vadd.f32 0.0, %v5746
  %5748 = vmatprep.mubr.bf16.mxu0 0
  %5749 = vmatmul.mubr.bf16.gmra.mrb[0].mxu0 %v2774
  %v5750 = vpop.f32.mrb[0].mxu0
  %v5751 = vadd.f32 0.0, %v5750
  %v5752 = vpop.f32.mrb[0].mxu0
  %v5753 = vadd.f32 0.0, %v5752
  %v5754 = vpop.f32.mrb[0].mxu0
  %v5755 = vpop.f32.mrb[0].mxu0
  %5756 = vdwg.mxu0
  %5757 = vmatprep.subr.bf16.mxu0 %v5671
  %5758 = vmatpush1.bf16.msra.mxu0 %v5668
  %5759 = vmatprep.subr.bf16.mxu0 0
  %5760 = vmatpush1.bf16.msra.mxu0 0
  %5761 = vmatprep.subr.bf16.mxu0 0
  %5762 = vmatpush1.bf16.msra.mxu0 0
  %5763 = vmatprep.subr.bf16.mxu0 0
  %5764 = vmatpush1.bf16.msra.mxu0 0
  %5765 = vmatprep.subr.bf16.mxu0 0
  %5766 = vmatpush1.bf16.msra.mxu0 0
  %5767 = vmatprep.subr.bf16.mxu0 0
  %5768 = vmatpush1.bf16.msra.mxu0 0
  %5769 = vmatprep.subr.bf16.mxu0 0
  %5770 = vmatpush1.bf16.msra.mxu0 0
  %5771 = vmatprep.subr.bf16.mxu0 0
  %5772 = vmatpush1.bf16.msra.mxu0 0
  %5773 = vmatprep.subr.bf16.mxu0 0
  %5774 = vmatpush1.bf16.msra.mxu0 0
  %5775 = vmatprep.subr.bf16.mxu0 0
  %5776 = vmatpush1.bf16.msra.mxu0 0
  %5777 = vmatprep.subr.bf16.mxu0 0
  %5778 = vmatpush1.bf16.msra.mxu0 0
  %5779 = vmatprep.subr.bf16.mxu0 0
  %5780 = vmatpush1.bf16.msra.mxu0 0
  %5781 = vmatprep.subr.bf16.mxu0 0
  %5782 = vmatpush1.bf16.msra.mxu0 0
  %5783 = vmatprep.subr.bf16.mxu0 0
  %5784 = vmatpush1.bf16.msra.mxu0 0
  %5785 = vmatprep.subr.bf16.mxu0 0
  %5786 = vmatpush1.bf16.msra.mxu0 0
  %5787 = vmatprep.subr.bf16.mxu0 0
  %5788 = vmatpush1.bf16.msra.mxu0 0
  %5789 = vmatprep.mubr.bf16.mxu0 0
  %5790 = vmatmul.mubr.bf16.gmra.mrb[0].mxu0 %v2762
  %v5791 = vpop.f32.mrb[0].mxu0
  %v5792 = vadd.f32 0.0, %v5791
  %v5793 = vpop.f32.mrb[0].mxu0
  %v5794 = vadd.f32 0.0, %v5793
  %v5795 = vpop.f32.mrb[0].mxu0
  %v5796 = vadd.f32 0.0, %v5795
  %v5797 = vpop.f32.mrb[0].mxu0
  %v5798 = vadd.f32 0.0, %v5797
  %5799 = vmatprep.mubr.bf16.mxu0 0
  %5800 = vmatmul.mubr.bf16.gmra.mrb[0].mxu0 %v2765
  %v5801 = vpop.f32.mrb[0].mxu0
  %v5802 = vadd.f32 0.0, %v5801
  %v5803 = vpop.f32.mrb[0].mxu0
  %v5804 = vadd.f32 0.0, %v5803
  %v5805 = vpop.f32.mrb[0].mxu0
  %v5806 = vadd.f32 0.0, %v5805
  %v5807 = vpop.f32.mrb[0].mxu0
  %v5808 = vadd.f32 0.0, %v5807
  %5809 = vmatprep.mubr.bf16.mxu0 0
  %5810 = vmatmul.mubr.bf16.gmra.mrb[0].mxu0 %v2768
  %v5811 = vpop.f32.mrb[0].mxu0
  %v5812 = vadd.f32 0.0, %v5811
  %v5813 = vpop.f32.mrb[0].mxu0
  %v5814 = vadd.f32 0.0, %v5813
  %v5815 = vpop.f32.mrb[0].mxu0
  %v5816 = vadd.f32 0.0, %v5815
  %v5817 = vpop.f32.mrb[0].mxu0
  %v5818 = vadd.f32 0.0, %v5817
  %5819 = vmatprep.mubr.bf16.mxu0 0
  %5820 = vmatmul.mubr.bf16.gmra.mrb[0].mxu0 %v2771
  %v5821 = vpop.f32.mrb[0].mxu0
  %v5822 = vadd.f32 0.0, %v5821
  %v5823 = vpop.f32.mrb[0].mxu0
  %v5824 = vadd.f32 0.0, %v5823
  %v5825 = vpop.f32.mrb[0].mxu0
  %v5826 = vadd.f32 0.0, %v5825
  %v5827 = vpop.f32.mrb[0].mxu0
  %v5828 = vadd.f32 0.0, %v5827
  %5829 = vmatprep.mubr.bf16.mxu0 0
  %5830 = vmatmul.mubr.bf16.gmra.mrb[0].mxu0 %v2774
  %v5831 = vpop.f32.mrb[0].mxu0
  %v5832 = vadd.f32 0.0, %v5831
  %v5833 = vpop.f32.mrb[0].mxu0
  %v5834 = vadd.f32 0.0, %v5833
  %v5835 = vpop.f32.mrb[0].mxu0
  %v5836 = vpop.f32.mrb[0].mxu0
  %5837 = vdwg.mxu0
  %5838 = vmatprep.subr.bf16.mxu0 0
  %5839 = vmatpush1.bf16.msra.mxu0 %v5674
  %5840 = vmatprep.subr.bf16.mxu0 0
  %5841 = vmatpush1.bf16.msra.mxu0 0
  %5842 = vmatprep.subr.bf16.mxu0 0
  %5843 = vmatpush1.bf16.msra.mxu0 0
  %5844 = vmatprep.subr.bf16.mxu0 0
  %5845 = vmatpush1.bf16.msra.mxu0 0
  %5846 = vmatprep.subr.bf16.mxu0 0
  %5847 = vmatpush1.bf16.msra.mxu0 0
  %5848 = vmatprep.subr.bf16.mxu0 0
  %5849 = vmatpush1.bf16.msra.mxu0 0
  %5850 = vmatprep.subr.bf16.mxu0 0
  %5851 = vmatpush1.bf16.msra.mxu0 0
  %5852 = vmatprep.subr.bf16.mxu0 0
  %5853 = vmatpush1.bf16.msra.mxu0 0
  %5854 = vmatprep.subr.bf16.mxu0 0
  %5855 = vmatpush1.bf16.msra.mxu0 0
  %5856 = vmatprep.subr.bf16.mxu0 0
  %5857 = vmatpush1.bf16.msra.mxu0 0
  %5858 = vmatprep.subr.bf16.mxu0 0
  %5859 = vmatpush1.bf16.msra.mxu0 0
  %5860 = vmatprep.subr.bf16.mxu0 0
  %5861 = vmatpush1.bf16.msra.mxu0 0
  %5862 = vmatprep.subr.bf16.mxu0 0
  %5863 = vmatpush1.bf16.msra.mxu0 0
  %5864 = vmatprep.subr.bf16.mxu0 0
  %5865 = vmatpush1.bf16.msra.mxu0 0
  %5866 = vmatprep.subr.bf16.mxu0 0
  %5867 = vmatpush1.bf16.msra.mxu0 0
  %5868 = vmatprep.subr.bf16.mxu0 0
  %5869 = vmatpush1.bf16.msra.mxu0 0
  %5870 = vmatprep.mubr.bf16.mxu0 0
  %5871 = vmatmul.mubr.bf16.gmra.mrb[0].mxu0 %v2762
  %v5872 = vpop.f32.mrb[0].mxu0
  %v5873 = vadd.f32 0.0, %v5872
  %v5874 = vpop.f32.mrb[0].mxu0
  %v5875 = vpop.f32.mrb[0].mxu0
  %v5876 = vadd.f32 0.0, %v5875
  %v5877 = vpop.f32.mrb[0].mxu0
  %5878 = vmatprep.mubr.bf16.mxu0 0
  %5879 = vmatmul.mubr.bf16.gmra.mrb[0].mxu0 %v2765
  %v5880 = vpop.f32.mrb[0].mxu0
  %v5881 = vadd.f32 0.0, %v5880
  %v5882 = vpop.f32.mrb[0].mxu0
  %v5883 = vpop.f32.mrb[0].mxu0
  %v5884 = vadd.f32 0.0, %v5883
  %v5885 = vpop.f32.mrb[0].mxu0
  %5886 = vmatprep.mubr.bf16.mxu0 0
  %5887 = vmatmul.mubr.bf16.gmra.mrb[0].mxu0 %v2768
  %v5888 = vpop.f32.mrb[0].mxu0
  %v5889 = vadd.f32 0.0, %v5888
  %v5890 = vpop.f32.mrb[0].mxu0
  %v5891 = vpop.f32.mrb[0].mxu0
  %v5892 = vadd.f32 0.0, %v5891
  %v5893 = vpop.f32.mrb[0].mxu0
  %5894 = vmatprep.mubr.bf16.mxu0 0
  %5895 = vmatmul.mubr.bf16.gmra.mrb[0].mxu0 %v2771
  %v5896 = vpop.f32.mrb[0].mxu0
  %v5897 = vadd.f32 0.0, %v5896
  %v5898 = vpop.f32.mrb[0].mxu0
  %v5899 = vpop.f32.mrb[0].mxu0
  %v5900 = vadd.f32 0.0, %v5899
  %v5901 = vpop.f32.mrb[0].mxu0
  %5902 = vmatprep.mubr.bf16.mxu0 0
  %5903 = vmatmul.mubr.bf16.gmra.mrb[0].mxu0 %v2774
  %v5904 = vpop.f32.mrb[0].mxu0
  %v5905 = vadd.f32 0.0, %v5904
  %v5906 = vpop.f32.mrb[0].mxu0
  %v5907 = vpop.f32.mrb[0].mxu0
  %v5908 = vpop.f32.mrb[0].mxu0
  %5909 = vdwg.mxu0
  %5915 = vrot.lane.b32.xlu0 %v5715, 127
  %v5916 = vpop.permute.xlu0 %5915
  %5917 = vrot.lane.b32.xlu0 %v5717, 127
  %v5918 = vpop.permute.xlu0 %5917
  %5919 = vrot.lane.b32.xlu0 %v5796, 127
  %v5920 = vpop.permute.xlu0 %5919
  %5921 = vrot.lane.b32.xlu0 %v5798, 127
  %v5922 = vpop.permute.xlu0 %5921
  %5923 = vrot.lane.b32.xlu0 %v5876, 127
  %v5924 = vpop.permute.xlu0 %5923
  %v5925 = vsel %vm1071, %v5916, %v5918
  %v5926 = vsel %vm1071, %v5918, %v5920
  %v5927 = vsel %vm1071, %v5920, %v5922
  %v5928 = vsel %vm1071, %v5922, %v5924
  %v5934 = vadd.f32 %v5711, %v5925
  %v5935 = vadd.f32 %v5713, %v5926
  %v5936 = vadd.f32 %v5792, %v5927
  %v5937 = vadd.f32 %v5794, %v5928
  %v5938 = vadd.f32 %v5873, %v5924
  %5944 = vrot.lane.b32.xlu0 %v5725, 106
  %v5945 = vpop.permute.xlu0 %5944
  %5946 = vrot.lane.b32.xlu0 %v5727, 106
  %v5947 = vpop.permute.xlu0 %5946
  %5948 = vrot.lane.b32.xlu0 %v5806, 106
  %v5949 = vpop.permute.xlu0 %5948
  %5950 = vrot.lane.b32.xlu0 %v5808, 106
  %v5951 = vpop.permute.xlu0 %5950
  %5952 = vrot.lane.b32.xlu0 %v5884, 106
  %v5953 = vpop.permute.xlu0 %5952
  %v5954 = vsel %vm1200, %v5945, %v5947
  %v5955 = vsel %vm1200, %v5947, %v5949
  %v5956 = vsel %vm1200, %v5949, %v5951
  %v5957 = vsel %vm1200, %v5951, %v5953
  %v5963 = vadd.f32 %v5721, %v5954
  %v5964 = vadd.f32 %v5723, %v5955
  %v5965 = vadd.f32 %v5802, %v5956
  %v5966 = vadd.f32 %v5804, %v5957
  %v5967 = vadd.f32 %v5881, %v5953
  %5973 = vrot.lane.b32.xlu0 %v5735, 127
  %v5974 = vpop.permute.xlu0 %5973
  %5975 = vrot.lane.b32.xlu0 %v5737, 127
  %v5976 = vpop.permute.xlu0 %5975
  %5977 = vrot.lane.b32.xlu0 %v5816, 127
  %v5978 = vpop.permute.xlu0 %5977
  %5979 = vrot.lane.b32.xlu0 %v5818, 127
  %v5980 = vpop.permute.xlu0 %5979
  %5981 = vrot.lane.b32.xlu0 %v5892, 127
  %v5982 = vpop.permute.xlu0 %5981
  %v5983 = vsel %vm1071, %v5974, %v5976
  %v5984 = vsel %vm1071, %v5976, %v5978
  %v5985 = vsel %vm1071, %v5978, %v5980
  %v5986 = vsel %vm1071, %v5980, %v5982
  %v5992 = vadd.f32 %v5731, %v5983
  %v5993 = vadd.f32 %v5733, %v5984
  %v5994 = vadd.f32 %v5812, %v5985
  %v5995 = vadd.f32 %v5814, %v5986
  %v5996 = vadd.f32 %v5889, %v5982
  %6002 = vrot.lane.b32.xlu0 %v5745, 127
  %v6003 = vpop.permute.xlu0 %6002
  %6004 = vrot.lane.b32.xlu0 %v5747, 127
  %v6005 = vpop.permute.xlu0 %6004
  %6006 = vrot.lane.b32.xlu0 %v5826, 127
  %v6007 = vpop.permute.xlu0 %6006
  %6008 = vrot.lane.b32.xlu0 %v5828, 127
  %v6009 = vpop.permute.xlu0 %6008
  %6010 = vrot.lane.b32.xlu0 %v5900, 127
  %v6011 = vpop.permute.xlu0 %6010
  %v6012 = vsel %vm1071, %v6003, %v6005
  %v6013 = vsel %vm1071, %v6005, %v6007
  %v6014 = vsel %vm1071, %v6007, %v6009
  %v6015 = vsel %vm1071, %v6009, %v6011
  %v6021 = vadd.f32 %v5741, %v6012
  %v6022 = vadd.f32 %v5743, %v6013
  %v6023 = vadd.f32 %v5822, %v6014
  %v6024 = vadd.f32 %v5824, %v6015
  %v6025 = vadd.f32 %v5897, %v6011
  %6031 = vrot.lane.b32.xlu0 %v5963, 126
  %v6032 = vpop.permute.xlu0 %6031
  %6033 = vrot.lane.b32.xlu0 %v5964, 126
  %v6034 = vpop.permute.xlu0 %6033
  %6035 = vrot.lane.b32.xlu0 %v5965, 126
  %v6036 = vpop.permute.xlu0 %6035
  %6037 = vrot.lane.b32.xlu0 %v5966, 126
  %v6038 = vpop.permute.xlu0 %6037
  %6039 = vrot.lane.b32.xlu0 %v5967, 126
  %v6040 = vpop.permute.xlu0 %6039
  %v6041 = vsel %vm1601, %v6032, %v6034
  %v6042 = vsel %vm1601, %v6034, %v6036
  %v6043 = vsel %vm1601, %v6036, %v6038
  %v6044 = vsel %vm1601, %v6038, %v6040
  %v6050 = vadd.f32 %v5934, %v6041
  %v6051 = vadd.f32 %v5935, %v6042
  %v6052 = vadd.f32 %v5936, %v6043
  %v6053 = vadd.f32 %v5937, %v6044
  %v6054 = vadd.f32 %v5938, %v6040
  %6060 = vrot.lane.b32.xlu0 %v6021, 105
  %v6061 = vpop.permute.xlu0 %6060
  %6062 = vrot.lane.b32.xlu0 %v6022, 105
  %v6063 = vpop.permute.xlu0 %6062
  %6064 = vrot.lane.b32.xlu0 %v6023, 105
  %v6065 = vpop.permute.xlu0 %6064
  %6066 = vrot.lane.b32.xlu0 %v6024, 105
  %v6067 = vpop.permute.xlu0 %6066
  %6068 = vrot.lane.b32.xlu0 %v6025, 105
  %v6069 = vpop.permute.xlu0 %6068
  %v6070 = vsel %vm1730, %v6061, %v6063
  %v6071 = vsel %vm1730, %v6063, %v6065
  %v6072 = vsel %vm1730, %v6065, %v6067
  %v6073 = vsel %vm1730, %v6067, %v6069
  %v6079 = vadd.f32 %v5992, %v6070
  %v6080 = vadd.f32 %v5993, %v6071
  %v6081 = vadd.f32 %v5994, %v6072
  %v6082 = vadd.f32 %v5995, %v6073
  %v6083 = vadd.f32 %v5996, %v6069
  %6089 = vrot.lane.b32.xlu0 %v6079, 103
  %v6090 = vpop.permute.xlu0 %6089
  %6091 = vrot.lane.b32.xlu0 %v6080, 103
  %v6092 = vpop.permute.xlu0 %6091
  %6093 = vrot.lane.b32.xlu0 %v6081, 103
  %v6094 = vpop.permute.xlu0 %6093
  %6095 = vrot.lane.b32.xlu0 %v6082, 103
  %v6096 = vpop.permute.xlu0 %6095
  %6097 = vrot.lane.b32.xlu0 %v6083, 103
  %v6098 = vpop.permute.xlu0 %6097
  %v6099 = vsel %vm1871, %v6090, %v6092
  %v6100 = vsel %vm1871, %v6092, %v6094
  %v6101 = vsel %vm1871, %v6094, %v6096
  %v6102 = vsel %vm1871, %v6096, %v6098
  %v6108 = vadd.f32 %v6050, %v6099
  %v6109 = vadd.f32 %v6051, %v6100
  %v6110 = vadd.f32 %v6052, %v6101
  %v6111 = vadd.f32 %v6053, %v6102
  %v6112 = vadd.f32 %v6054, %v6098
  %6118 = vrot.lane.b32.xlu0 %v5751, 78
  %v6119 = vpop.permute.xlu0 %6118
  %6120 = vrot.lane.b32.xlu0 %v5753, 78
  %v6121 = vpop.permute.xlu0 %6120
  %6122 = vrot.lane.b32.xlu0 %v5832, 78
  %v6123 = vpop.permute.xlu0 %6122
  %6124 = vrot.lane.b32.xlu0 %v5834, 78
  %v6125 = vpop.permute.xlu0 %6124
  %6126 = vrot.lane.b32.xlu0 %v5905, 78
  %v6127 = vpop.permute.xlu0 %6126
  %v6128 = vsel %vm2004, %v6119, %v6121
  %v6129 = vsel %vm2004, %v6121, %v6123
  %v6130 = vsel %vm2004, %v6123, %v6125
  %v6131 = vsel %vm2004, %v6125, %v6127
  %v6137 = vadd.f32 %v6108, %v6128
  %v6138 = vadd.f32 %v6109, %v6129
  %v6139 = vadd.f32 %v6110, %v6130
  %v6140 = vadd.f32 %v6111, %v6131
  %v6141 = vadd.f32 %v6112, %v6127
  %v6142 = vadd.f32 %v6137, %v3261
  %v6143 = vadd.f32 %v6138, %v3261
  %v6144 = vadd.f32 %v6139, %v3261
  %v6145 = vadd.f32 %v6140, %v3261
  %v6146 = vadd.f32 %v6141, %v3261
  %v6147 = vtanh.pop %v6142
  %v6148 = vtanh.pop %v6143
  %v6149 = vtanh.pop %v6144
  %v6150 = vtanh.pop %v6145
  %v6151 = vtanh.pop %v6146
  %v6156 = vcombine.low %v6147, %v6148
  %v6157 = vcombine.low %v6149, %v6150
  %s6160 = scalar_lea.vmem %s9, 20
  %6161 = vst [vmem:[%s6160] sm:$0x77] %v6156
  %6162 = vst [vmem:[%s6160 + $0x8] sm:$0x77] %v6157
  %6163 = vst.msk [vmem:[%s6160 + $0x10] sm:$0x7] %vm3283, %v6151
  // Predicated region
  $region38: #{model_forward.1} parent=0 // pred_check
    _
  $region39: #{model_forward.1} parent=0 // pred_check_branch
    %6165 = sbr.rel (0) target = $region41
  $region40: #{model_forward.1} parent=0 // pred_region
    _
  $region41: #{model_forward.1} parent=0 // pred_fallthru
    _
  // Predicated region
  $region42: #{model_forward.1} parent=0 // pred_check
    _
  $region43: #{model_forward.1} parent=0 // pred_check_branch
    %6167 = sbr.rel (0) target = $region45
  $region44: #{model_forward.1} parent=0 // pred_region
    _
  $region45: #{model_forward.1} parent=0 // pred_fallthru
    _

</llo_original>
